<compile_context>
chip_gen: v7x
topology: tpu7x:2x2x1
jax: 0.10.0
libtpu: 0.0.40
codegen_flags: <defaults>
</compile_context>

<pallas_src>
import functools

import jax
import jax.numpy as jnp
from jax.experimental import pallas as pl
from jax.experimental.pallas import tpu as pltpu


_MAX_TILE_T = 512                      # safe for v7x's 64 MiB VMEM with the fused kernel
_VMEM_LIMIT_BYTES = 48 * 1024 * 1024


def _round_up(x, m):
    return ((x + m - 1) // m) * m


def _compiler_params():
    return pltpu.CompilerParams(
        dimension_semantics=("parallel", "parallel"),
        vmem_limit_bytes=_VMEM_LIMIT_BYTES,
    )


def _plan_tiles(T, h_pad, max_tile_t):
    """tile_t: multiple of h_pad, >= h_pad, <= max_tile_t; T padded to a tile multiple."""
    cap = max(h_pad, (max_tile_t // h_pad) * h_pad)
    tile_t = min(cap, _round_up(T, h_pad))
    t_pad = _round_up(T, tile_t)
    return tile_t, t_pad


# ---------------------------------------------------------------------------
# Pallas kernels
# ---------------------------------------------------------------------------

def _pointwise_kernel(x_ref, w_ref, b_ref, o_ref):
    # (tile_t, Cin) @ (Cin, Cout) + bias — bf16 MXU operands, f32 accumulation.
    o_ref[0] = jnp.dot(x_ref[0].astype(jnp.bfloat16), w_ref[...],
                       preferred_element_type=jnp.float32) + b_ref[...]


def pointwise_conv(x, w, b, *, tile_t):
    """1x1 Conv1d: (B,T,Cin) @ (Cin,Cout) + bias -> (B,T,Cout), tiled over (B, T)."""
    B, T, Cin = x.shape
    Cout = w.shape[1]
    nt = T // tile_t
    cur = lambda i, t: (i, t, 0)
    wmap = lambda i, t: (0, 0)
    return pl.pallas_call(
        _pointwise_kernel,
        out_shape=jax.ShapeDtypeStruct((B, T, Cout), jnp.float32),
        grid=(B, nt),
        in_specs=[pl.BlockSpec((1, tile_t, Cin), cur),
                  pl.BlockSpec((Cin, Cout), wmap),
                  pl.BlockSpec((1, Cout), wmap)],
        out_specs=pl.BlockSpec((1, tile_t, Cout), cur),
        compiler_params=_compiler_params(),
    )(x, w, b)


def _wn_flow_kernel(ap_ref, ac_ref, an_ref, spp_ref, spc_ref, spn_ref,
                    ws_ref, bs_ref,
                    wm_ref, wc_ref, wp_ref, wcond_ref, bg_ref,
                    wrs_ref, brs_ref,
                    web_ref, beb_ref, wes_ref, bes_ref,
                    wct_ref, wcb_ref, bci_ref,
                    o_ref,
                    *, n_layers, n_channels, n_half, tile_t, h_pad, t_valid):
    """One full flow step on a (tile_t + 2*h_pad)-row window:

       start conv -> L dilated gated WN layers -> end conv -> affine inverse -> convinv.

    The h_pad >= 2^L - 1 halo rows on each side are recomputed so x/acc stay in VMEM
    across layers; only the central tile_t rows are written back to HBM.
    """
    C = n_channels
    E = tile_t + 2 * h_pad
    t = pl.program_id(1)
    t0 = t * tile_t - h_pad                           # global time index of extended row 0

    # Extended (halo) windows, assembled with cheap sublane-aligned concats.
    aud_ext = jnp.concatenate([ap_ref[0], ac_ref[0], an_ref[0]], axis=0)     # (E, hid) f32
    sp_ext = jnp.concatenate([spp_ref[0], spc_ref[0], spn_ref[0]],
                             axis=0).astype(jnp.bfloat16)                    # (E, mel)

    # Global row index as an (E, 1) column; comparisons broadcast in the jnp.where.
    g = jax.lax.broadcasted_iota(jnp.int32, (E, 1), 0) + t0

    # WN "start" 1x1 conv; the zero-padded weight makes aud_ext @ w == a0_ext @ w_start.
    x = jnp.dot(aud_ext.astype(jnp.bfloat16), ws_ref[...],
                preferred_element_type=jnp.float32) + bs_ref[...]            # (E, C) f32
    acc = jnp.zeros((E, C), jnp.float32)

    for i in range(n_layers):
        d = 2 ** i
        # x[t-d] / x[t+d] with zero padding at the true sequence boundaries.  Rows whose
        # source falls outside [0, t_valid) are masked, which also neutralizes the
        # clamped halo reads at the sequence ends and any rows in the T-padding region.
        x_m = jnp.where(g >= d, jnp.roll(x, d, axis=0), 0.0).astype(jnp.bfloat16)
        x_p = jnp.where(g < t_valid - d, jnp.roll(x, -d, axis=0), 0.0).astype(jnp.bfloat16)
        # Four accumulating MXU dots (no lane-axis concat / relayout).
        pre = (jnp.dot(x_m, wm_ref[i], preferred_element_type=jnp.float32)
               + jnp.dot(x.astype(jnp.bfloat16), wc_ref[i],
                         preferred_element_type=jnp.float32)
               + jnp.dot(x_p, wp_ref[i], preferred_element_type=jnp.float32)
               + jnp.dot(sp_ext, wcond_ref[i], preferred_element_type=jnp.float32)
               + bg_ref[i])
        acts = (jnp.tanh(pre[:, :C]) * jax.nn.sigmoid(pre[:, C:])).astype(jnp.bfloat16)
        rs = jnp.dot(acts, wrs_ref[i], preferred_element_type=jnp.float32) + brs_ref[i]
        if i + 1 < n_layers:
            x = x + rs[:, :C]                     # residual
        acc = acc + rs[:, C:]                     # skip (last layer's res half is zero-padded)

    # end conv + affine-coupling inverse + convinv, central rows only.
    acc_c = acc[h_pad:h_pad + tile_t].astype(jnp.bfloat16)
    b_aff = jnp.dot(acc_c, web_ref[...], preferred_element_type=jnp.float32) + beb_ref[...]
    s_aff = jnp.dot(acc_c, wes_ref[...], preferred_element_type=jnp.float32) + bes_ref[...]
    aud_c = ac_ref[0]                             # (tile_t, hid) f32
    a0 = aud_c[:, :n_half]
    new_a1 = (aud_c[:, n_half:] - b_aff) * jnp.exp(-s_aff)      # f32 elementwise / EUP
    o_ref[0] = (jnp.dot(a0.astype(jnp.bfloat16), wct_ref[...],
                        preferred_element_type=jnp.float32)
                + jnp.dot(new_a1.astype(jnp.bfloat16), wcb_ref[...],
                          preferred_element_type=jnp.float32)
                + bci_ref[...])


def wn_flow_step(audio, spect, wn, *, tile_t, h_pad, t_valid):
    """One fused wavenet flow step: (B, T_pad, hid) -> (B, T_pad, hid)."""
    B, T_pad, hid = audio.shape
    mel = spect.shape[2]
    C = wn["w_start"].shape[1]
    n_half = hid // 2
    L = wn["wm"].shape[0]
    nt = T_pad // tile_t
    k = tile_t // h_pad
    nhb = T_pad // h_pad

    assert tile_t % h_pad == 0 and T_pad % tile_t == 0
    assert h_pad % 8 == 0 and h_pad <= tile_t
    assert h_pad >= 2 ** L - 1, "halo must cover the fused stack's receptive-field growth"

    kern = functools.partial(_wn_flow_kernel, n_layers=L, n_channels=C, n_half=n_half,
                             tile_t=tile_t, h_pad=h_pad, t_valid=t_valid)

    cur = lambda b, t: (b, t, 0)
    # halo blocks: h_pad rows immediately before / after the current tile (clamped).
    prv = lambda b, t: (b, jnp.maximum(t * k - 1, 0), 0)
    nxt = lambda b, t: (b, jnp.minimum((t + 1) * k, nhb - 1), 0)

    def full(arr):
        return pl.BlockSpec(arr.shape, lambda *_: (0,) * arr.ndim)

    return pl.pallas_call(
        kern,
        out_shape=jax.ShapeDtypeStruct((B, T_pad, hid), jnp.float32),
        grid=(B, nt),
        in_specs=[
            pl.BlockSpec((1, h_pad, hid), prv),       # audio, previous halo
            pl.BlockSpec((1, tile_t, hid), cur),      # audio, current tile
            pl.BlockSpec((1, h_pad, hid), nxt),       # audio, next halo
            pl.BlockSpec((1, h_pad, mel), prv),       # spect, previous halo
            pl.BlockSpec((1, tile_t, mel), cur),      # spect, current tile
            pl.BlockSpec((1, h_pad, mel), nxt),       # spect, next halo
            full(wn["w_start"]), full(wn["b_start"]),
            full(wn["wm"]), full(wn["wc"]), full(wn["wp"]),
            full(wn["wcond"]), full(wn["bg"]),
            full(wn["wrs"]), full(wn["brs"]),
            full(wn["we_b"]), full(wn["be_b"]), full(wn["we_s"]), full(wn["be_s"]),
            full(wn["wc_top"]), full(wn["wc_bot"]), full(wn["b_ci"]),
        ],
        out_specs=pl.BlockSpec((1, tile_t, hid), cur),
        compiler_params=_compiler_params(),
    )(audio, audio, audio, spect, spect, spect,
      wn["w_start"], wn["b_start"],
      wn["wm"], wn["wc"], wn["wp"], wn["wcond"], wn["bg"],
      wn["wrs"], wn["brs"],
      wn["we_b"], wn["be_b"], wn["we_s"], wn["be_s"],
      wn["wc_top"], wn["wc_bot"], wn["b_ci"])


# ---------------------------------------------------------------------------
# Parameters (deterministic synthetic init, pre-packed + pre-cast for the kernels)
# ---------------------------------------------------------------------------

def init_params(key, in_channels, mel_channels, hid_channels,
                wavenet_channels, n_wavenets, wavenet_layers):
    n_half = hid_channels // 2
    C, L = wavenet_channels, wavenet_layers
    keys = iter(jax.random.split(key, 4096))

    def nrm(shape, scale=0.1):
        return scale * jax.random.normal(next(keys), shape, dtype=jnp.float32)

    def bf(x):
        return x.astype(jnp.bfloat16)        # matmul weights stored bf16 (halved DMA/VMEM)

    params = {
        "in_proj": (bf(nrm((in_channels, hid_channels))), nrm((1, hid_channels))),
        "out_proj": (bf(nrm((hid_channels, in_channels))), nrm((1, in_channels))),
        "wn": [],
    }
    for _ in range(n_wavenets):
        # "start" weight zero-padded to the full hid width so the fused kernel consumes
        # the whole audio block (audio @ W_start_pad == a0 @ W_start).
        start_w = jnp.concatenate(
            [nrm((n_half, C)), jnp.zeros((hid_channels - n_half, C), jnp.float32)], axis=0)
        wm = nrm((L, C, 2 * C))
        wc = nrm((L, C, 2 * C))
        wp = nrm((L, C, 2 * C))
        wcond = nrm((L, mel_channels, 2 * C))
        bg = nrm((L, 1, 2 * C))
        # res_skip: layers 0..L-2 output 2C (res|skip); the last layer outputs only C
        # (skip) and is zero-padded into the res half so the in-kernel update is uniform.
        wrs = nrm((L, C, 2 * C))
        brs = nrm((L, 1, 2 * C))
        wrs = wrs.at[L - 1].set(
            jnp.concatenate([jnp.zeros((C, C), jnp.float32), wrs[L - 1, :, C:]], axis=1))
        brs = brs.at[L - 1].set(
            jnp.concatenate([jnp.zeros((1, C), jnp.float32), brs[L - 1, :, C:]], axis=1))
        params["wn"].append(dict(
            w_start=bf(start_w), b_start=nrm((1, C)),
            wm=bf(wm), wc=bf(wc), wp=bf(wp), wcond=bf(wcond), bg=bg,
            wrs=bf(wrs), brs=brs,
            # end conv split into its b / s column halves (no lane slicing of wn_out)
            we_b=bf(nrm((C, n_half))), be_b=nrm((1, n_half)),
            we_s=bf(nrm((C, n_half))), be_s=nrm((1, n_half)),
            # convinv weight split by rows (no lane-axis concat of [a0, new_a1])
            wc_top=bf(nrm((n_half, hid_channels))),
            wc_bot=bf(nrm((n_half, hid_channels))),
            b_ci=nrm((1, hid_channels)),
        ))
    return params


# ---------------------------------------------------------------------------
# Model forward (glue in plain JAX, hot path in one fused Pallas kernel per wavenet)
# ---------------------------------------------------------------------------

def wide_flow_student_forward(params, audio_ncl, spect_ncl, *, max_tile_t=_MAX_TILE_T):
    # PyTorch NCL -> kernel BTC
    audio = jnp.transpose(audio_ncl, (0, 2, 1)).astype(jnp.float32)
    spect = jnp.transpose(spect_ncl, (0, 2, 1)).astype(jnp.float32)
    B, T, _ = audio.shape

    L = params["wn"][0]["wm"].shape[0]
    h_pad = max(8, _round_up(2 ** L - 1, 8))          # halo rows per side (sublane aligned)
    tile_t, t_pad = _plan_tiles(T, h_pad, max_tile_t)
    if t_pad != T:
        # Pad T to a tile multiple; in-kernel masks use the true T so the zero-padding
        # semantics of the dilated convs are unchanged; padded rows are sliced off below.
        pad = ((0, 0), (0, t_pad - T), (0, 0))
        audio = jnp.pad(audio, pad)
        spect = jnp.pad(spect, pad)

    audio = pointwise_conv(audio, *params["in_proj"], tile_t=tile_t)
    for wn in params["wn"]:
        audio = wn_flow_step(audio, spect, wn, tile_t=tile_t, h_pad=h_pad, t_valid=T)
    out = pointwise_conv(audio, *params["out_proj"], tile_t=tile_t)
    return jnp.transpose(out[:, :T], (0, 2, 1))       # back to NCL


# ---------------------------------------------------------------------------
# Pure-JAX reference (mirrors PyTorch semantics) for correctness check
# ---------------------------------------------------------------------------

def ref_forward(params, audio_ncl, spect_ncl):
    audio = jnp.transpose(audio_ncl, (0, 2, 1)).astype(jnp.float32)
    spect = jnp.transpose(spect_ncl, (0, 2, 1)).astype(jnp.float32)
    f32 = lambda w: w.astype(jnp.float32)

    def pw(x, w, b):
        return jnp.einsum("btc,cd->btd", x, f32(w)) + b

    def shift(x, s):
        # returns y with y[t] = x[t - s] (zero padded)
        B, T, C = x.shape
        if s > 0:
            return jnp.concatenate([jnp.zeros((B, s, C), x.dtype), x[:, :T - s]], axis=1)
        if s < 0:
            return jnp.concatenate([x[:, -s:], jnp.zeros((B, -s, C), x.dtype)], axis=1)
        return x

    audio = pw(audio, *params["in_proj"])
    for wn in params["wn"]:
        hid = audio.shape[2]
        n_half = hid // 2
        C = wn["w_start"].shape[1]
        L = wn["wm"].shape[0]
        a0, a1 = audio[:, :, :n_half], audio[:, :, n_half:]
        x = pw(a0, wn["w_start"][:n_half], wn["b_start"])     # true WN start conv on a0
        acc = jnp.zeros_like(x)
        for i in range(L):
            d = 2 ** i
            pre = (jnp.einsum("btc,cd->btd", shift(x, d), f32(wn["wm"][i]))
                   + jnp.einsum("btc,cd->btd", x, f32(wn["wc"][i]))
                   + jnp.einsum("btc,cd->btd", shift(x, -d), f32(wn["wp"][i]))
                   + jnp.einsum("btc,cd->btd", spect, f32(wn["wcond"][i]))
                   + wn["bg"][i])
            acts = jnp.tanh(pre[:, :, :C]) * jax.nn.sigmoid(pre[:, :, C:])
            if i < L - 1:
                rs = jnp.einsum("btc,cd->btd", acts, f32(wn["wrs"][i])) + wn["brs"][i]
                x = x + rs[:, :, :C]
                acc = acc + rs[:, :, C:]
            else:
                rs = (jnp.einsum("btc,cd->btd", acts, f32(wn["wrs"][i, :, C:]))
                      + wn["brs"][i, :, C:])
                acc = acc + rs
        b_aff = jnp.einsum("btc,cd->btd", acc, f32(wn["we_b"])) + wn["be_b"]
        s_aff = jnp.einsum("btc,cd->btd", acc, f32(wn["we_s"])) + wn["be_s"]
        a1 = (a1 - b_aff) / jnp.exp(s_aff)
        w_ci = jnp.concatenate([wn["wc_top"], wn["wc_bot"]], axis=0)
        audio = pw(jnp.concatenate([a0, a1], axis=2), w_ci, wn["b_ci"])
    out = pw(audio, *params["out_proj"])
    return jnp.transpose(out, (0, 2, 1))


# ---------------------------------------------------------------------------

if __name__ == "__main__":
    # Small, forward-consistent shapes: audio (B, in_channels, T), spect (B, mel, T).
    # T=40 + max_tile_t=16 exercises the multi-tile halo path, end-clamping and T-padding.
    B, IN_CH, MEL, HID, T = 2, 4, 8, 16, 40
    N_WAVENETS, WN_LAYERS = 2, 3

    key = jax.random.PRNGKey(0)
    k_a, k_s, k_p = jax.random.split(key, 3)
    audio = jax.random.normal(k_a, (B, IN_CH, T), dtype=jnp.float32)   # PyTorch NCL
    spect = jax.random.normal(k_s, (B, MEL, T), dtype=jnp.float32)

    params = init_params(k_p, IN_CH, MEL, HID, HID, N_WAVENETS, WN_LAYERS)

    fwd = jax.jit(functools.partial(wide_flow_student_forward, max_tile_t=16))
    out = jax.block_until_ready(fwd(params, audio, spect))

    ref = ref_forward(params, audio, spect)
    assert out.shape == (B, IN_CH, T), out.shape
    err = float(jnp.max(jnp.abs(out - ref)))
    # bf16 MXU operands with f32 accumulation -> relaxed tolerance vs. the f32 reference
    assert err < 2e-2, err

    print("KERNEL_OK")
</pallas_src>

<mosaic_0001>
module attributes {stable_mosaic.version = 11 : i64} {
  func.func @_pointwise_kernel(%arg0: i32, %arg1: i32, %arg2: memref<1x16x4xf32, #tpu.memory_space<vmem>>, %arg3: memref<4x16xbf16, #tpu.memory_space<vmem>>, %arg4: memref<1x16xf32, #tpu.memory_space<vmem>>, %arg5: memref<1x16x16xf32, #tpu.memory_space<vmem>>) attributes {dimension_semantics = [#tpu.dimension_semantics<parallel>, #tpu.dimension_semantics<parallel>], iteration_bounds = array<i64: 2, 3>, scalar_prefetch = 0 : i64, scratch_operands = 0 : i64, tpu.core_type = #tpu.core_type<tc>, window_params = [{transform_indices = @transform_0, window_bounds = array<i64: 1, 16, 4>}, {pipeline_mode = #tpu.pipeline_mode<synchronous>, transform_indices = @transform_1, window_bounds = array<i64: 4, 16>}, {pipeline_mode = #tpu.pipeline_mode<synchronous>, transform_indices = @transform_2, window_bounds = array<i64: 1, 16>}, {transform_indices = @transform_3, window_bounds = array<i64: 1, 16, 16>}]} {
    %c0 = arith.constant 0 : index
    %c0_0 = arith.constant 0 : index
    %c0_1 = arith.constant 0 : index
    %0 = vector.load %arg2[%c0, %c0_0, %c0_1] : memref<1x16x4xf32, #tpu.memory_space<vmem>>, vector<1x16x4xf32>
    %1 = vector.shape_cast %0 : vector<1x16x4xf32> to vector<16x4xf32>
    %2 = arith.truncf %1 : vector<16x4xf32> to vector<16x4xbf16>
    %c0_2 = arith.constant 0 : index
    %c0_3 = arith.constant 0 : index
    %3 = vector.load %arg3[%c0_2, %c0_3] : memref<4x16xbf16, #tpu.memory_space<vmem>>, vector<4x16xbf16>
    %cst = arith.constant dense<0.000000e+00> : vector<16x16xf32>
    %4 = tpu.matmul %2, %3, %cst {dimension_numbers = #tpu.dot_dimension_numbers<[1], [0], [0], [1], [0, 0, 1, 1], [], []>} : vector<16x4xbf16>, vector<4x16xbf16>, vector<16x16xf32> -> vector<16x16xf32>
    %c0_4 = arith.constant 0 : index
    %c0_5 = arith.constant 0 : index
    %5 = vector.load %arg4[%c0_4, %c0_5] : memref<1x16xf32, #tpu.memory_space<vmem>>, vector<1x16xf32>
    %6 = vector.broadcast %5 : vector<1x16xf32> to vector<16x16xf32>
    %7 = arith.addf %4, %6 : vector<16x16xf32>
    %c0_6 = arith.constant 0 : index
    %c0_7 = arith.constant 0 : index
    %c0_8 = arith.constant 0 : index
    %8 = vector.load %arg5[%c0_6, %c0_7, %c0_8] : memref<1x16x16xf32, #tpu.memory_space<vmem>>, vector<1x16x16xf32>
    %9 = vector.shape_cast %8 : vector<1x16x16xf32> to vector<16x16xf32>
    %10 = vector.shape_cast %7 : vector<16x16xf32> to vector<1x16x16xf32>
    tpu.vector_store %arg5[%c0_6, %c0_7, %c0_8], %10 {strides = array<i32>} : memref<1x16x16xf32, #tpu.memory_space<vmem>>, vector<1x16x16xf32>,
    return
  }
  func.func @transform_0(%arg0: i32, %arg1: i32) -> (i32, i32, i32) {
    %c0_i32 = arith.constant 0 : i32
    %c0_i32_0 = arith.constant 0 : i32
    return %arg0, %arg1, %c0_i32 : i32, i32, i32
  }
  func.func @transform_1(%arg0: i32, %arg1: i32) -> (i32, i32) {
    %c0_i32 = arith.constant 0 : i32
    %c0_i32_0 = arith.constant 0 : i32
    %c0_i32_1 = arith.constant 0 : i32
    return %c0_i32, %c0_i32_0 : i32, i32
  }
  func.func @transform_2(%arg0: i32, %arg1: i32) -> (i32, i32) {
    %c0_i32 = arith.constant 0 : i32
    %c0_i32_0 = arith.constant 0 : i32
    %c0_i32_1 = arith.constant 0 : i32
    return %c0_i32, %c0_i32_0 : i32, i32
  }
  func.func @transform_3(%arg0: i32, %arg1: i32) -> (i32, i32, i32) {
    %c0_i32 = arith.constant 0 : i32
    %c0_i32_0 = arith.constant 0 : i32
    return %arg0, %arg1, %c0_i32 : i32, i32, i32
  }
}

module attributes {stable_mosaic.version = 11 : i64} {
  func.func @_pointwise_kernel(%arg0: i32, %arg1: i32, %arg2: memref<1x16x16xf32, #tpu.memory_space<vmem>>, %arg3: memref<16x4xbf16, #tpu.memory_space<vmem>>, %arg4: memref<1x4xf32, #tpu.memory_space<vmem>>, %arg5: memref<1x16x4xf32, #tpu.memory_space<vmem>>) attributes {dimension_semantics = [#tpu.dimension_semantics<parallel>, #tpu.dimension_semantics<parallel>], iteration_bounds = array<i64: 2, 3>, scalar_prefetch = 0 : i64, scratch_operands = 0 : i64, tpu.core_type = #tpu.core_type<tc>, window_params = [{transform_indices = @transform_0, window_bounds = array<i64: 1, 16, 16>}, {pipeline_mode = #tpu.pipeline_mode<synchronous>, transform_indices = @transform_1, window_bounds = array<i64: 16, 4>}, {pipeline_mode = #tpu.pipeline_mode<synchronous>, transform_indices = @transform_2, window_bounds = array<i64: 1, 4>}, {transform_indices = @transform_3, window_bounds = array<i64: 1, 16, 4>}]} {
    %c0 = arith.constant 0 : index
    %c0_0 = arith.constant 0 : index
    %c0_1 = arith.constant 0 : index
    %0 = vector.load %arg2[%c0, %c0_0, %c0_1] : memref<1x16x16xf32, #tpu.memory_space<vmem>>, vector<1x16x16xf32>
    %1 = vector.shape_cast %0 : vector<1x16x16xf32> to vector<16x16xf32>
    %2 = arith.truncf %1 : vector<16x16xf32> to vector<16x16xbf16>
    %c0_2 = arith.constant 0 : index
    %c0_3 = arith.constant 0 : index
    %3 = vector.load %arg3[%c0_2, %c0_3] : memref<16x4xbf16, #tpu.memory_space<vmem>>, vector<16x4xbf16>
    %cst = arith.constant dense<0.000000e+00> : vector<16x4xf32>
    %4 = tpu.matmul %2, %3, %cst {dimension_numbers = #tpu.dot_dimension_numbers<[1], [0], [0], [1], [0, 0, 1, 1], [], []>} : vector<16x16xbf16>, vector<16x4xbf16>, vector<16x4xf32> -> vector<16x4xf32>
    %c0_4 = arith.constant 0 : index
    %c0_5 = arith.constant 0 : index
    %5 = vector.load %arg4[%c0_4, %c0_5] : memref<1x4xf32, #tpu.memory_space<vmem>>, vector<1x4xf32>
    %6 = vector.broadcast %5 : vector<1x4xf32> to vector<16x4xf32>
    %7 = arith.addf %4, %6 : vector<16x4xf32>
    %c0_6 = arith.constant 0 : index
    %c0_7 = arith.constant 0 : index
    %c0_8 = arith.constant 0 : index
    %8 = vector.load %arg5[%c0_6, %c0_7, %c0_8] : memref<1x16x4xf32, #tpu.memory_space<vmem>>, vector<1x16x4xf32>
    %9 = vector.shape_cast %8 : vector<1x16x4xf32> to vector<16x4xf32>
    %10 = vector.shape_cast %7 : vector<16x4xf32> to vector<1x16x4xf32>
    tpu.vector_store %arg5[%c0_6, %c0_7, %c0_8], %10 {strides = array<i32>} : memref<1x16x4xf32, #tpu.memory_space<vmem>>, vector<1x16x4xf32>,
    return
  }
  func.func @transform_0(%arg0: i32, %arg1: i32) -> (i32, i32, i32) {
    %c0_i32 = arith.constant 0 : i32
    %c0_i32_0 = arith.constant 0 : i32
    return %arg0, %arg1, %c0_i32 : i32, i32, i32
  }
  func.func @transform_1(%arg0: i32, %arg1: i32) -> (i32, i32) {
    %c0_i32 = arith.constant 0 : i32
    %c0_i32_0 = arith.constant 0 : i32
    %c0_i32_1 = arith.constant 0 : i32
    return %c0_i32, %c0_i32_0 : i32, i32
  }
  func.func @transform_2(%arg0: i32, %arg1: i32) -> (i32, i32) {
    %c0_i32 = arith.constant 0 : i32
    %c0_i32_0 = arith.constant 0 : i32
    %c0_i32_1 = arith.constant 0 : i32
    return %c0_i32, %c0_i32_0 : i32, i32
  }
  func.func @transform_3(%arg0: i32, %arg1: i32) -> (i32, i32, i32) {
    %c0_i32 = arith.constant 0 : i32
    %c0_i32_0 = arith.constant 0 : i32
    return %arg0, %arg1, %c0_i32 : i32, i32, i32
  }
}

module attributes {stable_mosaic.version = 11 : i64} {
  func.func @_wn_flow_kernel(%arg0: i32, %arg1: i32, %arg2: memref<1x8x16xf32, #tpu.memory_space<vmem>>, %arg3: memref<1x16x16xf32, #tpu.memory_space<vmem>>, %arg4: memref<1x8x16xf32, #tpu.memory_space<vmem>>, %arg5: memref<1x8x8xf32, #tpu.memory_space<vmem>>, %arg6: memref<1x16x8xf32, #tpu.memory_space<vmem>>, %arg7: memref<1x8x8xf32, #tpu.memory_space<vmem>>, %arg8: memref<16x16xbf16, #tpu.memory_space<vmem>>, %arg9: memref<1x16xf32, #tpu.memory_space<vmem>>, %arg10: memref<3x16x32xbf16, #tpu.memory_space<vmem>>, %arg11: memref<3x16x32xbf16, #tpu.memory_space<vmem>>, %arg12: memref<3x16x32xbf16, #tpu.memory_space<vmem>>, %arg13: memref<3x8x32xbf16, #tpu.memory_space<vmem>>, %arg14: memref<3x1x32xf32, #tpu.memory_space<vmem>>, %arg15: memref<3x16x32xbf16, #tpu.memory_space<vmem>>, %arg16: memref<3x1x32xf32, #tpu.memory_space<vmem>>, %arg17: memref<16x8xbf16, #tpu.memory_space<vmem>>, %arg18: memref<1x8xf32, #tpu.memory_space<vmem>>, %arg19: memref<16x8xbf16, #tpu.memory_space<vmem>>, %arg20: memref<1x8xf32, #tpu.memory_space<vmem>>, %arg21: memref<8x16xbf16, #tpu.memory_space<vmem>>, %arg22: memref<8x16xbf16, #tpu.memory_space<vmem>>, %arg23: memref<1x16xf32, #tpu.memory_space<vmem>>, %arg24: memref<1x16x16xf32, #tpu.memory_space<vmem>>) attributes {dimension_semantics = [#tpu.dimension_semantics<parallel>, #tpu.dimension_semantics<parallel>], iteration_bounds = array<i64: 2, 3>, scalar_prefetch = 0 : i64, scratch_operands = 0 : i64, tpu.core_type = #tpu.core_type<tc>, window_params = [{transform_indices = @transform_0, window_bounds = array<i64: 1, 8, 16>}, {transform_indices = @transform_1, window_bounds = array<i64: 1, 16, 16>}, {transform_indices = @transform_2, window_bounds = array<i64: 1, 8, 16>}, {transform_indices = @transform_3, window_bounds = array<i64: 1, 8, 8>}, {transform_indices = @transform_4, window_bounds = array<i64: 1, 16, 8>}, {transform_indices = @transform_5, window_bounds = array<i64: 1, 8, 8>}, {pipeline_mode = #tpu.pipeline_mode<synchronous>, transform_indices = @transform_6, window_bounds = array<i64: 16, 16>}, {pipeline_mode = #tpu.pipeline_mode<synchronous>, transform_indices = @transform_7, window_bounds = array<i64: 1, 16>}, {pipeline_mode = #tpu.pipeline_mode<synchronous>, transform_indices = @transform_8, window_bounds = array<i64: 3, 16, 32>}, {pipeline_mode = #tpu.pipeline_mode<synchronous>, transform_indices = @transform_9, window_bounds = array<i64: 3, 16, 32>}, {pipeline_mode = #tpu.pipeline_mode<synchronous>, transform_indices = @transform_10, window_bounds = array<i64: 3, 16, 32>}, {pipeline_mode = #tpu.pipeline_mode<synchronous>, transform_indices = @transform_11, window_bounds = array<i64: 3, 8, 32>}, {pipeline_mode = #tpu.pipeline_mode<synchronous>, transform_indices = @transform_12, window_bounds = array<i64: 3, 1, 32>}, {pipeline_mode = #tpu.pipeline_mode<synchronous>, transform_indices = @transform_13, window_bounds = array<i64: 3, 16, 32>}, {pipeline_mode = #tpu.pipeline_mode<synchronous>, transform_indices = @transform_14, window_bounds = array<i64: 3, 1, 32>}, {pipeline_mode = #tpu.pipeline_mode<synchronous>, transform_indices = @transform_15, window_bounds = array<i64: 16, 8>}, {pipeline_mode = #tpu.pipeline_mode<synchronous>, transform_indices = @transform_16, window_bounds = array<i64: 1, 8>}, {pipeline_mode = #tpu.pipeline_mode<synchronous>, transform_indices = @transform_17, window_bounds = array<i64: 16, 8>}, {pipeline_mode = #tpu.pipeline_mode<synchronous>, transform_indices = @transform_18, window_bounds = array<i64: 1, 8>}, {pipeline_mode = #tpu.pipeline_mode<synchronous>, transform_indices = @transform_19, window_bounds = array<i64: 8, 16>}, {pipeline_mode = #tpu.pipeline_mode<synchronous>, transform_indices = @transform_20, window_bounds = array<i64: 8, 16>}, {pipeline_mode = #tpu.pipeline_mode<synchronous>, transform_indices = @transform_21, window_bounds = array<i64: 1, 16>}, {transform_indices = @transform_22, window_bounds = array<i64: 1, 16, 16>}]} {
    %c16_i32 = arith.constant 16 : i32
    %0 = arith.muli %arg1, %c16_i32 : i32
    %c8_i32 = arith.constant 8 : i32
    %1 = arith.subi %0, %c8_i32 : i32
    %c0 = arith.constant 0 : index
    %c0_0 = arith.constant 0 : index
    %c0_1 = arith.constant 0 : index
    %2 = vector.load %arg2[%c0, %c0_0, %c0_1] : memref<1x8x16xf32, #tpu.memory_space<vmem>>, vector<1x8x16xf32>
    %3 = vector.shape_cast %2 : vector<1x8x16xf32> to vector<8x16xf32>
    %c0_2 = arith.constant 0 : index
    %c0_3 = arith.constant 0 : index
    %c0_4 = arith.constant 0 : index
    %4 = vector.load %arg3[%c0_2, %c0_3, %c0_4] : memref<1x16x16xf32, #tpu.memory_space<vmem>>, vector<1x16x16xf32>
    %5 = vector.shape_cast %4 : vector<1x16x16xf32> to vector<16x16xf32>
    %c0_5 = arith.constant 0 : index
    %c0_6 = arith.constant 0 : index
    %c0_7 = arith.constant 0 : index
    %6 = vector.load %arg4[%c0_5, %c0_6, %c0_7] : memref<1x8x16xf32, #tpu.memory_space<vmem>>, vector<1x8x16xf32>
    %7 = vector.shape_cast %6 : vector<1x8x16xf32> to vector<8x16xf32>
    %8 = tpu.concatenate %3, %5, %7 in 0 : vector<8x16xf32>, vector<16x16xf32>, vector<8x16xf32> -> vector<32x16xf32>
    %c0_8 = arith.constant 0 : index
    %c0_9 = arith.constant 0 : index
    %c0_10 = arith.constant 0 : index
    %9 = vector.load %arg5[%c0_8, %c0_9, %c0_10] : memref<1x8x8xf32, #tpu.memory_space<vmem>>, vector<1x8x8xf32>
    %10 = vector.shape_cast %9 : vector<1x8x8xf32> to vector<8x8xf32>
    %c0_11 = arith.constant 0 : index
    %c0_12 = arith.constant 0 : index
    %c0_13 = arith.constant 0 : index
    %11 = vector.load %arg6[%c0_11, %c0_12, %c0_13] : memref<1x16x8xf32, #tpu.memory_space<vmem>>, vector<1x16x8xf32>
    %12 = vector.shape_cast %11 : vector<1x16x8xf32> to vector<16x8xf32>
    %c0_14 = arith.constant 0 : index
    %c0_15 = arith.constant 0 : index
    %c0_16 = arith.constant 0 : index
    %13 = vector.load %arg7[%c0_14, %c0_15, %c0_16] : memref<1x8x8xf32, #tpu.memory_space<vmem>>, vector<1x8x8xf32>
    %14 = vector.shape_cast %13 : vector<1x8x8xf32> to vector<8x8xf32>
    %15 = tpu.concatenate %10, %12, %14 in 0 : vector<8x8xf32>, vector<16x8xf32>, vector<8x8xf32> -> vector<32x8xf32>
    %16 = arith.truncf %15 : vector<32x8xf32> to vector<32x8xbf16>
    %17 = tpu.iota {dimensions = array<i32: 0>} : vector<32x1xi32>
    %18 = vector.broadcast %1 : i32 to vector<32x1xi32>
    %19 = arith.addi %17, %18 : vector<32x1xi32>
    %20 = arith.truncf %8 : vector<32x16xf32> to vector<32x16xbf16>
    %c0_17 = arith.constant 0 : index
    %c0_18 = arith.constant 0 : index
    %21 = vector.load %arg8[%c0_17, %c0_18] : memref<16x16xbf16, #tpu.memory_space<vmem>>, vector<16x16xbf16>
    %cst = arith.constant dense<0.000000e+00> : vector<32x16xf32>
    %22 = tpu.matmul %20, %21, %cst {dimension_numbers = #tpu.dot_dimension_numbers<[1], [0], [0], [1], [0, 0, 1, 1], [], []>} : vector<32x16xbf16>, vector<16x16xbf16>, vector<32x16xf32> -> vector<32x16xf32>
    %c0_19 = arith.constant 0 : index
    %c0_20 = arith.constant 0 : index
    %23 = vector.load %arg9[%c0_19, %c0_20] : memref<1x16xf32, #tpu.memory_space<vmem>>, vector<1x16xf32>
    %24 = vector.broadcast %23 : vector<1x16xf32> to vector<32x16xf32>
    %25 = arith.addf %22, %24 : vector<32x16xf32>
    %cst_21 = arith.constant 0.000000e+00 : f32
    %26 = vector.broadcast %cst_21 : f32 to vector<32x16xf32>
    %c1_i32 = arith.constant 1 : i32
    %27 = vector.broadcast %c1_i32 : i32 to vector<32x1xi32>
    %28 = arith.cmpi sge, %19, %27 : vector<32x1xi32>
    %29 = vector.extract_strided_slice %25 {offsets = [31, 0], sizes = [1, 16], strides = [1, 1]} : vector<32x16xf32> to vector<1x16xf32>
    %30 = vector.extract_strided_slice %25 {offsets = [0, 0], sizes = [31, 16], strides = [1, 1]} : vector<32x16xf32> to vector<31x16xf32>
    %31 = tpu.concatenate %29, %30 in 0 : vector<1x16xf32>, vector<31x16xf32> -> vector<32x16xf32>
    %cst_22 = arith.constant 0.000000e+00 : f32
    %32 = vector.shape_cast %28 : vector<32x1xi1> to vector<32x1xi1>
    %33 = vector.broadcast %32 : vector<32x1xi1> to vector<32x16xi1>
    %34 = vector.broadcast %cst_22 : f32 to vector<32x16xf32>
    %35 = arith.select %33, %31, %34 : vector<32x16xi1>, vector<32x16xf32>
    %36 = arith.truncf %35 : vector<32x16xf32> to vector<32x16xbf16>
    %c39_i32 = arith.constant 39 : i32
    %37 = vector.broadcast %c39_i32 : i32 to vector<32x1xi32>
    %38 = arith.cmpi slt, %19, %37 : vector<32x1xi32>
    %39 = vector.extract_strided_slice %25 {offsets = [1, 0], sizes = [31, 16], strides = [1, 1]} : vector<32x16xf32> to vector<31x16xf32>
    %40 = vector.extract_strided_slice %25 {offsets = [0, 0], sizes = [1, 16], strides = [1, 1]} : vector<32x16xf32> to vector<1x16xf32>
    %41 = tpu.concatenate %39, %40 in 0 : vector<31x16xf32>, vector<1x16xf32> -> vector<32x16xf32>
    %cst_23 = arith.constant 0.000000e+00 : f32
    %42 = vector.shape_cast %38 : vector<32x1xi1> to vector<32x1xi1>
    %43 = vector.broadcast %42 : vector<32x1xi1> to vector<32x16xi1>
    %44 = vector.broadcast %cst_23 : f32 to vector<32x16xf32>
    %45 = arith.select %43, %41, %44 : vector<32x16xi1>, vector<32x16xf32>
    %46 = arith.truncf %45 : vector<32x16xf32> to vector<32x16xbf16>
    %c0_24 = arith.constant 0 : index
    %c0_25 = arith.constant 0 : index
    %c0_26 = arith.constant 0 : index
    %47 = vector.load %arg10[%c0_24, %c0_25, %c0_26] : memref<3x16x32xbf16, #tpu.memory_space<vmem>>, vector<1x16x32xbf16>
    %48 = vector.shape_cast %47 : vector<1x16x32xbf16> to vector<16x32xbf16>
    %cst_27 = arith.constant dense<0.000000e+00> : vector<32x32xf32>
    %49 = tpu.matmul %36, %48, %cst_27 {dimension_numbers = #tpu.dot_dimension_numbers<[1], [0], [0], [1], [0, 0, 1, 1], [], []>} : vector<32x16xbf16>, vector<16x32xbf16>, vector<32x32xf32> -> vector<32x32xf32>
    %50 = arith.truncf %25 : vector<32x16xf32> to vector<32x16xbf16>
    %c0_28 = arith.constant 0 : index
    %c0_29 = arith.constant 0 : index
    %c0_30 = arith.constant 0 : index
    %51 = vector.load %arg11[%c0_28, %c0_29, %c0_30] : memref<3x16x32xbf16, #tpu.memory_space<vmem>>, vector<1x16x32xbf16>
    %52 = vector.shape_cast %51 : vector<1x16x32xbf16> to vector<16x32xbf16>
    %cst_31 = arith.constant dense<0.000000e+00> : vector<32x32xf32>
    %53 = tpu.matmul %50, %52, %cst_31 {dimension_numbers = #tpu.dot_dimension_numbers<[1], [0], [0], [1], [0, 0, 1, 1], [], []>} : vector<32x16xbf16>, vector<16x32xbf16>, vector<32x32xf32> -> vector<32x32xf32>
    %54 = arith.addf %49, %53 : vector<32x32xf32>
    %c0_32 = arith.constant 0 : index
    %c0_33 = arith.constant 0 : index
    %c0_34 = arith.constant 0 : index
    %55 = vector.load %arg12[%c0_32, %c0_33, %c0_34] : memref<3x16x32xbf16, #tpu.memory_space<vmem>>, vector<1x16x32xbf16>
    %56 = vector.shape_cast %55 : vector<1x16x32xbf16> to vector<16x32xbf16>
    %cst_35 = arith.constant dense<0.000000e+00> : vector<32x32xf32>
    %57 = tpu.matmul %46, %56, %cst_35 {dimension_numbers = #tpu.dot_dimension_numbers<[1], [0], [0], [1], [0, 0, 1, 1], [], []>} : vector<32x16xbf16>, vector<16x32xbf16>, vector<32x32xf32> -> vector<32x32xf32>
    %58 = arith.addf %54, %57 : vector<32x32xf32>
    %c0_36 = arith.constant 0 : index
    %c0_37 = arith.constant 0 : index
    %c0_38 = arith.constant 0 : index
    %59 = vector.load %arg13[%c0_36, %c0_37, %c0_38] : memref<3x8x32xbf16, #tpu.memory_space<vmem>>, vector<1x8x32xbf16>
    %60 = vector.shape_cast %59 : vector<1x8x32xbf16> to vector<8x32xbf16>
    %cst_39 = arith.constant dense<0.000000e+00> : vector<32x32xf32>
    %61 = tpu.matmul %16, %60, %cst_39 {dimension_numbers = #tpu.dot_dimension_numbers<[1], [0], [0], [1], [0, 0, 1, 1], [], []>} : vector<32x8xbf16>, vector<8x32xbf16>, vector<32x32xf32> -> vector<32x32xf32>
    %62 = arith.addf %58, %61 : vector<32x32xf32>
    %c0_40 = arith.constant 0 : index
    %c0_41 = arith.constant 0 : index
    %c0_42 = arith.constant 0 : index
    %63 = vector.load %arg14[%c0_40, %c0_41, %c0_42] : memref<3x1x32xf32, #tpu.memory_space<vmem>>, vector<1x1x32xf32>
    %64 = vector.shape_cast %63 : vector<1x1x32xf32> to vector<1x32xf32>
    %65 = vector.broadcast %64 : vector<1x32xf32> to vector<32x32xf32>
    %66 = arith.addf %62, %65 : vector<32x32xf32>
    %67 = vector.extract_strided_slice %66 {offsets = [0, 0], sizes = [32, 16], strides = [1, 1]} : vector<32x32xf32> to vector<32x16xf32>
    %68 = math.tanh %67 : vector<32x16xf32>
    %69 = vector.extract_strided_slice %66 {offsets = [0, 16], sizes = [32, 16], strides = [1, 1]} : vector<32x32xf32> to vector<32x16xf32>
    %70 = arith.negf %69 : vector<32x16xf32>
    %71 = math.exp %70 : vector<32x16xf32>
    %cst_43 = arith.constant 1.000000e+00 : f32
    %72 = vector.broadcast %cst_43 : f32 to vector<32x16xf32>
    %73 = arith.addf %72, %71 : vector<32x16xf32>
    %74 = arith.divf %72, %73 : vector<32x16xf32>
    %75 = arith.mulf %68, %74 : vector<32x16xf32>
    %76 = arith.truncf %75 : vector<32x16xf32> to vector<32x16xbf16>
    %c0_44 = arith.constant 0 : index
    %c0_45 = arith.constant 0 : index
    %c0_46 = arith.constant 0 : index
    %77 = vector.load %arg15[%c0_44, %c0_45, %c0_46] : memref<3x16x32xbf16, #tpu.memory_space<vmem>>, vector<1x16x32xbf16>
    %78 = vector.shape_cast %77 : vector<1x16x32xbf16> to vector<16x32xbf16>
    %cst_47 = arith.constant dense<0.000000e+00> : vector<32x32xf32>
    %79 = tpu.matmul %76, %78, %cst_47 {dimension_numbers = #tpu.dot_dimension_numbers<[1], [0], [0], [1], [0, 0, 1, 1], [], []>} : vector<32x16xbf16>, vector<16x32xbf16>, vector<32x32xf32> -> vector<32x32xf32>
    %c0_48 = arith.constant 0 : index
    %c0_49 = arith.constant 0 : index
    %c0_50 = arith.constant 0 : index
    %80 = vector.load %arg16[%c0_48, %c0_49, %c0_50] : memref<3x1x32xf32, #tpu.memory_space<vmem>>, vector<1x1x32xf32>
    %81 = vector.shape_cast %80 : vector<1x1x32xf32> to vector<1x32xf32>
    %82 = vector.broadcast %81 : vector<1x32xf32> to vector<32x32xf32>
    %83 = arith.addf %79, %82 : vector<32x32xf32>
    %84 = vector.extract_strided_slice %83 {offsets = [0, 0], sizes = [32, 16], strides = [1, 1]} : vector<32x32xf32> to vector<32x16xf32>
    %85 = arith.addf %25, %84 : vector<32x16xf32>
    %86 = vector.extract_strided_slice %83 {offsets = [0, 16], sizes = [32, 16], strides = [1, 1]} : vector<32x32xf32> to vector<32x16xf32>
    %87 = arith.addf %26, %86 : vector<32x16xf32>
    %c2_i32 = arith.constant 2 : i32
    %88 = vector.broadcast %c2_i32 : i32 to vector<32x1xi32>
    %89 = arith.cmpi sge, %19, %88 : vector<32x1xi32>
    %90 = vector.extract_strided_slice %85 {offsets = [30, 0], sizes = [2, 16], strides = [1, 1]} : vector<32x16xf32> to vector<2x16xf32>
    %91 = vector.extract_strided_slice %85 {offsets = [0, 0], sizes = [30, 16], strides = [1, 1]} : vector<32x16xf32> to vector<30x16xf32>
    %92 = tpu.concatenate %90, %91 in 0 : vector<2x16xf32>, vector<30x16xf32> -> vector<32x16xf32>
    %cst_51 = arith.constant 0.000000e+00 : f32
    %93 = vector.shape_cast %89 : vector<32x1xi1> to vector<32x1xi1>
    %94 = vector.broadcast %93 : vector<32x1xi1> to vector<32x16xi1>
    %95 = vector.broadcast %cst_51 : f32 to vector<32x16xf32>
    %96 = arith.select %94, %92, %95 : vector<32x16xi1>, vector<32x16xf32>
    %97 = arith.truncf %96 : vector<32x16xf32> to vector<32x16xbf16>
    %c38_i32 = arith.constant 38 : i32
    %98 = vector.broadcast %c38_i32 : i32 to vector<32x1xi32>
    %99 = arith.cmpi slt, %19, %98 : vector<32x1xi32>
    %100 = vector.extract_strided_slice %85 {offsets = [2, 0], sizes = [30, 16], strides = [1, 1]} : vector<32x16xf32> to vector<30x16xf32>
    %101 = vector.extract_strided_slice %85 {offsets = [0, 0], sizes = [2, 16], strides = [1, 1]} : vector<32x16xf32> to vector<2x16xf32>
    %102 = tpu.concatenate %100, %101 in 0 : vector<30x16xf32>, vector<2x16xf32> -> vector<32x16xf32>
    %cst_52 = arith.constant 0.000000e+00 : f32
    %103 = vector.shape_cast %99 : vector<32x1xi1> to vector<32x1xi1>
    %104 = vector.broadcast %103 : vector<32x1xi1> to vector<32x16xi1>
    %105 = vector.broadcast %cst_52 : f32 to vector<32x16xf32>
    %106 = arith.select %104, %102, %105 : vector<32x16xi1>, vector<32x16xf32>
    %107 = arith.truncf %106 : vector<32x16xf32> to vector<32x16xbf16>
    %c1 = arith.constant 1 : index
    %c0_53 = arith.constant 0 : index
    %c0_54 = arith.constant 0 : index
    %108 = vector.load %arg10[%c1, %c0_53, %c0_54] : memref<3x16x32xbf16, #tpu.memory_space<vmem>>, vector<1x16x32xbf16>
    %109 = vector.shape_cast %108 : vector<1x16x32xbf16> to vector<16x32xbf16>
    %cst_55 = arith.constant dense<0.000000e+00> : vector<32x32xf32>
    %110 = tpu.matmul %97, %109, %cst_55 {dimension_numbers = #tpu.dot_dimension_numbers<[1], [0], [0], [1], [0, 0, 1, 1], [], []>} : vector<32x16xbf16>, vector<16x32xbf16>, vector<32x32xf32> -> vector<32x32xf32>
    %111 = arith.truncf %85 : vector<32x16xf32> to vector<32x16xbf16>
    %c1_56 = arith.constant 1 : index
    %c0_57 = arith.constant 0 : index
    %c0_58 = arith.constant 0 : index
    %112 = vector.load %arg11[%c1_56, %c0_57, %c0_58] : memref<3x16x32xbf16, #tpu.memory_space<vmem>>, vector<1x16x32xbf16>
    %113 = vector.shape_cast %112 : vector<1x16x32xbf16> to vector<16x32xbf16>
    %cst_59 = arith.constant dense<0.000000e+00> : vector<32x32xf32>
    %114 = tpu.matmul %111, %113, %cst_59 {dimension_numbers = #tpu.dot_dimension_numbers<[1], [0], [0], [1], [0, 0, 1, 1], [], []>} : vector<32x16xbf16>, vector<16x32xbf16>, vector<32x32xf32> -> vector<32x32xf32>
    %115 = arith.addf %110, %114 : vector<32x32xf32>
    %c1_60 = arith.constant 1 : index
    %c0_61 = arith.constant 0 : index
    %c0_62 = arith.constant 0 : index
    %116 = vector.load %arg12[%c1_60, %c0_61, %c0_62] : memref<3x16x32xbf16, #tpu.memory_space<vmem>>, vector<1x16x32xbf16>
    %117 = vector.shape_cast %116 : vector<1x16x32xbf16> to vector<16x32xbf16>
    %cst_63 = arith.constant dense<0.000000e+00> : vector<32x32xf32>
    %118 = tpu.matmul %107, %117, %cst_63 {dimension_numbers = #tpu.dot_dimension_numbers<[1], [0], [0], [1], [0, 0, 1, 1], [], []>} : vector<32x16xbf16>, vector<16x32xbf16>, vector<32x32xf32> -> vector<32x32xf32>
    %119 = arith.addf %115, %118 : vector<32x32xf32>
    %c1_64 = arith.constant 1 : index
    %c0_65 = arith.constant 0 : index
    %c0_66 = arith.constant 0 : index
    %120 = vector.load %arg13[%c1_64, %c0_65, %c0_66] : memref<3x8x32xbf16, #tpu.memory_space<vmem>>, vector<1x8x32xbf16>
    %121 = vector.shape_cast %120 : vector<1x8x32xbf16> to vector<8x32xbf16>
    %cst_67 = arith.constant dense<0.000000e+00> : vector<32x32xf32>
    %122 = tpu.matmul %16, %121, %cst_67 {dimension_numbers = #tpu.dot_dimension_numbers<[1], [0], [0], [1], [0, 0, 1, 1], [], []>} : vector<32x8xbf16>, vector<8x32xbf16>, vector<32x32xf32> -> vector<32x32xf32>
    %123 = arith.addf %119, %122 : vector<32x32xf32>
    %c1_68 = arith.constant 1 : index
    %c0_69 = arith.constant 0 : index
    %c0_70 = arith.constant 0 : index
    %124 = vector.load %arg14[%c1_68, %c0_69, %c0_70] : memref<3x1x32xf32, #tpu.memory_space<vmem>>, vector<1x1x32xf32>
    %125 = vector.shape_cast %124 : vector<1x1x32xf32> to vector<1x32xf32>
    %126 = vector.broadcast %125 : vector<1x32xf32> to vector<32x32xf32>
    %127 = arith.addf %123, %126 : vector<32x32xf32>
    %128 = vector.extract_strided_slice %127 {offsets = [0, 0], sizes = [32, 16], strides = [1, 1]} : vector<32x32xf32> to vector<32x16xf32>
    %129 = math.tanh %128 : vector<32x16xf32>
    %130 = vector.extract_strided_slice %127 {offsets = [0, 16], sizes = [32, 16], strides = [1, 1]} : vector<32x32xf32> to vector<32x16xf32>
    %131 = arith.negf %130 : vector<32x16xf32>
    %132 = math.exp %131 : vector<32x16xf32>
    %cst_71 = arith.constant 1.000000e+00 : f32
    %133 = vector.broadcast %cst_71 : f32 to vector<32x16xf32>
    %134 = arith.addf %133, %132 : vector<32x16xf32>
    %135 = arith.divf %133, %134 : vector<32x16xf32>
    %136 = arith.mulf %129, %135 : vector<32x16xf32>
    %137 = arith.truncf %136 : vector<32x16xf32> to vector<32x16xbf16>
    %c1_72 = arith.constant 1 : index
    %c0_73 = arith.constant 0 : index
    %c0_74 = arith.constant 0 : index
    %138 = vector.load %arg15[%c1_72, %c0_73, %c0_74] : memref<3x16x32xbf16, #tpu.memory_space<vmem>>, vector<1x16x32xbf16>
    %139 = vector.shape_cast %138 : vector<1x16x32xbf16> to vector<16x32xbf16>
    %cst_75 = arith.constant dense<0.000000e+00> : vector<32x32xf32>
    %140 = tpu.matmul %137, %139, %cst_75 {dimension_numbers = #tpu.dot_dimension_numbers<[1], [0], [0], [1], [0, 0, 1, 1], [], []>} : vector<32x16xbf16>, vector<16x32xbf16>, vector<32x32xf32> -> vector<32x32xf32>
    %c1_76 = arith.constant 1 : index
    %c0_77 = arith.constant 0 : index
    %c0_78 = arith.constant 0 : index
    %141 = vector.load %arg16[%c1_76, %c0_77, %c0_78] : memref<3x1x32xf32, #tpu.memory_space<vmem>>, vector<1x1x32xf32>
    %142 = vector.shape_cast %141 : vector<1x1x32xf32> to vector<1x32xf32>
    %143 = vector.broadcast %142 : vector<1x32xf32> to vector<32x32xf32>
    %144 = arith.addf %140, %143 : vector<32x32xf32>
    %145 = vector.extract_strided_slice %144 {offsets = [0, 0], sizes = [32, 16], strides = [1, 1]} : vector<32x32xf32> to vector<32x16xf32>
    %146 = arith.addf %85, %145 : vector<32x16xf32>
    %147 = vector.extract_strided_slice %144 {offsets = [0, 16], sizes = [32, 16], strides = [1, 1]} : vector<32x32xf32> to vector<32x16xf32>
    %148 = arith.addf %87, %147 : vector<32x16xf32>
    %c4_i32 = arith.constant 4 : i32
    %149 = vector.broadcast %c4_i32 : i32 to vector<32x1xi32>
    %150 = arith.cmpi sge, %19, %149 : vector<32x1xi32>
    %151 = vector.extract_strided_slice %146 {offsets = [28, 0], sizes = [4, 16], strides = [1, 1]} : vector<32x16xf32> to vector<4x16xf32>
    %152 = vector.extract_strided_slice %146 {offsets = [0, 0], sizes = [28, 16], strides = [1, 1]} : vector<32x16xf32> to vector<28x16xf32>
    %153 = tpu.concatenate %151, %152 in 0 : vector<4x16xf32>, vector<28x16xf32> -> vector<32x16xf32>
    %cst_79 = arith.constant 0.000000e+00 : f32
    %154 = vector.shape_cast %150 : vector<32x1xi1> to vector<32x1xi1>
    %155 = vector.broadcast %154 : vector<32x1xi1> to vector<32x16xi1>
    %156 = vector.broadcast %cst_79 : f32 to vector<32x16xf32>
    %157 = arith.select %155, %153, %156 : vector<32x16xi1>, vector<32x16xf32>
    %158 = arith.truncf %157 : vector<32x16xf32> to vector<32x16xbf16>
    %c36_i32 = arith.constant 36 : i32
    %159 = vector.broadcast %c36_i32 : i32 to vector<32x1xi32>
    %160 = arith.cmpi slt, %19, %159 : vector<32x1xi32>
    %161 = vector.extract_strided_slice %146 {offsets = [4, 0], sizes = [28, 16], strides = [1, 1]} : vector<32x16xf32> to vector<28x16xf32>
    %162 = vector.extract_strided_slice %146 {offsets = [0, 0], sizes = [4, 16], strides = [1, 1]} : vector<32x16xf32> to vector<4x16xf32>
    %163 = tpu.concatenate %161, %162 in 0 : vector<28x16xf32>, vector<4x16xf32> -> vector<32x16xf32>
    %cst_80 = arith.constant 0.000000e+00 : f32
    %164 = vector.shape_cast %160 : vector<32x1xi1> to vector<32x1xi1>
    %165 = vector.broadcast %164 : vector<32x1xi1> to vector<32x16xi1>
    %166 = vector.broadcast %cst_80 : f32 to vector<32x16xf32>
    %167 = arith.select %165, %163, %166 : vector<32x16xi1>, vector<32x16xf32>
    %168 = arith.truncf %167 : vector<32x16xf32> to vector<32x16xbf16>
    %c2 = arith.constant 2 : index
    %c0_81 = arith.constant 0 : index
    %c0_82 = arith.constant 0 : index
    %169 = vector.load %arg10[%c2, %c0_81, %c0_82] : memref<3x16x32xbf16, #tpu.memory_space<vmem>>, vector<1x16x32xbf16>
    %170 = vector.shape_cast %169 : vector<1x16x32xbf16> to vector<16x32xbf16>
    %cst_83 = arith.constant dense<0.000000e+00> : vector<32x32xf32>
    %171 = tpu.matmul %158, %170, %cst_83 {dimension_numbers = #tpu.dot_dimension_numbers<[1], [0], [0], [1], [0, 0, 1, 1], [], []>} : vector<32x16xbf16>, vector<16x32xbf16>, vector<32x32xf32> -> vector<32x32xf32>
    %172 = arith.truncf %146 : vector<32x16xf32> to vector<32x16xbf16>
    %c2_84 = arith.constant 2 : index
    %c0_85 = arith.constant 0 : index
    %c0_86 = arith.constant 0 : index
    %173 = vector.load %arg11[%c2_84, %c0_85, %c0_86] : memref<3x16x32xbf16, #tpu.memory_space<vmem>>, vector<1x16x32xbf16>
    %174 = vector.shape_cast %173 : vector<1x16x32xbf16> to vector<16x32xbf16>
    %cst_87 = arith.constant dense<0.000000e+00> : vector<32x32xf32>
    %175 = tpu.matmul %172, %174, %cst_87 {dimension_numbers = #tpu.dot_dimension_numbers<[1], [0], [0], [1], [0, 0, 1, 1], [], []>} : vector<32x16xbf16>, vector<16x32xbf16>, vector<32x32xf32> -> vector<32x32xf32>
    %176 = arith.addf %171, %175 : vector<32x32xf32>
    %c2_88 = arith.constant 2 : index
    %c0_89 = arith.constant 0 : index
    %c0_90 = arith.constant 0 : index
    %177 = vector.load %arg12[%c2_88, %c0_89, %c0_90] : memref<3x16x32xbf16, #tpu.memory_space<vmem>>, vector<1x16x32xbf16>
    %178 = vector.shape_cast %177 : vector<1x16x32xbf16> to vector<16x32xbf16>
    %cst_91 = arith.constant dense<0.000000e+00> : vector<32x32xf32>
    %179 = tpu.matmul %168, %178, %cst_91 {dimension_numbers = #tpu.dot_dimension_numbers<[1], [0], [0], [1], [0, 0, 1, 1], [], []>} : vector<32x16xbf16>, vector<16x32xbf16>, vector<32x32xf32> -> vector<32x32xf32>
    %180 = arith.addf %176, %179 : vector<32x32xf32>
    %c2_92 = arith.constant 2 : index
    %c0_93 = arith.constant 0 : index
    %c0_94 = arith.constant 0 : index
    %181 = vector.load %arg13[%c2_92, %c0_93, %c0_94] : memref<3x8x32xbf16, #tpu.memory_space<vmem>>, vector<1x8x32xbf16>
    %182 = vector.shape_cast %181 : vector<1x8x32xbf16> to vector<8x32xbf16>
    %cst_95 = arith.constant dense<0.000000e+00> : vector<32x32xf32>
    %183 = tpu.matmul %16, %182, %cst_95 {dimension_numbers = #tpu.dot_dimension_numbers<[1], [0], [0], [1], [0, 0, 1, 1], [], []>} : vector<32x8xbf16>, vector<8x32xbf16>, vector<32x32xf32> -> vector<32x32xf32>
    %184 = arith.addf %180, %183 : vector<32x32xf32>
    %c2_96 = arith.constant 2 : index
    %c0_97 = arith.constant 0 : index
    %c0_98 = arith.constant 0 : index
    %185 = vector.load %arg14[%c2_96, %c0_97, %c0_98] : memref<3x1x32xf32, #tpu.memory_space<vmem>>, vector<1x1x32xf32>
    %186 = vector.shape_cast %185 : vector<1x1x32xf32> to vector<1x32xf32>
    %187 = vector.broadcast %186 : vector<1x32xf32> to vector<32x32xf32>
    %188 = arith.addf %184, %187 : vector<32x32xf32>
    %189 = vector.extract_strided_slice %188 {offsets = [0, 0], sizes = [32, 16], strides = [1, 1]} : vector<32x32xf32> to vector<32x16xf32>
    %190 = math.tanh %189 : vector<32x16xf32>
    %191 = vector.extract_strided_slice %188 {offsets = [0, 16], sizes = [32, 16], strides = [1, 1]} : vector<32x32xf32> to vector<32x16xf32>
    %192 = arith.negf %191 : vector<32x16xf32>
    %193 = math.exp %192 : vector<32x16xf32>
    %cst_99 = arith.constant 1.000000e+00 : f32
    %194 = vector.broadcast %cst_99 : f32 to vector<32x16xf32>
    %195 = arith.addf %194, %193 : vector<32x16xf32>
    %196 = arith.divf %194, %195 : vector<32x16xf32>
    %197 = arith.mulf %190, %196 : vector<32x16xf32>
    %198 = arith.truncf %197 : vector<32x16xf32> to vector<32x16xbf16>
    %c2_100 = arith.constant 2 : index
    %c0_101 = arith.constant 0 : index
    %c0_102 = arith.constant 0 : index
    %199 = vector.load %arg15[%c2_100, %c0_101, %c0_102] : memref<3x16x32xbf16, #tpu.memory_space<vmem>>, vector<1x16x32xbf16>
    %200 = vector.shape_cast %199 : vector<1x16x32xbf16> to vector<16x32xbf16>
    %cst_103 = arith.constant dense<0.000000e+00> : vector<32x32xf32>
    %201 = tpu.matmul %198, %200, %cst_103 {dimension_numbers = #tpu.dot_dimension_numbers<[1], [0], [0], [1], [0, 0, 1, 1], [], []>} : vector<32x16xbf16>, vector<16x32xbf16>, vector<32x32xf32> -> vector<32x32xf32>
    %c2_104 = arith.constant 2 : index
    %c0_105 = arith.constant 0 : index
    %c0_106 = arith.constant 0 : index
    %202 = vector.load %arg16[%c2_104, %c0_105, %c0_106] : memref<3x1x32xf32, #tpu.memory_space<vmem>>, vector<1x1x32xf32>
    %203 = vector.shape_cast %202 : vector<1x1x32xf32> to vector<1x32xf32>
    %204 = vector.broadcast %203 : vector<1x32xf32> to vector<32x32xf32>
    %205 = arith.addf %201, %204 : vector<32x32xf32>
    %206 = vector.extract_strided_slice %205 {offsets = [0, 16], sizes = [32, 16], strides = [1, 1]} : vector<32x32xf32> to vector<32x16xf32>
    %207 = arith.addf %148, %206 : vector<32x16xf32>
    %208 = vector.extract_strided_slice %207 {offsets = [8, 0], sizes = [16, 16], strides = [1, 1]} : vector<32x16xf32> to vector<16x16xf32>
    %209 = arith.truncf %208 : vector<16x16xf32> to vector<16x16xbf16>
    %c0_107 = arith.constant 0 : index
    %c0_108 = arith.constant 0 : index
    %210 = vector.load %arg17[%c0_107, %c0_108] : memref<16x8xbf16, #tpu.memory_space<vmem>>, vector<16x8xbf16>
    %cst_109 = arith.constant dense<0.000000e+00> : vector<16x8xf32>
    %211 = tpu.matmul %209, %210, %cst_109 {dimension_numbers = #tpu.dot_dimension_numbers<[1], [0], [0], [1], [0, 0, 1, 1], [], []>} : vector<16x16xbf16>, vector<16x8xbf16>, vector<16x8xf32> -> vector<16x8xf32>
    %c0_110 = arith.constant 0 : index
    %c0_111 = arith.constant 0 : index
    %212 = vector.load %arg18[%c0_110, %c0_111] : memref<1x8xf32, #tpu.memory_space<vmem>>, vector<1x8xf32>
    %213 = vector.broadcast %212 : vector<1x8xf32> to vector<16x8xf32>
    %214 = arith.addf %211, %213 : vector<16x8xf32>
    %c0_112 = arith.constant 0 : index
    %c0_113 = arith.constant 0 : index
    %215 = vector.load %arg19[%c0_112, %c0_113] : memref<16x8xbf16, #tpu.memory_space<vmem>>, vector<16x8xbf16>
    %cst_114 = arith.constant dense<0.000000e+00> : vector<16x8xf32>
    %216 = tpu.matmul %209, %215, %cst_114 {dimension_numbers = #tpu.dot_dimension_numbers<[1], [0], [0], [1], [0, 0, 1, 1], [], []>} : vector<16x16xbf16>, vector<16x8xbf16>, vector<16x8xf32> -> vector<16x8xf32>
    %c0_115 = arith.constant 0 : index
    %c0_116 = arith.constant 0 : index
    %217 = vector.load %arg20[%c0_115, %c0_116] : memref<1x8xf32, #tpu.memory_space<vmem>>, vector<1x8xf32>
    %218 = vector.broadcast %217 : vector<1x8xf32> to vector<16x8xf32>
    %219 = arith.addf %216, %218 : vector<16x8xf32>
    %c0_117 = arith.constant 0 : index
    %c0_118 = arith.constant 0 : index
    %c0_119 = arith.constant 0 : index
    %220 = vector.load %arg3[%c0_117, %c0_118, %c0_119] : memref<1x16x16xf32, #tpu.memory_space<vmem>>, vector<1x16x16xf32>
    %221 = vector.shape_cast %220 : vector<1x16x16xf32> to vector<16x16xf32>
    %222 = vector.extract_strided_slice %221 {offsets = [0, 0], sizes = [16, 8], strides = [1, 1]} : vector<16x16xf32> to vector<16x8xf32>
    %223 = vector.extract_strided_slice %221 {offsets = [0, 8], sizes = [16, 8], strides = [1, 1]} : vector<16x16xf32> to vector<16x8xf32>
    %224 = arith.subf %223, %214 : vector<16x8xf32>
    %cst_120 = arith.constant 0.000000e+00 : f32
    %225 = vector.broadcast %cst_120 : f32 to vector<16x8xf32>
    %226 = arith.subf %225, %219 : vector<16x8xf32>
    %227 = math.exp %226 : vector<16x8xf32>
    %228 = arith.mulf %224, %227 : vector<16x8xf32>
    %229 = arith.truncf %222 : vector<16x8xf32> to vector<16x8xbf16>
    %c0_121 = arith.constant 0 : index
    %c0_122 = arith.constant 0 : index
    %230 = vector.load %arg21[%c0_121, %c0_122] : memref<8x16xbf16, #tpu.memory_space<vmem>>, vector<8x16xbf16>
    %cst_123 = arith.constant dense<0.000000e+00> : vector<16x16xf32>
    %231 = tpu.matmul %229, %230, %cst_123 {dimension_numbers = #tpu.dot_dimension_numbers<[1], [0], [0], [1], [0, 0, 1, 1], [], []>} : vector<16x8xbf16>, vector<8x16xbf16>, vector<16x16xf32> -> vector<16x16xf32>
    %232 = arith.truncf %228 : vector<16x8xf32> to vector<16x8xbf16>
    %c0_124 = arith.constant 0 : index
    %c0_125 = arith.constant 0 : index
    %233 = vector.load %arg22[%c0_124, %c0_125] : memref<8x16xbf16, #tpu.memory_space<vmem>>, vector<8x16xbf16>
    %cst_126 = arith.constant dense<0.000000e+00> : vector<16x16xf32>
    %234 = tpu.matmul %232, %233, %cst_126 {dimension_numbers = #tpu.dot_dimension_numbers<[1], [0], [0], [1], [0, 0, 1, 1], [], []>} : vector<16x8xbf16>, vector<8x16xbf16>, vector<16x16xf32> -> vector<16x16xf32>
    %235 = arith.addf %231, %234 : vector<16x16xf32>
    %c0_127 = arith.constant 0 : index
    %c0_128 = arith.constant 0 : index
    %236 = vector.load %arg23[%c0_127, %c0_128] : memref<1x16xf32, #tpu.memory_space<vmem>>, vector<1x16xf32>
    %237 = vector.broadcast %236 : vector<1x16xf32> to vector<16x16xf32>
    %238 = arith.addf %235, %237 : vector<16x16xf32>
    %c0_129 = arith.constant 0 : index
    %c0_130 = arith.constant 0 : index
    %c0_131 = arith.constant 0 : index
    %239 = vector.load %arg24[%c0_129, %c0_130, %c0_131] : memref<1x16x16xf32, #tpu.memory_space<vmem>>, vector<1x16x16xf32>
    %240 = vector.shape_cast %239 : vector<1x16x16xf32> to vector<16x16xf32>
    %241 = vector.shape_cast %238 : vector<16x16xf32> to vector<1x16x16xf32>
    tpu.vector_store %arg24[%c0_129, %c0_130, %c0_131], %241 {strides = array<i32>} : memref<1x16x16xf32, #tpu.memory_space<vmem>>, vector<1x16x16xf32>,
    return
  }
  func.func @transform_0(%arg0: i32, %arg1: i32) -> (i32, i32, i32) {
    %c2_i32 = arith.constant 2 : i32
    %0 = arith.muli %arg1, %c2_i32 : i32
    %c1_i32 = arith.constant 1 : i32
    %1 = arith.subi %0, %c1_i32 : i32
    %c0_i32 = arith.constant 0 : i32
    %2 = arith.maxsi %1, %c0_i32 : i32
    %c0_i32_0 = arith.constant 0 : i32
    %c0_i32_1 = arith.constant 0 : i32
    return %arg0, %2, %c0_i32_0 : i32, i32, i32
  }
  func.func @transform_1(%arg0: i32, %arg1: i32) -> (i32, i32, i32) {
    %c0_i32 = arith.constant 0 : i32
    %c0_i32_0 = arith.constant 0 : i32
    return %arg0, %arg1, %c0_i32 : i32, i32, i32
  }
  func.func @transform_2(%arg0: i32, %arg1: i32) -> (i32, i32, i32) {
    %c1_i32 = arith.constant 1 : i32
    %0 = arith.addi %arg1, %c1_i32 : i32
    %c2_i32 = arith.constant 2 : i32
    %1 = arith.muli %0, %c2_i32 : i32
    %c5_i32 = arith.constant 5 : i32
    %2 = arith.minsi %1, %c5_i32 : i32
    %c0_i32 = arith.constant 0 : i32
    %c0_i32_0 = arith.constant 0 : i32
    return %arg0, %2, %c0_i32 : i32, i32, i32
  }
  func.func @transform_3(%arg0: i32, %arg1: i32) -> (i32, i32, i32) {
    %c2_i32 = arith.constant 2 : i32
    %0 = arith.muli %arg1, %c2_i32 : i32
    %c1_i32 = arith.constant 1 : i32
    %1 = arith.subi %0, %c1_i32 : i32
    %c0_i32 = arith.constant 0 : i32
    %2 = arith.maxsi %1, %c0_i32 : i32
    %c0_i32_0 = arith.constant 0 : i32
    %c0_i32_1 = arith.constant 0 : i32
    return %arg0, %2, %c0_i32_0 : i32, i32, i32
  }
  func.func @transform_4(%arg0: i32, %arg1: i32) -> (i32, i32, i32) {
    %c0_i32 = arith.constant 0 : i32
    %c0_i32_0 = arith.constant 0 : i32
    return %arg0, %arg1, %c0_i32 : i32, i32, i32
  }
  func.func @transform_5(%arg0: i32, %arg1: i32) -> (i32, i32, i32) {
    %c1_i32 = arith.constant 1 : i32
    %0 = arith.addi %arg1, %c1_i32 : i32
    %c2_i32 = arith.constant 2 : i32
    %1 = arith.muli %0, %c2_i32 : i32
    %c5_i32 = arith.constant 5 : i32
    %2 = arith.minsi %1, %c5_i32 : i32
    %c0_i32 = arith.constant 0 : i32
    %c0_i32_0 = arith.constant 0 : i32
    return %arg0, %2, %c0_i32 : i32, i32, i32
  }
  func.func @transform_6(%arg0: i32, %arg1: i32) -> (i32, i32) {
    %c0_i32 = arith.constant 0 : i32
    %c0_i32_0 = arith.constant 0 : i32
    %c0_i32_1 = arith.constant 0 : i32
    return %c0_i32, %c0_i32_0 : i32, i32
  }
  func.func @transform_7(%arg0: i32, %arg1: i32) -> (i32, i32) {
    %c0_i32 = arith.constant 0 : i32
    %c0_i32_0 = arith.constant 0 : i32
    %c0_i32_1 = arith.constant 0 : i32
    return %c0_i32, %c0_i32_0 : i32, i32
  }
  func.func @transform_8(%arg0: i32, %arg1: i32) -> (i32, i32, i32) {
    %c0_i32 = arith.constant 0 : i32
    %c0_i32_0 = arith.constant 0 : i32
    %c0_i32_1 = arith.constant 0 : i32
    %c0_i32_2 = arith.constant 0 : i32
    return %c0_i32, %c0_i32_0, %c0_i32_1 : i32, i32, i32
  }
  func.func @transform_9(%arg0: i32, %arg1: i32) -> (i32, i32, i32) {
    %c0_i32 = arith.constant 0 : i32
    %c0_i32_0 = arith.constant 0 : i32
    %c0_i32_1 = arith.constant 0 : i32
    %c0_i32_2 = arith.constant 0 : i32
    return %c0_i32, %c0_i32_0, %c0_i32_1 : i32, i32, i32
  }
  func.func @transform_10(%arg0: i32, %arg1: i32) -> (i32, i32, i32) {
    %c0_i32 = arith.constant 0 : i32
    %c0_i32_0 = arith.constant 0 : i32
    %c0_i32_1 = arith.constant 0 : i32
    %c0_i32_2 = arith.constant 0 : i32
    return %c0_i32, %c0_i32_0, %c0_i32_1 : i32, i32, i32
  }
  func.func @transform_11(%arg0: i32, %arg1: i32) -> (i32, i32, i32) {
    %c0_i32 = arith.constant 0 : i32
    %c0_i32_0 = arith.constant 0 : i32
    %c0_i32_1 = arith.constant 0 : i32
    %c0_i32_2 = arith.constant 0 : i32
    return %c0_i32, %c0_i32_0, %c0_i32_1 : i32, i32, i32
  }
  func.func @transform_12(%arg0: i32, %arg1: i32) -> (i32, i32, i32) {
    %c0_i32 = arith.constant 0 : i32
    %c0_i32_0 = arith.constant 0 : i32
    %c0_i32_1 = arith.constant 0 : i32
    %c0_i32_2 = arith.constant 0 : i32
    return %c0_i32, %c0_i32_0, %c0_i32_1 : i32, i32, i32
  }
  func.func @transform_13(%arg0: i32, %arg1: i32) -> (i32, i32, i32) {
    %c0_i32 = arith.constant 0 : i32
    %c0_i32_0 = arith.constant 0 : i32
    %c0_i32_1 = arith.constant 0 : i32
    %c0_i32_2 = arith.constant 0 : i32
    return %c0_i32, %c0_i32_0, %c0_i32_1 : i32, i32, i32
  }
  func.func @transform_14(%arg0: i32, %arg1: i32) -> (i32, i32, i32) {
    %c0_i32 = arith.constant 0 : i32
    %c0_i32_0 = arith.constant 0 : i32
    %c0_i32_1 = arith.constant 0 : i32
    %c0_i32_2 = arith.constant 0 : i32
    return %c0_i32, %c0_i32_0, %c0_i32_1 : i32, i32, i32
  }
  func.func @transform_15(%arg0: i32, %arg1: i32) -> (i32, i32) {
    %c0_i32 = arith.constant 0 : i32
    %c0_i32_0 = arith.constant 0 : i32
    %c0_i32_1 = arith.constant 0 : i32
    return %c0_i32, %c0_i32_0 : i32, i32
  }
  func.func @transform_16(%arg0: i32, %arg1: i32) -> (i32, i32) {
    %c0_i32 = arith.constant 0 : i32
    %c0_i32_0 = arith.constant 0 : i32
    %c0_i32_1 = arith.constant 0 : i32
    return %c0_i32, %c0_i32_0 : i32, i32
  }
  func.func @transform_17(%arg0: i32, %arg1: i32) -> (i32, i32) {
    %c0_i32 = arith.constant 0 : i32
    %c0_i32_0 = arith.constant 0 : i32
    %c0_i32_1 = arith.constant 0 : i32
    return %c0_i32, %c0_i32_0 : i32, i32
  }
  func.func @transform_18(%arg0: i32, %arg1: i32) -> (i32, i32) {
    %c0_i32 = arith.constant 0 : i32
    %c0_i32_0 = arith.constant 0 : i32
    %c0_i32_1 = arith.constant 0 : i32
    return %c0_i32, %c0_i32_0 : i32, i32
  }
  func.func @transform_19(%arg0: i32, %arg1: i32) -> (i32, i32) {
    %c0_i32 = arith.constant 0 : i32
    %c0_i32_0 = arith.constant 0 : i32
    %c0_i32_1 = arith.constant 0 : i32
    return %c0_i32, %c0_i32_0 : i32, i32
  }
  func.func @transform_20(%arg0: i32, %arg1: i32) -> (i32, i32) {
    %c0_i32 = arith.constant 0 : i32
    %c0_i32_0 = arith.constant 0 : i32
    %c0_i32_1 = arith.constant 0 : i32
    return %c0_i32, %c0_i32_0 : i32, i32
  }
  func.func @transform_21(%arg0: i32, %arg1: i32) -> (i32, i32) {
    %c0_i32 = arith.constant 0 : i32
    %c0_i32_0 = arith.constant 0 : i32
    %c0_i32_1 = arith.constant 0 : i32
    return %c0_i32, %c0_i32_0 : i32, i32
  }
  func.func @transform_22(%arg0: i32, %arg1: i32) -> (i32, i32, i32) {
    %c0_i32 = arith.constant 0 : i32
    %c0_i32_0 = arith.constant 0 : i32
    return %arg0, %arg1, %c0_i32 : i32, i32, i32
  }
}

</mosaic_0001>

<llo_original>
// kernel: wide_flow_student_forward.7
$region0: #{wide_flow_student_forward.7}
  #allocation0 [shape = 'u32[]', space=smem, size = 0x4, offset = 0x4, fixed_abs, tag = 'smem constant byte address 0x4 - core index']
  #allocation1 [shape = 'u32[144,128]{1,0:T(1,128)}', space=vmem, size = 0x12000, scoped, tag = 'internal scratch']
  %s0 = inlined_call_operand.vmem [shape: f32[2,48,16], index: 0, kind: input, shape index: {}]
  %s1 = inlined_call_operand.vmem [shape: bf16[16,4], index: 1, kind: input, shape index: {}]
  %s2 = inlined_call_operand.vmem [shape: f32[1,4], index: 2, kind: input, shape index: {}]
  %s3 = inlined_call_operand.vmem [shape: f32[2,48,4], index: 3, kind: output, shape index: {}]
  %s4 = sld [smem:[#allocation0]]
  $region45: #{wide_flow_student_forward.7} parent=0
    _
  %s6 = ssub.s32 1, %s4
  %s7 = scalar_select 0, %s6, %s4
  loop: start=0, step=1, limit=8
  $region2: #{wide_flow_student_forward.7} parent=0 // loop_pre_header
    _
  $region3: #{wide_flow_student_forward.7} parent=0 // loop_header
    %s9 = sphi 0, %s13
    %p10 = scmp.ge.s32.totalorder %s9, 8
    %s16 = sphi 0, %s28
    %s17 = sphi 0, %s24
    %s18 = sphi 0, %s16
    %s19 = sphi 0, %s17
    %s20 = sphi 0, %s18
    %s21 = sphi 0, %s19
    %s33 = sphi 0, %s35
    %s36 = sphi 0, %s33
    %s37 = sphi 0, %s36
    %s53 = sphi 0, %s37
    %s57 = sphi 0, %s57
    %s59 = sphi 0, %s57
    %s60 = sphi 0, %s59
    %s74 = sphi 0, %s60
    %s78 = sphi 0, %s78
    %s80 = sphi 0, %s78
    %s81 = sphi 0, %s80
    %s95 = sphi 0, %s81
    %s103 = sphi 0, %s105
    %s106 = sphi 0, %s103
    %s107 = sphi 0, %s106
    %s123 = sphi 0, %s107
  $region4: #{wide_flow_student_forward.7} parent=0 // loop_header_branch
    %12 = sbr.rel (%p10) target = $region8
  $region5: #{wide_flow_student_forward.7} parent=0 // loop_body
    %s14 = ssub.s32 %s9, 1
    %s15 = ssub.s32 %s9, 2
    %s22 = sadd.s32 1, %s17
    %p23 = scmp.ge.s32.totalorder %s22, 3
    %s24 = scalar_select %p23, 0, %s22
    %s25 = sadd.s32 1, %s16
    %s26 = scalar_select %p23, %s25, %s16
    %p27 = scmp.ge.s32.totalorder %s26, 2
    %s28 = scalar_select %p27, 0, %s26
    %s29 = ssub.s32 %s16, %s28
    %s30 = ssub.s32 %s17, %s24
    %s31 = sor.u32 %s29, %s30
    %p32 = scmp.eq.s32.totalorder %s31, 0
    %s34 = sadd.s32 %s33, 1
    %s35 = scalar_select %p32, %s33, %s34
    %p38 = pneg %p32
    %p39 = scmp.eq.s32.totalorder %s9, 5
    %p40 = por %p38, %p39
    %p41 = scmp.ne.s32.totalorder %s33, %s36
    %p42 = scmp.eq.s32.totalorder %s9, 0
    %p43 = por %p41, %p42
    %p44 = scmp.ne.s32.totalorder %s33, %s36
    %p45 = scmp.eq.s32.totalorder %s14, 5
    %p46 = por %p44, %p45
    %p47 = scmp.ne.s32.totalorder %s36, %s37
    %p48 = scmp.eq.s32.totalorder %s14, 0
    %p49 = por %p47, %p48
    %p50 = scmp.ne.s32.totalorder %s36, %s37
    %p51 = scmp.eq.s32.totalorder %s15, 5
    %p52 = por %p50, %p51
    %p54 = scmp.ne.s32.totalorder %s37, %s53
    %p55 = scmp.eq.s32.totalorder %s15, 0
    %p56 = por %p54, %p55
    %s58 = sadd.s32 %s57, 1
    %p61 = scmp.eq.s32.totalorder %s9, 5
    %p62 = scmp.ne.s32.totalorder %s57, %s59
    %p63 = scmp.eq.s32.totalorder %s9, 0
    %p64 = por %p62, %p63
    %p65 = scmp.ne.s32.totalorder %s57, %s59
    %p66 = scmp.eq.s32.totalorder %s14, 5
    %p67 = por %p65, %p66
    %p68 = scmp.ne.s32.totalorder %s59, %s60
    %p69 = scmp.eq.s32.totalorder %s14, 0
    %p70 = por %p68, %p69
    %p71 = scmp.ne.s32.totalorder %s59, %s60
    %p72 = scmp.eq.s32.totalorder %s15, 5
    %p73 = por %p71, %p72
    %p75 = scmp.ne.s32.totalorder %s60, %s74
    %p76 = scmp.eq.s32.totalorder %s15, 0
    %p77 = por %p75, %p76
    %s79 = sadd.s32 %s78, 1
    %p82 = scmp.eq.s32.totalorder %s9, 5
    %p83 = scmp.ne.s32.totalorder %s78, %s80
    %p84 = scmp.eq.s32.totalorder %s9, 0
    %p85 = por %p83, %p84
    %p86 = scmp.ne.s32.totalorder %s78, %s80
    %p87 = scmp.eq.s32.totalorder %s14, 5
    %p88 = por %p86, %p87
    %p89 = scmp.ne.s32.totalorder %s80, %s81
    %p90 = scmp.eq.s32.totalorder %s14, 0
    %p91 = por %p89, %p90
    %p92 = scmp.ne.s32.totalorder %s80, %s81
    %p93 = scmp.eq.s32.totalorder %s15, 5
    %p94 = por %p92, %p93
    %p96 = scmp.ne.s32.totalorder %s81, %s95
    %p97 = scmp.eq.s32.totalorder %s15, 0
    %p98 = por %p96, %p97
    %s99 = ssub.s32 %s16, %s28
    %s100 = ssub.s32 %s17, %s24
    %s101 = sor.u32 %s99, %s100
    %p102 = scmp.eq.s32.totalorder %s101, 0
    %s104 = sadd.s32 %s103, 1
    %s105 = scalar_select %p102, %s103, %s104
    %p108 = pneg %p102
    %p109 = scmp.eq.s32.totalorder %s9, 5
    %p110 = por %p108, %p109
    %p111 = scmp.ne.s32.totalorder %s103, %s106
    %p112 = scmp.eq.s32.totalorder %s9, 0
    %p113 = por %p111, %p112
    %p114 = scmp.ne.s32.totalorder %s103, %s106
    %p115 = scmp.eq.s32.totalorder %s14, 5
    %p116 = por %p114, %p115
    %p117 = scmp.ne.s32.totalorder %s106, %s107
    %p118 = scmp.eq.s32.totalorder %s14, 0
    %p119 = por %p117, %p118
    %p120 = scmp.ne.s32.totalorder %s106, %s107
    %p121 = scmp.eq.s32.totalorder %s15, 5
    %p122 = por %p120, %p121
    %p124 = scmp.ne.s32.totalorder %s107, %s123
    %p125 = scmp.eq.s32.totalorder %s15, 0
    %p126 = por %p124, %p125
    %p127 = scmp.le.s32.totalorder 1, %s9
    %p128 = scmp.lt.s32.totalorder %s9, 7
    %p129 = pnand %p127, %p128
    %p130 = pneg %p129
    // Predicated region
    $region9: #{wide_flow_student_forward.7} parent=5 // pred_check
      _
    $region10: #{wide_flow_student_forward.7} parent=5 // pred_check_branch
      %132 = sbr.rel (%p129) target = $region12
    $region11: #{wide_flow_student_forward.7} parent=5 // pred_region
      %s133 = ssub.s32 %s9, 1
      // Predicated region
      $region13: #{wide_flow_student_forward.7} parent=11 // pred_check
        %p134 = pneg %p70
      $region14: #{wide_flow_student_forward.7} parent=11 // pred_check_branch
        %136 = sbr.rel (%p134) target = $region16
      $region15: #{wide_flow_student_forward.7} parent=11 // pred_region
        _
      $region16: #{wide_flow_student_forward.7} parent=11 // pred_fallthru
        _
      // Predicated region
      $region17: #{wide_flow_student_forward.7} parent=11 // pred_check
        %p137 = pneg %p91
      $region18: #{wide_flow_student_forward.7} parent=11 // pred_check_branch
        %139 = sbr.rel (%p137) target = $region20
      $region19: #{wide_flow_student_forward.7} parent=11 // pred_region
        _
      $region20: #{wide_flow_student_forward.7} parent=11 // pred_fallthru
        _
    $region12: #{wide_flow_student_forward.7} parent=5 // pred_fallthru
      _
    %p140 = scmp.lt.s32.totalorder %s9, 6
    // Predicated region
    $region21: #{wide_flow_student_forward.7} parent=5 // pred_check
      %p141 = pneg %p140
    $region22: #{wide_flow_student_forward.7} parent=5 // pred_check_branch
      %143 = sbr.rel (%p141) target = $region24
    $region23: #{wide_flow_student_forward.7} parent=5 // pred_region
      // Predicated region
      $region25: #{wide_flow_student_forward.7} parent=23 // pred_check
        %p144 = pneg %p43
      $region26: #{wide_flow_student_forward.7} parent=23 // pred_check_branch
        %146 = sbr.rel (%p144) target = $region28
      $region27: #{wide_flow_student_forward.7} parent=23 // pred_region
        %s147 = smul.u32 2, %s17
        %p148 = scmp.lt.s32.totalorder %s16, 1
        %s149 = scalar_select %p148, %s16, 1
        %p150 = scmp.lt.s32.totalorder %s147, 5
        %s151 = scalar_select %p150, %s147, 5
        %s152 = smul.addr %s149, 6
        %s153 = sadd.s32 %s151, %s152
        %s154 = smul.addr %s153, 8
        %s155 = scalar_lea.vmem %s0, %s154
        %s156 = smul.u32 2, %s17
      $region28: #{wide_flow_student_forward.7} parent=23 // pred_fallthru
        _
    $region24: #{wide_flow_student_forward.7} parent=5 // pred_fallthru
      _
    %p157 = scmp.le.s32.totalorder 1, %s9
    %p158 = scmp.lt.s32.totalorder %s9, 7
    %p159 = pnand %p157, %p158
    %p160 = pneg %p159
    // Predicated region
    $region29: #{wide_flow_student_forward.7} parent=5 // pred_check
      _
    $region30: #{wide_flow_student_forward.7} parent=5 // pred_check_branch
      %162 = sbr.rel (%p159) target = $region32
    $region31: #{wide_flow_student_forward.7} parent=5 // pred_region
      %s163 = ssub.s32 %s9, 1
      %s164 = smul.u32 2, %s19
      %p165 = scmp.lt.s32.totalorder %s18, 1
      %s166 = scalar_select %p165, %s18, 1
      %p167 = scmp.lt.s32.totalorder %s164, 5
      %s168 = scalar_select %p167, %s164, 5
      %s169 = smul.addr %s166, 6
      %s170 = sadd.s32 %s168, %s169
      %s171 = smul.addr %s170, 8
      %s172 = scalar_lea.vmem %s0, %s171
      %p173 = pneg %p49
      %p174 = pneg %p46
      %p175 = pneg %p70
      %p176 = pneg %p67
      %p177 = pneg %p91
      %p178 = pneg %p88
      %p179 = pneg %p119
      %p180 = pneg %p116
      %s181 = smul.u32 2, %s19
      %p182 = scmp.lt.s32.totalorder %s18, 1
      %s183 = scalar_select %p182, %s18, 1
      %p184 = scmp.lt.s32.totalorder %s181, 5
      %s185 = scalar_select %p184, %s181, 5
      %s186 = smul.addr %s183, 6
      %s187 = sadd.s32 %s185, %s186
      %s188 = smul.addr %s187, 8
      %s189 = scalar_lea.vmem %s3, %s188
      %s190 = smul.u32 2, %s19
      %p191 = scmp.lt.s32.totalorder %s18, 1
      %s192 = scalar_select %p191, %s18, 1
      %p193 = scmp.lt.s32.totalorder %s190, 5
      %s194 = scalar_select %p193, %s190, 5
      %s195 = smul.addr %s192, 6
      %s196 = sadd.s32 %s194, %s195
      %s197 = smul.addr %s196, 8
      %s198 = scalar_lea.vmem %s0, %s197
      %s199 = smul.u32 2, %s19
      %s200 = smul.u32 2, %s19
      %p201 = scmp.lt.s32.totalorder %s18, 1
      %s202 = scalar_select %p201, %s18, 1
      %p203 = scmp.lt.s32.totalorder %s200, 5
      %s204 = scalar_select %p203, %s200, 5
      %s205 = smul.addr %s202, 6
      %s206 = sadd.s32 %s204, %s205
      %s207 = smul.addr %s206, 8
      %s208 = scalar_lea.vmem %s3, %s207
      %s209 = smul.u32 2, %s19
      %v211 = vld [vmem:[%s198] sm:$0xff]
      %v212 = vld [vmem:[%s198 + $0x8] sm:$0xff]
      %v213 = vpack.c.bf16 %v212, %v211
      %v214 = vld [vmem:[%s1] sm:$0xf]
      %v215 = vld [vmem:[%s1 + $0x4] sm:$0xf]
      %v216 = vld [vmem:[%s2] sm:$0x1]
      %v218 = vlaneseq
      %v219 = vshrl.u32 %v218, 7
      %v220 = vsub.s32 0, %v219
      %v221 = vrot.slane %v216, %v220
      %v225 = vunpack.c.l.b16 %v214
      %v226 = vunpack.c.l.b16 %v215
      %v227 = vpack.c.b16 %v226, %v225
      %vm229 = vcmask 130048
      %v231 = vsel %vm229, %v213, 0
      %233 = vmatprep.subr.bf16.mxu0 0
      %234 = vmatpush1.bf16.msra.mxu0 %v227
      %235 = vmatprep.subr.bf16.mxu0 0
      %236 = vmatpush1.bf16.msra.mxu0 0
      %237 = vmatprep.subr.bf16.mxu0 0
      %238 = vmatpush1.bf16.msra.mxu0 0
      %239 = vmatprep.subr.bf16.mxu0 0
      %240 = vmatpush1.bf16.msra.mxu0 0
      %241 = vmatprep.subr.bf16.mxu0 0
      %242 = vmatpush1.bf16.msra.mxu0 0
      %243 = vmatprep.subr.bf16.mxu0 0
      %244 = vmatpush1.bf16.msra.mxu0 0
      %245 = vmatprep.subr.bf16.mxu0 0
      %246 = vmatpush1.bf16.msra.mxu0 0
      %247 = vmatprep.subr.bf16.mxu0 0
      %248 = vmatpush1.bf16.msra.mxu0 0
      %249 = vmatprep.subr.bf16.mxu0 0
      %250 = vmatpush1.bf16.msra.mxu0 0
      %251 = vmatprep.subr.bf16.mxu0 0
      %252 = vmatpush1.bf16.msra.mxu0 0
      %253 = vmatprep.subr.bf16.mxu0 0
      %254 = vmatpush1.bf16.msra.mxu0 0
      %255 = vmatprep.subr.bf16.mxu0 0
      %256 = vmatpush1.bf16.msra.mxu0 0
      %257 = vmatprep.subr.bf16.mxu0 0
      %258 = vmatpush1.bf16.msra.mxu0 0
      %259 = vmatprep.subr.bf16.mxu0 0
      %260 = vmatpush1.bf16.msra.mxu0 0
      %261 = vmatprep.subr.bf16.mxu0 0
      %262 = vmatpush1.bf16.msra.mxu0 0
      %263 = vmatprep.subr.bf16.mxu0 0
      %264 = vmatpush1.bf16.msra.mxu0 0
      %265 = vmatprep.mubr.bf16.mxu0 0
      %266 = vmatmul.mubr.bf16.gmra.mrb[0].mxu0 %v231
      %v267 = vpop.f32.mrb[0].mxu0
      %v268 = vadd.f32 %v221, %v267
      %v269 = vpop.f32.mrb[0].mxu0
      %v270 = vpop.f32.mrb[0].mxu0
      %v271 = vadd.f32 %v221, %v270
      %v272 = vpop.f32.mrb[0].mxu0
      %273 = vdwg.mxu0
      %vm274 = vcmask 31744
      %275 = vst.msk [vmem:[%s208] sm:$0xff] %vm274, %v268
      %276 = vst.msk [vmem:[%s208 + $0x8] sm:$0xff] %vm274, %v271
      %s277 = smul.u32 2, %s19
      %p278 = scmp.lt.s32.totalorder %s18, 1
      %s279 = scalar_select %p278, %s18, 1
      %p280 = scmp.lt.s32.totalorder %s277, 5
      %s281 = scalar_select %p280, %s277, 5
      %s282 = smul.addr %s279, 6
      %s283 = sadd.s32 %s281, %s282
      %s284 = smul.addr %s283, 8
      %s285 = scalar_lea.vmem %s3, %s284
      // Predicated region
      $region33: #{wide_flow_student_forward.7} parent=31 // pred_check
        %p286 = pneg %p116
      $region34: #{wide_flow_student_forward.7} parent=31 // pred_check_branch
        %288 = sbr.rel (%p286) target = $region36
      $region35: #{wide_flow_student_forward.7} parent=31 // pred_region
        %s289 = smul.u32 2, %s19
      $region36: #{wide_flow_student_forward.7} parent=31 // pred_fallthru
        _
    $region32: #{wide_flow_student_forward.7} parent=5 // pred_fallthru
      _
    %p290 = scmp.le.s32.totalorder 2, %s9
    // Predicated region
    $region37: #{wide_flow_student_forward.7} parent=5 // pred_check
      %p291 = pneg %p290
    $region38: #{wide_flow_student_forward.7} parent=5 // pred_check_branch
      %293 = sbr.rel (%p291) target = $region40
    $region39: #{wide_flow_student_forward.7} parent=5 // pred_region
      %s294 = ssub.s32 %s9, 2
      // Predicated region
      $region41: #{wide_flow_student_forward.7} parent=39 // pred_check
        %p295 = pneg %p122
      $region42: #{wide_flow_student_forward.7} parent=39 // pred_check_branch
        %297 = sbr.rel (%p295) target = $region44
      $region43: #{wide_flow_student_forward.7} parent=39 // pred_region
        %s298 = smul.u32 2, %s21
        %p299 = scmp.lt.s32.totalorder %s20, 1
        %s300 = scalar_select %p299, %s20, 1
        %p301 = scmp.lt.s32.totalorder %s298, 5
        %s302 = scalar_select %p301, %s298, 5
        %s303 = smul.addr %s300, 6
        %s304 = sadd.s32 %s302, %s303
        %s305 = smul.addr %s304, 8
        %s306 = scalar_lea.vmem %s3, %s305
      $region44: #{wide_flow_student_forward.7} parent=39 // pred_fallthru
        _
    $region40: #{wide_flow_student_forward.7} parent=5 // pred_fallthru
      _
  $region6: #{wide_flow_student_forward.7} parent=0 // loop_footer
    %s13 = sadd.s32 1, %s9
  $region7: #{wide_flow_student_forward.7} parent=0 // loop_footer_branch
    %8 = sbr.rel target = $region3
  $region8: #{wide_flow_student_forward.7} parent=0 // loop_exit
    _

// kernel: wide_flow_student_forward.4
$region0: #{wide_flow_student_forward.4}
  #allocation0 [shape = 'u32[]', space=smem, size = 0x4, offset = 0x4, fixed_abs, tag = 'smem constant byte address 0x4 - core index']
  #allocation1 [shape = 'u32[144,128]{1,0:T(1,128)}', space=vmem, size = 0x12000, scoped, tag = 'internal scratch']
  %s0 = inlined_call_operand.vmem [shape: f32[2,48,4], index: 0, kind: input, shape index: {}]
  %s1 = inlined_call_operand.vmem [shape: bf16[4,16], index: 1, kind: input, shape index: {}]
  %s2 = inlined_call_operand.vmem [shape: f32[1,16], index: 2, kind: input, shape index: {}]
  %s3 = inlined_call_operand.vmem [shape: f32[2,48,16], index: 3, kind: output, shape index: {}]
  %s4 = sld [smem:[#allocation0]]
  $region45: #{wide_flow_student_forward.4} parent=0
    _
  %s6 = ssub.s32 1, %s4
  %s7 = scalar_select 0, %s6, %s4
  loop: start=0, step=1, limit=8
  $region2: #{wide_flow_student_forward.4} parent=0 // loop_pre_header
    _
  $region3: #{wide_flow_student_forward.4} parent=0 // loop_header
    %s9 = sphi 0, %s13
    %p10 = scmp.ge.s32.totalorder %s9, 8
    %s16 = sphi 0, %s28
    %s17 = sphi 0, %s24
    %s18 = sphi 0, %s16
    %s19 = sphi 0, %s17
    %s20 = sphi 0, %s18
    %s21 = sphi 0, %s19
    %s33 = sphi 0, %s35
    %s36 = sphi 0, %s33
    %s37 = sphi 0, %s36
    %s53 = sphi 0, %s37
    %s57 = sphi 0, %s57
    %s59 = sphi 0, %s57
    %s60 = sphi 0, %s59
    %s74 = sphi 0, %s60
    %s78 = sphi 0, %s78
    %s80 = sphi 0, %s78
    %s81 = sphi 0, %s80
    %s95 = sphi 0, %s81
    %s103 = sphi 0, %s105
    %s106 = sphi 0, %s103
    %s107 = sphi 0, %s106
    %s123 = sphi 0, %s107
  $region4: #{wide_flow_student_forward.4} parent=0 // loop_header_branch
    %12 = sbr.rel (%p10) target = $region8
  $region5: #{wide_flow_student_forward.4} parent=0 // loop_body
    %s14 = ssub.s32 %s9, 1
    %s15 = ssub.s32 %s9, 2
    %s22 = sadd.s32 1, %s17
    %p23 = scmp.ge.s32.totalorder %s22, 3
    %s24 = scalar_select %p23, 0, %s22
    %s25 = sadd.s32 1, %s16
    %s26 = scalar_select %p23, %s25, %s16
    %p27 = scmp.ge.s32.totalorder %s26, 2
    %s28 = scalar_select %p27, 0, %s26
    %s29 = ssub.s32 %s16, %s28
    %s30 = ssub.s32 %s17, %s24
    %s31 = sor.u32 %s29, %s30
    %p32 = scmp.eq.s32.totalorder %s31, 0
    %s34 = sadd.s32 %s33, 1
    %s35 = scalar_select %p32, %s33, %s34
    %p38 = pneg %p32
    %p39 = scmp.eq.s32.totalorder %s9, 5
    %p40 = por %p38, %p39
    %p41 = scmp.ne.s32.totalorder %s33, %s36
    %p42 = scmp.eq.s32.totalorder %s9, 0
    %p43 = por %p41, %p42
    %p44 = scmp.ne.s32.totalorder %s33, %s36
    %p45 = scmp.eq.s32.totalorder %s14, 5
    %p46 = por %p44, %p45
    %p47 = scmp.ne.s32.totalorder %s36, %s37
    %p48 = scmp.eq.s32.totalorder %s14, 0
    %p49 = por %p47, %p48
    %p50 = scmp.ne.s32.totalorder %s36, %s37
    %p51 = scmp.eq.s32.totalorder %s15, 5
    %p52 = por %p50, %p51
    %p54 = scmp.ne.s32.totalorder %s37, %s53
    %p55 = scmp.eq.s32.totalorder %s15, 0
    %p56 = por %p54, %p55
    %s58 = sadd.s32 %s57, 1
    %p61 = scmp.eq.s32.totalorder %s9, 5
    %p62 = scmp.ne.s32.totalorder %s57, %s59
    %p63 = scmp.eq.s32.totalorder %s9, 0
    %p64 = por %p62, %p63
    %p65 = scmp.ne.s32.totalorder %s57, %s59
    %p66 = scmp.eq.s32.totalorder %s14, 5
    %p67 = por %p65, %p66
    %p68 = scmp.ne.s32.totalorder %s59, %s60
    %p69 = scmp.eq.s32.totalorder %s14, 0
    %p70 = por %p68, %p69
    %p71 = scmp.ne.s32.totalorder %s59, %s60
    %p72 = scmp.eq.s32.totalorder %s15, 5
    %p73 = por %p71, %p72
    %p75 = scmp.ne.s32.totalorder %s60, %s74
    %p76 = scmp.eq.s32.totalorder %s15, 0
    %p77 = por %p75, %p76
    %s79 = sadd.s32 %s78, 1
    %p82 = scmp.eq.s32.totalorder %s9, 5
    %p83 = scmp.ne.s32.totalorder %s78, %s80
    %p84 = scmp.eq.s32.totalorder %s9, 0
    %p85 = por %p83, %p84
    %p86 = scmp.ne.s32.totalorder %s78, %s80
    %p87 = scmp.eq.s32.totalorder %s14, 5
    %p88 = por %p86, %p87
    %p89 = scmp.ne.s32.totalorder %s80, %s81
    %p90 = scmp.eq.s32.totalorder %s14, 0
    %p91 = por %p89, %p90
    %p92 = scmp.ne.s32.totalorder %s80, %s81
    %p93 = scmp.eq.s32.totalorder %s15, 5
    %p94 = por %p92, %p93
    %p96 = scmp.ne.s32.totalorder %s81, %s95
    %p97 = scmp.eq.s32.totalorder %s15, 0
    %p98 = por %p96, %p97
    %s99 = ssub.s32 %s16, %s28
    %s100 = ssub.s32 %s17, %s24
    %s101 = sor.u32 %s99, %s100
    %p102 = scmp.eq.s32.totalorder %s101, 0
    %s104 = sadd.s32 %s103, 1
    %s105 = scalar_select %p102, %s103, %s104
    %p108 = pneg %p102
    %p109 = scmp.eq.s32.totalorder %s9, 5
    %p110 = por %p108, %p109
    %p111 = scmp.ne.s32.totalorder %s103, %s106
    %p112 = scmp.eq.s32.totalorder %s9, 0
    %p113 = por %p111, %p112
    %p114 = scmp.ne.s32.totalorder %s103, %s106
    %p115 = scmp.eq.s32.totalorder %s14, 5
    %p116 = por %p114, %p115
    %p117 = scmp.ne.s32.totalorder %s106, %s107
    %p118 = scmp.eq.s32.totalorder %s14, 0
    %p119 = por %p117, %p118
    %p120 = scmp.ne.s32.totalorder %s106, %s107
    %p121 = scmp.eq.s32.totalorder %s15, 5
    %p122 = por %p120, %p121
    %p124 = scmp.ne.s32.totalorder %s107, %s123
    %p125 = scmp.eq.s32.totalorder %s15, 0
    %p126 = por %p124, %p125
    %p127 = scmp.le.s32.totalorder 1, %s9
    %p128 = scmp.lt.s32.totalorder %s9, 7
    %p129 = pnand %p127, %p128
    %p130 = pneg %p129
    // Predicated region
    $region9: #{wide_flow_student_forward.4} parent=5 // pred_check
      _
    $region10: #{wide_flow_student_forward.4} parent=5 // pred_check_branch
      %132 = sbr.rel (%p129) target = $region12
    $region11: #{wide_flow_student_forward.4} parent=5 // pred_region
      %s133 = ssub.s32 %s9, 1
      // Predicated region
      $region13: #{wide_flow_student_forward.4} parent=11 // pred_check
        %p134 = pneg %p70
      $region14: #{wide_flow_student_forward.4} parent=11 // pred_check_branch
        %136 = sbr.rel (%p134) target = $region16
      $region15: #{wide_flow_student_forward.4} parent=11 // pred_region
        _
      $region16: #{wide_flow_student_forward.4} parent=11 // pred_fallthru
        _
      // Predicated region
      $region17: #{wide_flow_student_forward.4} parent=11 // pred_check
        %p137 = pneg %p91
      $region18: #{wide_flow_student_forward.4} parent=11 // pred_check_branch
        %139 = sbr.rel (%p137) target = $region20
      $region19: #{wide_flow_student_forward.4} parent=11 // pred_region
        _
      $region20: #{wide_flow_student_forward.4} parent=11 // pred_fallthru
        _
    $region12: #{wide_flow_student_forward.4} parent=5 // pred_fallthru
      _
    %p140 = scmp.lt.s32.totalorder %s9, 6
    // Predicated region
    $region21: #{wide_flow_student_forward.4} parent=5 // pred_check
      %p141 = pneg %p140
    $region22: #{wide_flow_student_forward.4} parent=5 // pred_check_branch
      %143 = sbr.rel (%p141) target = $region24
    $region23: #{wide_flow_student_forward.4} parent=5 // pred_region
      // Predicated region
      $region25: #{wide_flow_student_forward.4} parent=23 // pred_check
        %p144 = pneg %p43
      $region26: #{wide_flow_student_forward.4} parent=23 // pred_check_branch
        %146 = sbr.rel (%p144) target = $region28
      $region27: #{wide_flow_student_forward.4} parent=23 // pred_region
        %s147 = smul.u32 2, %s17
        %p148 = scmp.lt.s32.totalorder %s16, 1
        %s149 = scalar_select %p148, %s16, 1
        %p150 = scmp.lt.s32.totalorder %s147, 5
        %s151 = scalar_select %p150, %s147, 5
        %s152 = smul.addr %s149, 6
        %s153 = sadd.s32 %s151, %s152
        %s154 = smul.addr %s153, 8
        %s155 = scalar_lea.vmem %s0, %s154
        %s156 = smul.u32 2, %s17
      $region28: #{wide_flow_student_forward.4} parent=23 // pred_fallthru
        _
    $region24: #{wide_flow_student_forward.4} parent=5 // pred_fallthru
      _
    %p157 = scmp.le.s32.totalorder 1, %s9
    %p158 = scmp.lt.s32.totalorder %s9, 7
    %p159 = pnand %p157, %p158
    %p160 = pneg %p159
    // Predicated region
    $region29: #{wide_flow_student_forward.4} parent=5 // pred_check
      _
    $region30: #{wide_flow_student_forward.4} parent=5 // pred_check_branch
      %162 = sbr.rel (%p159) target = $region32
    $region31: #{wide_flow_student_forward.4} parent=5 // pred_region
      %s163 = ssub.s32 %s9, 1
      %s164 = smul.u32 2, %s19
      %p165 = scmp.lt.s32.totalorder %s18, 1
      %s166 = scalar_select %p165, %s18, 1
      %p167 = scmp.lt.s32.totalorder %s164, 5
      %s168 = scalar_select %p167, %s164, 5
      %s169 = smul.addr %s166, 6
      %s170 = sadd.s32 %s168, %s169
      %s171 = smul.addr %s170, 8
      %s172 = scalar_lea.vmem %s0, %s171
      %p173 = pneg %p49
      %p174 = pneg %p46
      %p175 = pneg %p70
      %p176 = pneg %p67
      %p177 = pneg %p91
      %p178 = pneg %p88
      %p179 = pneg %p119
      %p180 = pneg %p116
      %s181 = smul.u32 2, %s19
      %p182 = scmp.lt.s32.totalorder %s18, 1
      %s183 = scalar_select %p182, %s18, 1
      %p184 = scmp.lt.s32.totalorder %s181, 5
      %s185 = scalar_select %p184, %s181, 5
      %s186 = smul.addr %s183, 6
      %s187 = sadd.s32 %s185, %s186
      %s188 = smul.addr %s187, 8
      %s189 = scalar_lea.vmem %s3, %s188
      %s190 = smul.u32 2, %s19
      %p191 = scmp.lt.s32.totalorder %s18, 1
      %s192 = scalar_select %p191, %s18, 1
      %p193 = scmp.lt.s32.totalorder %s190, 5
      %s194 = scalar_select %p193, %s190, 5
      %s195 = smul.addr %s192, 6
      %s196 = sadd.s32 %s194, %s195
      %s197 = smul.addr %s196, 8
      %s198 = scalar_lea.vmem %s0, %s197
      %s199 = smul.u32 2, %s19
      %s200 = smul.u32 2, %s19
      %p201 = scmp.lt.s32.totalorder %s18, 1
      %s202 = scalar_select %p201, %s18, 1
      %p203 = scmp.lt.s32.totalorder %s200, 5
      %s204 = scalar_select %p203, %s200, 5
      %s205 = smul.addr %s202, 6
      %s206 = sadd.s32 %s204, %s205
      %s207 = smul.addr %s206, 8
      %s208 = scalar_lea.vmem %s3, %s207
      %s209 = smul.u32 2, %s19
      %v211 = vld [vmem:[%s198] sm:$0xff]
      %v212 = vld [vmem:[%s198 + $0x8] sm:$0xff]
      %v213 = vpack.c.bf16 %v212, %v211
      %v214 = vld [vmem:[%s1] sm:$0x3]
      %v215 = vld [vmem:[%s2] sm:$0x1]
      %v217 = vlaneseq
      %v218 = vshrl.u32 %v217, 7
      %v219 = vsub.s32 0, %v218
      %v220 = vrot.slane %v215, %v219
      %vm222 = vcmask 31744
      %v224 = vsel %vm222, %v213, 0
      %vm226 = vcmask 1041408
      %v228 = vsel %vm226, %v214, 0
      %230 = vmatprep.subr.bf16.mxu0 0
      %231 = vmatpush1.bf16.msra.mxu0 %v228
      %232 = vmatprep.subr.bf16.mxu0 0
      %233 = vmatpush1.bf16.msra.mxu0 0
      %234 = vmatprep.subr.bf16.mxu0 0
      %235 = vmatpush1.bf16.msra.mxu0 0
      %236 = vmatprep.subr.bf16.mxu0 0
      %237 = vmatpush1.bf16.msra.mxu0 0
      %238 = vmatprep.subr.bf16.mxu0 0
      %239 = vmatpush1.bf16.msra.mxu0 0
      %240 = vmatprep.subr.bf16.mxu0 0
      %241 = vmatpush1.bf16.msra.mxu0 0
      %242 = vmatprep.subr.bf16.mxu0 0
      %243 = vmatpush1.bf16.msra.mxu0 0
      %244 = vmatprep.subr.bf16.mxu0 0
      %245 = vmatpush1.bf16.msra.mxu0 0
      %246 = vmatprep.subr.bf16.mxu0 0
      %247 = vmatpush1.bf16.msra.mxu0 0
      %248 = vmatprep.subr.bf16.mxu0 0
      %249 = vmatpush1.bf16.msra.mxu0 0
      %250 = vmatprep.subr.bf16.mxu0 0
      %251 = vmatpush1.bf16.msra.mxu0 0
      %252 = vmatprep.subr.bf16.mxu0 0
      %253 = vmatpush1.bf16.msra.mxu0 0
      %254 = vmatprep.subr.bf16.mxu0 0
      %255 = vmatpush1.bf16.msra.mxu0 0
      %256 = vmatprep.subr.bf16.mxu0 0
      %257 = vmatpush1.bf16.msra.mxu0 0
      %258 = vmatprep.subr.bf16.mxu0 0
      %259 = vmatpush1.bf16.msra.mxu0 0
      %260 = vmatprep.subr.bf16.mxu0 0
      %261 = vmatpush1.bf16.msra.mxu0 0
      %262 = vmatprep.mubr.bf16.mxu0 0
      %263 = vmatmul.mubr.bf16.gmra.mrb[0].mxu0 %v224
      %v264 = vpop.f32.mrb[0].mxu0
      %v265 = vadd.f32 %v220, %v264
      %v266 = vpop.f32.mrb[0].mxu0
      %v267 = vpop.f32.mrb[0].mxu0
      %v268 = vadd.f32 %v220, %v267
      %v269 = vpop.f32.mrb[0].mxu0
      %270 = vdwg.mxu0
      %vm271 = vcmask 130048
      %272 = vst.msk [vmem:[%s208] sm:$0xff] %vm271, %v265
      %273 = vst.msk [vmem:[%s208 + $0x8] sm:$0xff] %vm271, %v268
      %s274 = smul.u32 2, %s19
      %p275 = scmp.lt.s32.totalorder %s18, 1
      %s276 = scalar_select %p275, %s18, 1
      %p277 = scmp.lt.s32.totalorder %s274, 5
      %s278 = scalar_select %p277, %s274, 5
      %s279 = smul.addr %s276, 6
      %s280 = sadd.s32 %s278, %s279
      %s281 = smul.addr %s280, 8
      %s282 = scalar_lea.vmem %s3, %s281
      // Predicated region
      $region33: #{wide_flow_student_forward.4} parent=31 // pred_check
        %p283 = pneg %p116
      $region34: #{wide_flow_student_forward.4} parent=31 // pred_check_branch
        %285 = sbr.rel (%p283) target = $region36
      $region35: #{wide_flow_student_forward.4} parent=31 // pred_region
        %s286 = smul.u32 2, %s19
      $region36: #{wide_flow_student_forward.4} parent=31 // pred_fallthru
        _
    $region32: #{wide_flow_student_forward.4} parent=5 // pred_fallthru
      _
    %p287 = scmp.le.s32.totalorder 2, %s9
    // Predicated region
    $region37: #{wide_flow_student_forward.4} parent=5 // pred_check
      %p288 = pneg %p287
    $region38: #{wide_flow_student_forward.4} parent=5 // pred_check_branch
      %290 = sbr.rel (%p288) target = $region40
    $region39: #{wide_flow_student_forward.4} parent=5 // pred_region
      %s291 = ssub.s32 %s9, 2
      // Predicated region
      $region41: #{wide_flow_student_forward.4} parent=39 // pred_check
        %p292 = pneg %p122
      $region42: #{wide_flow_student_forward.4} parent=39 // pred_check_branch
        %294 = sbr.rel (%p292) target = $region44
      $region43: #{wide_flow_student_forward.4} parent=39 // pred_region
        %s295 = smul.u32 2, %s21
        %p296 = scmp.lt.s32.totalorder %s20, 1
        %s297 = scalar_select %p296, %s20, 1
        %p298 = scmp.lt.s32.totalorder %s295, 5
        %s299 = scalar_select %p298, %s295, 5
        %s300 = smul.addr %s297, 6
        %s301 = sadd.s32 %s299, %s300
        %s302 = smul.addr %s301, 8
        %s303 = scalar_lea.vmem %s3, %s302
      $region44: #{wide_flow_student_forward.4} parent=39 // pred_fallthru
        _
    $region40: #{wide_flow_student_forward.4} parent=5 // pred_fallthru
      _
  $region6: #{wide_flow_student_forward.4} parent=0 // loop_footer
    %s13 = sadd.s32 1, %s9
  $region7: #{wide_flow_student_forward.4} parent=0 // loop_footer_branch
    %8 = sbr.rel target = $region3
  $region8: #{wide_flow_student_forward.4} parent=0 // loop_exit
    _

// kernel: wide_flow_student_forward.5
$region0: #{wide_flow_student_forward.5}
  #allocation0 [shape = 'u32[]', space=smem, size = 0x4, offset = 0x4, fixed_abs, tag = 'smem constant byte address 0x4 - core index']
  #allocation1 [shape = 'u32[144,128]{1,0:T(1,128)}', space=vmem, size = 0x12000, scoped, tag = 'internal scratch']
  %s0 = inlined_call_operand.vmem [shape: f32[2,48,16], index: 0, kind: input, shape index: {}, may-alias: {0,1,2}]
  %s1 = inlined_call_operand.vmem [shape: f32[2,48,16], index: 1, kind: input, shape index: {}, may-alias: {0,1,2}]
  %s2 = inlined_call_operand.vmem [shape: f32[2,48,16], index: 2, kind: input, shape index: {}, may-alias: {0,1,2}]
  %s3 = inlined_call_operand.vmem [shape: f32[2,48,8], index: 3, kind: input, shape index: {}, may-alias: {3,4,5}]
  %s4 = inlined_call_operand.vmem [shape: f32[2,48,8], index: 4, kind: input, shape index: {}, may-alias: {3,4,5}]
  %s5 = inlined_call_operand.vmem [shape: f32[2,48,8], index: 5, kind: input, shape index: {}, may-alias: {3,4,5}]
  %s6 = inlined_call_operand.vmem [shape: bf16[16,16], index: 6, kind: input, shape index: {}]
  %s7 = inlined_call_operand.vmem [shape: f32[1,16], index: 7, kind: input, shape index: {}]
  %s8 = inlined_call_operand.vmem [shape: bf16[3,16,32], index: 8, kind: input, shape index: {}]
  %s9 = inlined_call_operand.vmem [shape: bf16[3,16,32], index: 9, kind: input, shape index: {}]
  %s10 = inlined_call_operand.vmem [shape: bf16[3,16,32], index: 10, kind: input, shape index: {}]
  %s11 = inlined_call_operand.vmem [shape: bf16[3,8,32], index: 11, kind: input, shape index: {}]
  %s12 = inlined_call_operand.vmem [shape: f32[3,1,32], index: 12, kind: input, shape index: {}]
  %s13 = inlined_call_operand.vmem [shape: bf16[3,16,32], index: 13, kind: input, shape index: {}]
  %s14 = inlined_call_operand.vmem [shape: f32[3,1,32], index: 14, kind: input, shape index: {}]
  %s15 = inlined_call_operand.vmem [shape: bf16[16,8], index: 15, kind: input, shape index: {}]
  %s16 = inlined_call_operand.vmem [shape: f32[1,8], index: 16, kind: input, shape index: {}]
  %s17 = inlined_call_operand.vmem [shape: bf16[16,8], index: 17, kind: input, shape index: {}]
  %s18 = inlined_call_operand.vmem [shape: f32[1,8], index: 18, kind: input, shape index: {}]
  %s19 = inlined_call_operand.vmem [shape: bf16[8,16], index: 19, kind: input, shape index: {}]
  %s20 = inlined_call_operand.vmem [shape: bf16[8,16], index: 20, kind: input, shape index: {}]
  %s21 = inlined_call_operand.vmem [shape: f32[1,16], index: 21, kind: input, shape index: {}]
  %s22 = inlined_call_operand.vmem [shape: f32[2,48,16], index: 22, kind: output, shape index: {}]
  %s23 = sld [smem:[#allocation0]]
  $region121: #{wide_flow_student_forward.5} parent=0
    _
  %s25 = ssub.s32 1, %s23
  %s26 = scalar_select 0, %s25, %s23
  loop: start=0, step=1, limit=8
  $region2: #{wide_flow_student_forward.5} parent=0 // loop_pre_header
    _
  $region3: #{wide_flow_student_forward.5} parent=0 // loop_header
    %s28 = sphi 0, %s32
    %p29 = scmp.ge.s32.totalorder %s28, 8
    %s35 = sphi 0, %s47
    %s36 = sphi 0, %s43
    %s37 = sphi 0, %s35
    %s38 = sphi 0, %s36
    %s39 = sphi 0, %s37
    %s40 = sphi 0, %s38
    %s60 = sphi 0, %s62
    %s63 = sphi 0, %s60
    %s64 = sphi 0, %s63
    %s80 = sphi 0, %s64
    %s88 = sphi 0, %s90
    %s91 = sphi 0, %s88
    %s92 = sphi 0, %s91
    %s108 = sphi 0, %s92
    %s124 = sphi 0, %s126
    %s127 = sphi 0, %s124
    %s128 = sphi 0, %s127
    %s144 = sphi 0, %s128
    %s160 = sphi 0, %s162
    %s163 = sphi 0, %s160
    %s164 = sphi 0, %s163
    %s180 = sphi 0, %s164
    %s188 = sphi 0, %s190
    %s191 = sphi 0, %s188
    %s192 = sphi 0, %s191
    %s208 = sphi 0, %s192
    %s224 = sphi 0, %s226
    %s227 = sphi 0, %s224
    %s228 = sphi 0, %s227
    %s244 = sphi 0, %s228
    %s248 = sphi 0, %s248
    %s250 = sphi 0, %s248
    %s251 = sphi 0, %s250
    %s265 = sphi 0, %s251
    %s269 = sphi 0, %s269
    %s271 = sphi 0, %s269
    %s272 = sphi 0, %s271
    %s286 = sphi 0, %s272
    %s290 = sphi 0, %s290
    %s292 = sphi 0, %s290
    %s293 = sphi 0, %s292
    %s307 = sphi 0, %s293
    %s311 = sphi 0, %s311
    %s313 = sphi 0, %s311
    %s314 = sphi 0, %s313
    %s328 = sphi 0, %s314
    %s332 = sphi 0, %s332
    %s334 = sphi 0, %s332
    %s335 = sphi 0, %s334
    %s349 = sphi 0, %s335
    %s353 = sphi 0, %s353
    %s355 = sphi 0, %s353
    %s356 = sphi 0, %s355
    %s370 = sphi 0, %s356
    %s374 = sphi 0, %s374
    %s376 = sphi 0, %s374
    %s377 = sphi 0, %s376
    %s391 = sphi 0, %s377
    %s395 = sphi 0, %s395
    %s397 = sphi 0, %s395
    %s398 = sphi 0, %s397
    %s412 = sphi 0, %s398
    %s416 = sphi 0, %s416
    %s418 = sphi 0, %s416
    %s419 = sphi 0, %s418
    %s433 = sphi 0, %s419
    %s437 = sphi 0, %s437
    %s439 = sphi 0, %s437
    %s440 = sphi 0, %s439
    %s454 = sphi 0, %s440
    %s458 = sphi 0, %s458
    %s460 = sphi 0, %s458
    %s461 = sphi 0, %s460
    %s475 = sphi 0, %s461
    %s479 = sphi 0, %s479
    %s481 = sphi 0, %s479
    %s482 = sphi 0, %s481
    %s496 = sphi 0, %s482
    %s500 = sphi 0, %s500
    %s502 = sphi 0, %s500
    %s503 = sphi 0, %s502
    %s517 = sphi 0, %s503
    %s521 = sphi 0, %s521
    %s523 = sphi 0, %s521
    %s524 = sphi 0, %s523
    %s538 = sphi 0, %s524
    %s542 = sphi 0, %s542
    %s544 = sphi 0, %s542
    %s545 = sphi 0, %s544
    %s559 = sphi 0, %s545
    %s563 = sphi 0, %s563
    %s565 = sphi 0, %s563
    %s566 = sphi 0, %s565
    %s580 = sphi 0, %s566
    %s588 = sphi 0, %s590
    %s591 = sphi 0, %s588
    %s592 = sphi 0, %s591
    %s608 = sphi 0, %s592
  $region4: #{wide_flow_student_forward.5} parent=0 // loop_header_branch
    %31 = sbr.rel (%p29) target = $region8
  $region5: #{wide_flow_student_forward.5} parent=0 // loop_body
    %s33 = ssub.s32 %s28, 1
    %s34 = ssub.s32 %s28, 2
    %s41 = sadd.s32 1, %s36
    %p42 = scmp.ge.s32.totalorder %s41, 3
    %s43 = scalar_select %p42, 0, %s41
    %s44 = sadd.s32 1, %s35
    %s45 = scalar_select %p42, %s44, %s35
    %p46 = scmp.ge.s32.totalorder %s45, 2
    %s47 = scalar_select %p46, 0, %s45
    %s48 = smul.u32 %s36, 2
    %s49 = ssub.s32 %s48, 1
    %p50 = scmp.gt.s32.totalorder %s49, 0
    %s51 = scalar_select %p50, %s49, 0
    %s52 = smul.u32 %s43, 2
    %s53 = ssub.s32 %s52, 1
    %p54 = scmp.gt.s32.totalorder %s53, 0
    %s55 = scalar_select %p54, %s53, 0
    %s56 = ssub.s32 %s35, %s47
    %s57 = ssub.s32 %s51, %s55
    %s58 = sor.u32 %s56, %s57
    %p59 = scmp.eq.s32.totalorder %s58, 0
    %s61 = sadd.s32 %s60, 1
    %s62 = scalar_select %p59, %s60, %s61
    %p65 = pneg %p59
    %p66 = scmp.eq.s32.totalorder %s28, 5
    %p67 = por %p65, %p66
    %p68 = scmp.ne.s32.totalorder %s60, %s63
    %p69 = scmp.eq.s32.totalorder %s28, 0
    %p70 = por %p68, %p69
    %p71 = scmp.ne.s32.totalorder %s60, %s63
    %p72 = scmp.eq.s32.totalorder %s33, 5
    %p73 = por %p71, %p72
    %p74 = scmp.ne.s32.totalorder %s63, %s64
    %p75 = scmp.eq.s32.totalorder %s33, 0
    %p76 = por %p74, %p75
    %p77 = scmp.ne.s32.totalorder %s63, %s64
    %p78 = scmp.eq.s32.totalorder %s34, 5
    %p79 = por %p77, %p78
    %p81 = scmp.ne.s32.totalorder %s64, %s80
    %p82 = scmp.eq.s32.totalorder %s34, 0
    %p83 = por %p81, %p82
    %s84 = ssub.s32 %s35, %s47
    %s85 = ssub.s32 %s36, %s43
    %s86 = sor.u32 %s84, %s85
    %p87 = scmp.eq.s32.totalorder %s86, 0
    %s89 = sadd.s32 %s88, 1
    %s90 = scalar_select %p87, %s88, %s89
    %p93 = pneg %p87
    %p94 = scmp.eq.s32.totalorder %s28, 5
    %p95 = por %p93, %p94
    %p96 = scmp.ne.s32.totalorder %s88, %s91
    %p97 = scmp.eq.s32.totalorder %s28, 0
    %p98 = por %p96, %p97
    %p99 = scmp.ne.s32.totalorder %s88, %s91
    %p100 = scmp.eq.s32.totalorder %s33, 5
    %p101 = por %p99, %p100
    %p102 = scmp.ne.s32.totalorder %s91, %s92
    %p103 = scmp.eq.s32.totalorder %s33, 0
    %p104 = por %p102, %p103
    %p105 = scmp.ne.s32.totalorder %s91, %s92
    %p106 = scmp.eq.s32.totalorder %s34, 5
    %p107 = por %p105, %p106
    %p109 = scmp.ne.s32.totalorder %s92, %s108
    %p110 = scmp.eq.s32.totalorder %s34, 0
    %p111 = por %p109, %p110
    %s112 = sadd.s32 %s36, 1
    %s113 = smul.u32 %s112, 2
    %p114 = scmp.lt.s32.totalorder %s113, 5
    %s115 = scalar_select %p114, %s113, 5
    %s116 = sadd.s32 %s43, 1
    %s117 = smul.u32 %s116, 2
    %p118 = scmp.lt.s32.totalorder %s117, 5
    %s119 = scalar_select %p118, %s117, 5
    %s120 = ssub.s32 %s35, %s47
    %s121 = ssub.s32 %s115, %s119
    %s122 = sor.u32 %s120, %s121
    %p123 = scmp.eq.s32.totalorder %s122, 0
    %s125 = sadd.s32 %s124, 1
    %s126 = scalar_select %p123, %s124, %s125
    %p129 = pneg %p123
    %p130 = scmp.eq.s32.totalorder %s28, 5
    %p131 = por %p129, %p130
    %p132 = scmp.ne.s32.totalorder %s124, %s127
    %p133 = scmp.eq.s32.totalorder %s28, 0
    %p134 = por %p132, %p133
    %p135 = scmp.ne.s32.totalorder %s124, %s127
    %p136 = scmp.eq.s32.totalorder %s33, 5
    %p137 = por %p135, %p136
    %p138 = scmp.ne.s32.totalorder %s127, %s128
    %p139 = scmp.eq.s32.totalorder %s33, 0
    %p140 = por %p138, %p139
    %p141 = scmp.ne.s32.totalorder %s127, %s128
    %p142 = scmp.eq.s32.totalorder %s34, 5
    %p143 = por %p141, %p142
    %p145 = scmp.ne.s32.totalorder %s128, %s144
    %p146 = scmp.eq.s32.totalorder %s34, 0
    %p147 = por %p145, %p146
    %s148 = smul.u32 %s36, 2
    %s149 = ssub.s32 %s148, 1
    %p150 = scmp.gt.s32.totalorder %s149, 0
    %s151 = scalar_select %p150, %s149, 0
    %s152 = smul.u32 %s43, 2
    %s153 = ssub.s32 %s152, 1
    %p154 = scmp.gt.s32.totalorder %s153, 0
    %s155 = scalar_select %p154, %s153, 0
    %s156 = ssub.s32 %s35, %s47
    %s157 = ssub.s32 %s151, %s155
    %s158 = sor.u32 %s156, %s157
    %p159 = scmp.eq.s32.totalorder %s158, 0
    %s161 = sadd.s32 %s160, 1
    %s162 = scalar_select %p159, %s160, %s161
    %p165 = pneg %p159
    %p166 = scmp.eq.s32.totalorder %s28, 5
    %p167 = por %p165, %p166
    %p168 = scmp.ne.s32.totalorder %s160, %s163
    %p169 = scmp.eq.s32.totalorder %s28, 0
    %p170 = por %p168, %p169
    %p171 = scmp.ne.s32.totalorder %s160, %s163
    %p172 = scmp.eq.s32.totalorder %s33, 5
    %p173 = por %p171, %p172
    %p174 = scmp.ne.s32.totalorder %s163, %s164
    %p175 = scmp.eq.s32.totalorder %s33, 0
    %p176 = por %p174, %p175
    %p177 = scmp.ne.s32.totalorder %s163, %s164
    %p178 = scmp.eq.s32.totalorder %s34, 5
    %p179 = por %p177, %p178
    %p181 = scmp.ne.s32.totalorder %s164, %s180
    %p182 = scmp.eq.s32.totalorder %s34, 0
    %p183 = por %p181, %p182
    %s184 = ssub.s32 %s35, %s47
    %s185 = ssub.s32 %s36, %s43
    %s186 = sor.u32 %s184, %s185
    %p187 = scmp.eq.s32.totalorder %s186, 0
    %s189 = sadd.s32 %s188, 1
    %s190 = scalar_select %p187, %s188, %s189
    %p193 = pneg %p187
    %p194 = scmp.eq.s32.totalorder %s28, 5
    %p195 = por %p193, %p194
    %p196 = scmp.ne.s32.totalorder %s188, %s191
    %p197 = scmp.eq.s32.totalorder %s28, 0
    %p198 = por %p196, %p197
    %p199 = scmp.ne.s32.totalorder %s188, %s191
    %p200 = scmp.eq.s32.totalorder %s33, 5
    %p201 = por %p199, %p200
    %p202 = scmp.ne.s32.totalorder %s191, %s192
    %p203 = scmp.eq.s32.totalorder %s33, 0
    %p204 = por %p202, %p203
    %p205 = scmp.ne.s32.totalorder %s191, %s192
    %p206 = scmp.eq.s32.totalorder %s34, 5
    %p207 = por %p205, %p206
    %p209 = scmp.ne.s32.totalorder %s192, %s208
    %p210 = scmp.eq.s32.totalorder %s34, 0
    %p211 = por %p209, %p210
    %s212 = sadd.s32 %s36, 1
    %s213 = smul.u32 %s212, 2
    %p214 = scmp.lt.s32.totalorder %s213, 5
    %s215 = scalar_select %p214, %s213, 5
    %s216 = sadd.s32 %s43, 1
    %s217 = smul.u32 %s216, 2
    %p218 = scmp.lt.s32.totalorder %s217, 5
    %s219 = scalar_select %p218, %s217, 5
    %s220 = ssub.s32 %s35, %s47
    %s221 = ssub.s32 %s215, %s219
    %s222 = sor.u32 %s220, %s221
    %p223 = scmp.eq.s32.totalorder %s222, 0
    %s225 = sadd.s32 %s224, 1
    %s226 = scalar_select %p223, %s224, %s225
    %p229 = pneg %p223
    %p230 = scmp.eq.s32.totalorder %s28, 5
    %p231 = por %p229, %p230
    %p232 = scmp.ne.s32.totalorder %s224, %s227
    %p233 = scmp.eq.s32.totalorder %s28, 0
    %p234 = por %p232, %p233
    %p235 = scmp.ne.s32.totalorder %s224, %s227
    %p236 = scmp.eq.s32.totalorder %s33, 5
    %p237 = por %p235, %p236
    %p238 = scmp.ne.s32.totalorder %s227, %s228
    %p239 = scmp.eq.s32.totalorder %s33, 0
    %p240 = por %p238, %p239
    %p241 = scmp.ne.s32.totalorder %s227, %s228
    %p242 = scmp.eq.s32.totalorder %s34, 5
    %p243 = por %p241, %p242
    %p245 = scmp.ne.s32.totalorder %s228, %s244
    %p246 = scmp.eq.s32.totalorder %s34, 0
    %p247 = por %p245, %p246
    %s249 = sadd.s32 %s248, 1
    %p252 = scmp.eq.s32.totalorder %s28, 5
    %p253 = scmp.ne.s32.totalorder %s248, %s250
    %p254 = scmp.eq.s32.totalorder %s28, 0
    %p255 = por %p253, %p254
    %p256 = scmp.ne.s32.totalorder %s248, %s250
    %p257 = scmp.eq.s32.totalorder %s33, 5
    %p258 = por %p256, %p257
    %p259 = scmp.ne.s32.totalorder %s250, %s251
    %p260 = scmp.eq.s32.totalorder %s33, 0
    %p261 = por %p259, %p260
    %p262 = scmp.ne.s32.totalorder %s250, %s251
    %p263 = scmp.eq.s32.totalorder %s34, 5
    %p264 = por %p262, %p263
    %p266 = scmp.ne.s32.totalorder %s251, %s265
    %p267 = scmp.eq.s32.totalorder %s34, 0
    %p268 = por %p266, %p267
    %s270 = sadd.s32 %s269, 1
    %p273 = scmp.eq.s32.totalorder %s28, 5
    %p274 = scmp.ne.s32.totalorder %s269, %s271
    %p275 = scmp.eq.s32.totalorder %s28, 0
    %p276 = por %p274, %p275
    %p277 = scmp.ne.s32.totalorder %s269, %s271
    %p278 = scmp.eq.s32.totalorder %s33, 5
    %p279 = por %p277, %p278
    %p280 = scmp.ne.s32.totalorder %s271, %s272
    %p281 = scmp.eq.s32.totalorder %s33, 0
    %p282 = por %p280, %p281
    %p283 = scmp.ne.s32.totalorder %s271, %s272
    %p284 = scmp.eq.s32.totalorder %s34, 5
    %p285 = por %p283, %p284
    %p287 = scmp.ne.s32.totalorder %s272, %s286
    %p288 = scmp.eq.s32.totalorder %s34, 0
    %p289 = por %p287, %p288
    %s291 = sadd.s32 %s290, 1
    %p294 = scmp.eq.s32.totalorder %s28, 5
    %p295 = scmp.ne.s32.totalorder %s290, %s292
    %p296 = scmp.eq.s32.totalorder %s28, 0
    %p297 = por %p295, %p296
    %p298 = scmp.ne.s32.totalorder %s290, %s292
    %p299 = scmp.eq.s32.totalorder %s33, 5
    %p300 = por %p298, %p299
    %p301 = scmp.ne.s32.totalorder %s292, %s293
    %p302 = scmp.eq.s32.totalorder %s33, 0
    %p303 = por %p301, %p302
    %p304 = scmp.ne.s32.totalorder %s292, %s293
    %p305 = scmp.eq.s32.totalorder %s34, 5
    %p306 = por %p304, %p305
    %p308 = scmp.ne.s32.totalorder %s293, %s307
    %p309 = scmp.eq.s32.totalorder %s34, 0
    %p310 = por %p308, %p309
    %s312 = sadd.s32 %s311, 1
    %p315 = scmp.eq.s32.totalorder %s28, 5
    %p316 = scmp.ne.s32.totalorder %s311, %s313
    %p317 = scmp.eq.s32.totalorder %s28, 0
    %p318 = por %p316, %p317
    %p319 = scmp.ne.s32.totalorder %s311, %s313
    %p320 = scmp.eq.s32.totalorder %s33, 5
    %p321 = por %p319, %p320
    %p322 = scmp.ne.s32.totalorder %s313, %s314
    %p323 = scmp.eq.s32.totalorder %s33, 0
    %p324 = por %p322, %p323
    %p325 = scmp.ne.s32.totalorder %s313, %s314
    %p326 = scmp.eq.s32.totalorder %s34, 5
    %p327 = por %p325, %p326
    %p329 = scmp.ne.s32.totalorder %s314, %s328
    %p330 = scmp.eq.s32.totalorder %s34, 0
    %p331 = por %p329, %p330
    %s333 = sadd.s32 %s332, 1
    %p336 = scmp.eq.s32.totalorder %s28, 5
    %p337 = scmp.ne.s32.totalorder %s332, %s334
    %p338 = scmp.eq.s32.totalorder %s28, 0
    %p339 = por %p337, %p338
    %p340 = scmp.ne.s32.totalorder %s332, %s334
    %p341 = scmp.eq.s32.totalorder %s33, 5
    %p342 = por %p340, %p341
    %p343 = scmp.ne.s32.totalorder %s334, %s335
    %p344 = scmp.eq.s32.totalorder %s33, 0
    %p345 = por %p343, %p344
    %p346 = scmp.ne.s32.totalorder %s334, %s335
    %p347 = scmp.eq.s32.totalorder %s34, 5
    %p348 = por %p346, %p347
    %p350 = scmp.ne.s32.totalorder %s335, %s349
    %p351 = scmp.eq.s32.totalorder %s34, 0
    %p352 = por %p350, %p351
    %s354 = sadd.s32 %s353, 1
    %p357 = scmp.eq.s32.totalorder %s28, 5
    %p358 = scmp.ne.s32.totalorder %s353, %s355
    %p359 = scmp.eq.s32.totalorder %s28, 0
    %p360 = por %p358, %p359
    %p361 = scmp.ne.s32.totalorder %s353, %s355
    %p362 = scmp.eq.s32.totalorder %s33, 5
    %p363 = por %p361, %p362
    %p364 = scmp.ne.s32.totalorder %s355, %s356
    %p365 = scmp.eq.s32.totalorder %s33, 0
    %p366 = por %p364, %p365
    %p367 = scmp.ne.s32.totalorder %s355, %s356
    %p368 = scmp.eq.s32.totalorder %s34, 5
    %p369 = por %p367, %p368
    %p371 = scmp.ne.s32.totalorder %s356, %s370
    %p372 = scmp.eq.s32.totalorder %s34, 0
    %p373 = por %p371, %p372
    %s375 = sadd.s32 %s374, 1
    %p378 = scmp.eq.s32.totalorder %s28, 5
    %p379 = scmp.ne.s32.totalorder %s374, %s376
    %p380 = scmp.eq.s32.totalorder %s28, 0
    %p381 = por %p379, %p380
    %p382 = scmp.ne.s32.totalorder %s374, %s376
    %p383 = scmp.eq.s32.totalorder %s33, 5
    %p384 = por %p382, %p383
    %p385 = scmp.ne.s32.totalorder %s376, %s377
    %p386 = scmp.eq.s32.totalorder %s33, 0
    %p387 = por %p385, %p386
    %p388 = scmp.ne.s32.totalorder %s376, %s377
    %p389 = scmp.eq.s32.totalorder %s34, 5
    %p390 = por %p388, %p389
    %p392 = scmp.ne.s32.totalorder %s377, %s391
    %p393 = scmp.eq.s32.totalorder %s34, 0
    %p394 = por %p392, %p393
    %s396 = sadd.s32 %s395, 1
    %p399 = scmp.eq.s32.totalorder %s28, 5
    %p400 = scmp.ne.s32.totalorder %s395, %s397
    %p401 = scmp.eq.s32.totalorder %s28, 0
    %p402 = por %p400, %p401
    %p403 = scmp.ne.s32.totalorder %s395, %s397
    %p404 = scmp.eq.s32.totalorder %s33, 5
    %p405 = por %p403, %p404
    %p406 = scmp.ne.s32.totalorder %s397, %s398
    %p407 = scmp.eq.s32.totalorder %s33, 0
    %p408 = por %p406, %p407
    %p409 = scmp.ne.s32.totalorder %s397, %s398
    %p410 = scmp.eq.s32.totalorder %s34, 5
    %p411 = por %p409, %p410
    %p413 = scmp.ne.s32.totalorder %s398, %s412
    %p414 = scmp.eq.s32.totalorder %s34, 0
    %p415 = por %p413, %p414
    %s417 = sadd.s32 %s416, 1
    %p420 = scmp.eq.s32.totalorder %s28, 5
    %p421 = scmp.ne.s32.totalorder %s416, %s418
    %p422 = scmp.eq.s32.totalorder %s28, 0
    %p423 = por %p421, %p422
    %p424 = scmp.ne.s32.totalorder %s416, %s418
    %p425 = scmp.eq.s32.totalorder %s33, 5
    %p426 = por %p424, %p425
    %p427 = scmp.ne.s32.totalorder %s418, %s419
    %p428 = scmp.eq.s32.totalorder %s33, 0
    %p429 = por %p427, %p428
    %p430 = scmp.ne.s32.totalorder %s418, %s419
    %p431 = scmp.eq.s32.totalorder %s34, 5
    %p432 = por %p430, %p431
    %p434 = scmp.ne.s32.totalorder %s419, %s433
    %p435 = scmp.eq.s32.totalorder %s34, 0
    %p436 = por %p434, %p435
    %s438 = sadd.s32 %s437, 1
    %p441 = scmp.eq.s32.totalorder %s28, 5
    %p442 = scmp.ne.s32.totalorder %s437, %s439
    %p443 = scmp.eq.s32.totalorder %s28, 0
    %p444 = por %p442, %p443
    %p445 = scmp.ne.s32.totalorder %s437, %s439
    %p446 = scmp.eq.s32.totalorder %s33, 5
    %p447 = por %p445, %p446
    %p448 = scmp.ne.s32.totalorder %s439, %s440
    %p449 = scmp.eq.s32.totalorder %s33, 0
    %p450 = por %p448, %p449
    %p451 = scmp.ne.s32.totalorder %s439, %s440
    %p452 = scmp.eq.s32.totalorder %s34, 5
    %p453 = por %p451, %p452
    %p455 = scmp.ne.s32.totalorder %s440, %s454
    %p456 = scmp.eq.s32.totalorder %s34, 0
    %p457 = por %p455, %p456
    %s459 = sadd.s32 %s458, 1
    %p462 = scmp.eq.s32.totalorder %s28, 5
    %p463 = scmp.ne.s32.totalorder %s458, %s460
    %p464 = scmp.eq.s32.totalorder %s28, 0
    %p465 = por %p463, %p464
    %p466 = scmp.ne.s32.totalorder %s458, %s460
    %p467 = scmp.eq.s32.totalorder %s33, 5
    %p468 = por %p466, %p467
    %p469 = scmp.ne.s32.totalorder %s460, %s461
    %p470 = scmp.eq.s32.totalorder %s33, 0
    %p471 = por %p469, %p470
    %p472 = scmp.ne.s32.totalorder %s460, %s461
    %p473 = scmp.eq.s32.totalorder %s34, 5
    %p474 = por %p472, %p473
    %p476 = scmp.ne.s32.totalorder %s461, %s475
    %p477 = scmp.eq.s32.totalorder %s34, 0
    %p478 = por %p476, %p477
    %s480 = sadd.s32 %s479, 1
    %p483 = scmp.eq.s32.totalorder %s28, 5
    %p484 = scmp.ne.s32.totalorder %s479, %s481
    %p485 = scmp.eq.s32.totalorder %s28, 0
    %p486 = por %p484, %p485
    %p487 = scmp.ne.s32.totalorder %s479, %s481
    %p488 = scmp.eq.s32.totalorder %s33, 5
    %p489 = por %p487, %p488
    %p490 = scmp.ne.s32.totalorder %s481, %s482
    %p491 = scmp.eq.s32.totalorder %s33, 0
    %p492 = por %p490, %p491
    %p493 = scmp.ne.s32.totalorder %s481, %s482
    %p494 = scmp.eq.s32.totalorder %s34, 5
    %p495 = por %p493, %p494
    %p497 = scmp.ne.s32.totalorder %s482, %s496
    %p498 = scmp.eq.s32.totalorder %s34, 0
    %p499 = por %p497, %p498
    %s501 = sadd.s32 %s500, 1
    %p504 = scmp.eq.s32.totalorder %s28, 5
    %p505 = scmp.ne.s32.totalorder %s500, %s502
    %p506 = scmp.eq.s32.totalorder %s28, 0
    %p507 = por %p505, %p506
    %p508 = scmp.ne.s32.totalorder %s500, %s502
    %p509 = scmp.eq.s32.totalorder %s33, 5
    %p510 = por %p508, %p509
    %p511 = scmp.ne.s32.totalorder %s502, %s503
    %p512 = scmp.eq.s32.totalorder %s33, 0
    %p513 = por %p511, %p512
    %p514 = scmp.ne.s32.totalorder %s502, %s503
    %p515 = scmp.eq.s32.totalorder %s34, 5
    %p516 = por %p514, %p515
    %p518 = scmp.ne.s32.totalorder %s503, %s517
    %p519 = scmp.eq.s32.totalorder %s34, 0
    %p520 = por %p518, %p519
    %s522 = sadd.s32 %s521, 1
    %p525 = scmp.eq.s32.totalorder %s28, 5
    %p526 = scmp.ne.s32.totalorder %s521, %s523
    %p527 = scmp.eq.s32.totalorder %s28, 0
    %p528 = por %p526, %p527
    %p529 = scmp.ne.s32.totalorder %s521, %s523
    %p530 = scmp.eq.s32.totalorder %s33, 5
    %p531 = por %p529, %p530
    %p532 = scmp.ne.s32.totalorder %s523, %s524
    %p533 = scmp.eq.s32.totalorder %s33, 0
    %p534 = por %p532, %p533
    %p535 = scmp.ne.s32.totalorder %s523, %s524
    %p536 = scmp.eq.s32.totalorder %s34, 5
    %p537 = por %p535, %p536
    %p539 = scmp.ne.s32.totalorder %s524, %s538
    %p540 = scmp.eq.s32.totalorder %s34, 0
    %p541 = por %p539, %p540
    %s543 = sadd.s32 %s542, 1
    %p546 = scmp.eq.s32.totalorder %s28, 5
    %p547 = scmp.ne.s32.totalorder %s542, %s544
    %p548 = scmp.eq.s32.totalorder %s28, 0
    %p549 = por %p547, %p548
    %p550 = scmp.ne.s32.totalorder %s542, %s544
    %p551 = scmp.eq.s32.totalorder %s33, 5
    %p552 = por %p550, %p551
    %p553 = scmp.ne.s32.totalorder %s544, %s545
    %p554 = scmp.eq.s32.totalorder %s33, 0
    %p555 = por %p553, %p554
    %p556 = scmp.ne.s32.totalorder %s544, %s545
    %p557 = scmp.eq.s32.totalorder %s34, 5
    %p558 = por %p556, %p557
    %p560 = scmp.ne.s32.totalorder %s545, %s559
    %p561 = scmp.eq.s32.totalorder %s34, 0
    %p562 = por %p560, %p561
    %s564 = sadd.s32 %s563, 1
    %p567 = scmp.eq.s32.totalorder %s28, 5
    %p568 = scmp.ne.s32.totalorder %s563, %s565
    %p569 = scmp.eq.s32.totalorder %s28, 0
    %p570 = por %p568, %p569
    %p571 = scmp.ne.s32.totalorder %s563, %s565
    %p572 = scmp.eq.s32.totalorder %s33, 5
    %p573 = por %p571, %p572
    %p574 = scmp.ne.s32.totalorder %s565, %s566
    %p575 = scmp.eq.s32.totalorder %s33, 0
    %p576 = por %p574, %p575
    %p577 = scmp.ne.s32.totalorder %s565, %s566
    %p578 = scmp.eq.s32.totalorder %s34, 5
    %p579 = por %p577, %p578
    %p581 = scmp.ne.s32.totalorder %s566, %s580
    %p582 = scmp.eq.s32.totalorder %s34, 0
    %p583 = por %p581, %p582
    %s584 = ssub.s32 %s35, %s47
    %s585 = ssub.s32 %s36, %s43
    %s586 = sor.u32 %s584, %s585
    %p587 = scmp.eq.s32.totalorder %s586, 0
    %s589 = sadd.s32 %s588, 1
    %s590 = scalar_select %p587, %s588, %s589
    %p593 = pneg %p587
    %p594 = scmp.eq.s32.totalorder %s28, 5
    %p595 = por %p593, %p594
    %p596 = scmp.ne.s32.totalorder %s588, %s591
    %p597 = scmp.eq.s32.totalorder %s28, 0
    %p598 = por %p596, %p597
    %p599 = scmp.ne.s32.totalorder %s588, %s591
    %p600 = scmp.eq.s32.totalorder %s33, 5
    %p601 = por %p599, %p600
    %p602 = scmp.ne.s32.totalorder %s591, %s592
    %p603 = scmp.eq.s32.totalorder %s33, 0
    %p604 = por %p602, %p603
    %p605 = scmp.ne.s32.totalorder %s591, %s592
    %p606 = scmp.eq.s32.totalorder %s34, 5
    %p607 = por %p605, %p606
    %p609 = scmp.ne.s32.totalorder %s592, %s608
    %p610 = scmp.eq.s32.totalorder %s34, 0
    %p611 = por %p609, %p610
    %p612 = scmp.le.s32.totalorder 1, %s28
    %p613 = scmp.lt.s32.totalorder %s28, 7
    %p614 = pnand %p612, %p613
    %p615 = pneg %p614
    // Predicated region
    $region9: #{wide_flow_student_forward.5} parent=5 // pred_check
      _
    $region10: #{wide_flow_student_forward.5} parent=5 // pred_check_branch
      %617 = sbr.rel (%p614) target = $region12
    $region11: #{wide_flow_student_forward.5} parent=5 // pred_region
      %s618 = ssub.s32 %s28, 1
      // Predicated region
      $region13: #{wide_flow_student_forward.5} parent=11 // pred_check
        %p619 = pneg %p261
      $region14: #{wide_flow_student_forward.5} parent=11 // pred_check_branch
        %621 = sbr.rel (%p619) target = $region16
      $region15: #{wide_flow_student_forward.5} parent=11 // pred_region
        _
      $region16: #{wide_flow_student_forward.5} parent=11 // pred_fallthru
        _
      // Predicated region
      $region17: #{wide_flow_student_forward.5} parent=11 // pred_check
        %p622 = pneg %p282
      $region18: #{wide_flow_student_forward.5} parent=11 // pred_check_branch
        %624 = sbr.rel (%p622) target = $region20
      $region19: #{wide_flow_student_forward.5} parent=11 // pred_region
        _
      $region20: #{wide_flow_student_forward.5} parent=11 // pred_fallthru
        _
      // Predicated region
      $region21: #{wide_flow_student_forward.5} parent=11 // pred_check
        %p625 = pneg %p303
      $region22: #{wide_flow_student_forward.5} parent=11 // pred_check_branch
        %627 = sbr.rel (%p625) target = $region24
      $region23: #{wide_flow_student_forward.5} parent=11 // pred_region
        _
      $region24: #{wide_flow_student_forward.5} parent=11 // pred_fallthru
        _
      // Predicated region
      $region25: #{wide_flow_student_forward.5} parent=11 // pred_check
        %p628 = pneg %p324
      $region26: #{wide_flow_student_forward.5} parent=11 // pred_check_branch
        %630 = sbr.rel (%p628) target = $region28
      $region27: #{wide_flow_student_forward.5} parent=11 // pred_region
        _
      $region28: #{wide_flow_student_forward.5} parent=11 // pred_fallthru
        _
      // Predicated region
      $region29: #{wide_flow_student_forward.5} parent=11 // pred_check
        %p631 = pneg %p345
      $region30: #{wide_flow_student_forward.5} parent=11 // pred_check_branch
        %633 = sbr.rel (%p631) target = $region32
      $region31: #{wide_flow_student_forward.5} parent=11 // pred_region
        _
      $region32: #{wide_flow_student_forward.5} parent=11 // pred_fallthru
        _
      // Predicated region
      $region33: #{wide_flow_student_forward.5} parent=11 // pred_check
        %p634 = pneg %p366
      $region34: #{wide_flow_student_forward.5} parent=11 // pred_check_branch
        %636 = sbr.rel (%p634) target = $region36
      $region35: #{wide_flow_student_forward.5} parent=11 // pred_region
        _
      $region36: #{wide_flow_student_forward.5} parent=11 // pred_fallthru
        _
      // Predicated region
      $region37: #{wide_flow_student_forward.5} parent=11 // pred_check
        %p637 = pneg %p387
      $region38: #{wide_flow_student_forward.5} parent=11 // pred_check_branch
        %639 = sbr.rel (%p637) target = $region40
      $region39: #{wide_flow_student_forward.5} parent=11 // pred_region
        _
      $region40: #{wide_flow_student_forward.5} parent=11 // pred_fallthru
        _
      // Predicated region
      $region41: #{wide_flow_student_forward.5} parent=11 // pred_check
        %p640 = pneg %p408
      $region42: #{wide_flow_student_forward.5} parent=11 // pred_check_branch
        %642 = sbr.rel (%p640) target = $region44
      $region43: #{wide_flow_student_forward.5} parent=11 // pred_region
        _
      $region44: #{wide_flow_student_forward.5} parent=11 // pred_fallthru
        _
      // Predicated region
      $region45: #{wide_flow_student_forward.5} parent=11 // pred_check
        %p643 = pneg %p429
      $region46: #{wide_flow_student_forward.5} parent=11 // pred_check_branch
        %645 = sbr.rel (%p643) target = $region48
      $region47: #{wide_flow_student_forward.5} parent=11 // pred_region
        _
      $region48: #{wide_flow_student_forward.5} parent=11 // pred_fallthru
        _
      // Predicated region
      $region49: #{wide_flow_student_forward.5} parent=11 // pred_check
        %p646 = pneg %p450
      $region50: #{wide_flow_student_forward.5} parent=11 // pred_check_branch
        %648 = sbr.rel (%p646) target = $region52
      $region51: #{wide_flow_student_forward.5} parent=11 // pred_region
        _
      $region52: #{wide_flow_student_forward.5} parent=11 // pred_fallthru
        _
      // Predicated region
      $region53: #{wide_flow_student_forward.5} parent=11 // pred_check
        %p649 = pneg %p471
      $region54: #{wide_flow_student_forward.5} parent=11 // pred_check_branch
        %651 = sbr.rel (%p649) target = $region56
      $region55: #{wide_flow_student_forward.5} parent=11 // pred_region
        _
      $region56: #{wide_flow_student_forward.5} parent=11 // pred_fallthru
        _
      // Predicated region
      $region57: #{wide_flow_student_forward.5} parent=11 // pred_check
        %p652 = pneg %p492
      $region58: #{wide_flow_student_forward.5} parent=11 // pred_check_branch
        %654 = sbr.rel (%p652) target = $region60
      $region59: #{wide_flow_student_forward.5} parent=11 // pred_region
        _
      $region60: #{wide_flow_student_forward.5} parent=11 // pred_fallthru
        _
      // Predicated region
      $region61: #{wide_flow_student_forward.5} parent=11 // pred_check
        %p655 = pneg %p513
      $region62: #{wide_flow_student_forward.5} parent=11 // pred_check_branch
        %657 = sbr.rel (%p655) target = $region64
      $region63: #{wide_flow_student_forward.5} parent=11 // pred_region
        _
      $region64: #{wide_flow_student_forward.5} parent=11 // pred_fallthru
        _
      // Predicated region
      $region65: #{wide_flow_student_forward.5} parent=11 // pred_check
        %p658 = pneg %p534
      $region66: #{wide_flow_student_forward.5} parent=11 // pred_check_branch
        %660 = sbr.rel (%p658) target = $region68
      $region67: #{wide_flow_student_forward.5} parent=11 // pred_region
        _
      $region68: #{wide_flow_student_forward.5} parent=11 // pred_fallthru
        _
      // Predicated region
      $region69: #{wide_flow_student_forward.5} parent=11 // pred_check
        %p661 = pneg %p555
      $region70: #{wide_flow_student_forward.5} parent=11 // pred_check_branch
        %663 = sbr.rel (%p661) target = $region72
      $region71: #{wide_flow_student_forward.5} parent=11 // pred_region
        _
      $region72: #{wide_flow_student_forward.5} parent=11 // pred_fallthru
        _
      // Predicated region
      $region73: #{wide_flow_student_forward.5} parent=11 // pred_check
        %p664 = pneg %p576
      $region74: #{wide_flow_student_forward.5} parent=11 // pred_check_branch
        %666 = sbr.rel (%p664) target = $region76
      $region75: #{wide_flow_student_forward.5} parent=11 // pred_region
        _
      $region76: #{wide_flow_student_forward.5} parent=11 // pred_fallthru
        _
    $region12: #{wide_flow_student_forward.5} parent=5 // pred_fallthru
      _
    %p667 = scmp.lt.s32.totalorder %s28, 6
    // Predicated region
    $region77: #{wide_flow_student_forward.5} parent=5 // pred_check
      %p668 = pneg %p667
    $region78: #{wide_flow_student_forward.5} parent=5 // pred_check_branch
      %670 = sbr.rel (%p668) target = $region80
    $region79: #{wide_flow_student_forward.5} parent=5 // pred_region
      // Predicated region
      $region81: #{wide_flow_student_forward.5} parent=79 // pred_check
        %p671 = pneg %p70
      $region82: #{wide_flow_student_forward.5} parent=79 // pred_check_branch
        %673 = sbr.rel (%p671) target = $region84
      $region83: #{wide_flow_student_forward.5} parent=79 // pred_region
        %s674 = smul.u32 %s36, 2
        %s675 = ssub.s32 %s674, 1
        %p676 = scmp.gt.s32.totalorder %s675, 0
        %s677 = scalar_select %p676, %s675, 0
        %p678 = scmp.lt.s32.totalorder %s35, 1
        %s679 = scalar_select %p678, %s35, 1
        %p680 = scmp.lt.s32.totalorder %s677, 5
        %s681 = scalar_select %p680, %s677, 5
        %s682 = smul.addr %s679, 6
        %s683 = sadd.s32 %s681, %s682
        %s684 = smul.addr %s683, 8
        %s685 = scalar_lea.vmem %s0, %s684
        %s686 = smul.u32 %s36, 2
        %s687 = ssub.s32 %s686, 1
        %p688 = scmp.gt.s32.totalorder %s687, 0
        %s689 = scalar_select %p688, %s687, 0
      $region84: #{wide_flow_student_forward.5} parent=79 // pred_fallthru
        _
      // Predicated region
      $region85: #{wide_flow_student_forward.5} parent=79 // pred_check
        %p690 = pneg %p98
      $region86: #{wide_flow_student_forward.5} parent=79 // pred_check_branch
        %692 = sbr.rel (%p690) target = $region88
      $region87: #{wide_flow_student_forward.5} parent=79 // pred_region
        %s693 = smul.u32 2, %s36
        %p694 = scmp.lt.s32.totalorder %s35, 1
        %s695 = scalar_select %p694, %s35, 1
        %p696 = scmp.lt.s32.totalorder %s693, 5
        %s697 = scalar_select %p696, %s693, 5
        %s698 = smul.addr %s695, 6
        %s699 = sadd.s32 %s697, %s698
        %s700 = smul.addr %s699, 8
        %s701 = scalar_lea.vmem %s1, %s700
        %s702 = smul.u32 2, %s36
      $region88: #{wide_flow_student_forward.5} parent=79 // pred_fallthru
        _
      // Predicated region
      $region89: #{wide_flow_student_forward.5} parent=79 // pred_check
        %p703 = pneg %p134
      $region90: #{wide_flow_student_forward.5} parent=79 // pred_check_branch
        %705 = sbr.rel (%p703) target = $region92
      $region91: #{wide_flow_student_forward.5} parent=79 // pred_region
        %s706 = sadd.s32 %s36, 1
        %s707 = smul.u32 %s706, 2
        %p708 = scmp.lt.s32.totalorder %s707, 5
        %s709 = scalar_select %p708, %s707, 5
        %p710 = scmp.lt.s32.totalorder %s35, 1
        %s711 = scalar_select %p710, %s35, 1
        %p712 = scmp.lt.s32.totalorder %s709, 5
        %s713 = scalar_select %p712, %s709, 5
        %s714 = smul.addr %s711, 6
        %s715 = sadd.s32 %s713, %s714
        %s716 = smul.addr %s715, 8
        %s717 = scalar_lea.vmem %s2, %s716
        %s718 = sadd.s32 %s36, 1
        %s719 = smul.u32 %s718, 2
        %p720 = scmp.lt.s32.totalorder %s719, 5
        %s721 = scalar_select %p720, %s719, 5
      $region92: #{wide_flow_student_forward.5} parent=79 // pred_fallthru
        _
      // Predicated region
      $region93: #{wide_flow_student_forward.5} parent=79 // pred_check
        %p722 = pneg %p170
      $region94: #{wide_flow_student_forward.5} parent=79 // pred_check_branch
        %724 = sbr.rel (%p722) target = $region96
      $region95: #{wide_flow_student_forward.5} parent=79 // pred_region
        %s725 = smul.u32 %s36, 2
        %s726 = ssub.s32 %s725, 1
        %p727 = scmp.gt.s32.totalorder %s726, 0
        %s728 = scalar_select %p727, %s726, 0
        %p729 = scmp.lt.s32.totalorder %s35, 1
        %s730 = scalar_select %p729, %s35, 1
        %p731 = scmp.lt.s32.totalorder %s728, 5
        %s732 = scalar_select %p731, %s728, 5
        %s733 = smul.addr %s730, 6
        %s734 = sadd.s32 %s732, %s733
        %s735 = smul.addr %s734, 8
        %s736 = scalar_lea.vmem %s3, %s735
        %s737 = smul.u32 %s36, 2
        %s738 = ssub.s32 %s737, 1
        %p739 = scmp.gt.s32.totalorder %s738, 0
        %s740 = scalar_select %p739, %s738, 0
      $region96: #{wide_flow_student_forward.5} parent=79 // pred_fallthru
        _
      // Predicated region
      $region97: #{wide_flow_student_forward.5} parent=79 // pred_check
        %p741 = pneg %p198
      $region98: #{wide_flow_student_forward.5} parent=79 // pred_check_branch
        %743 = sbr.rel (%p741) target = $region100
      $region99: #{wide_flow_student_forward.5} parent=79 // pred_region
        %s744 = smul.u32 2, %s36
        %p745 = scmp.lt.s32.totalorder %s35, 1
        %s746 = scalar_select %p745, %s35, 1
        %p747 = scmp.lt.s32.totalorder %s744, 5
        %s748 = scalar_select %p747, %s744, 5
        %s749 = smul.addr %s746, 6
        %s750 = sadd.s32 %s748, %s749
        %s751 = smul.addr %s750, 8
        %s752 = scalar_lea.vmem %s4, %s751
        %s753 = smul.u32 2, %s36
      $region100: #{wide_flow_student_forward.5} parent=79 // pred_fallthru
        _
      // Predicated region
      $region101: #{wide_flow_student_forward.5} parent=79 // pred_check
        %p754 = pneg %p234
      $region102: #{wide_flow_student_forward.5} parent=79 // pred_check_branch
        %756 = sbr.rel (%p754) target = $region104
      $region103: #{wide_flow_student_forward.5} parent=79 // pred_region
        %s757 = sadd.s32 %s36, 1
        %s758 = smul.u32 %s757, 2
        %p759 = scmp.lt.s32.totalorder %s758, 5
        %s760 = scalar_select %p759, %s758, 5
        %p761 = scmp.lt.s32.totalorder %s35, 1
        %s762 = scalar_select %p761, %s35, 1
        %p763 = scmp.lt.s32.totalorder %s760, 5
        %s764 = scalar_select %p763, %s760, 5
        %s765 = smul.addr %s762, 6
        %s766 = sadd.s32 %s764, %s765
        %s767 = smul.addr %s766, 8
        %s768 = scalar_lea.vmem %s5, %s767
        %s769 = sadd.s32 %s36, 1
        %s770 = smul.u32 %s769, 2
        %p771 = scmp.lt.s32.totalorder %s770, 5
        %s772 = scalar_select %p771, %s770, 5
      $region104: #{wide_flow_student_forward.5} parent=79 // pred_fallthru
        _
    $region80: #{wide_flow_student_forward.5} parent=5 // pred_fallthru
      _
    %p773 = scmp.le.s32.totalorder 1, %s28
    %p774 = scmp.lt.s32.totalorder %s28, 7
    %p775 = pnand %p773, %p774
    %p776 = pneg %p775
    // Predicated region
    $region105: #{wide_flow_student_forward.5} parent=5 // pred_check
      _
    $region106: #{wide_flow_student_forward.5} parent=5 // pred_check_branch
      %778 = sbr.rel (%p775) target = $region108
    $region107: #{wide_flow_student_forward.5} parent=5 // pred_region
      %s779 = ssub.s32 %s28, 1
      %s780 = smul.u32 %s38, 2
      %s781 = ssub.s32 %s780, 1
      %p782 = scmp.gt.s32.totalorder %s781, 0
      %s783 = scalar_select %p782, %s781, 0
      %p784 = scmp.lt.s32.totalorder %s37, 1
      %s785 = scalar_select %p784, %s37, 1
      %p786 = scmp.lt.s32.totalorder %s783, 5
      %s787 = scalar_select %p786, %s783, 5
      %s788 = smul.addr %s785, 6
      %s789 = sadd.s32 %s787, %s788
      %s790 = smul.addr %s789, 8
      %s791 = scalar_lea.vmem %s0, %s790
      %p792 = pneg %p76
      %p793 = pneg %p73
      %s794 = smul.u32 2, %s38
      %p795 = scmp.lt.s32.totalorder %s37, 1
      %s796 = scalar_select %p795, %s37, 1
      %p797 = scmp.lt.s32.totalorder %s794, 5
      %s798 = scalar_select %p797, %s794, 5
      %s799 = smul.addr %s796, 6
      %s800 = sadd.s32 %s798, %s799
      %s801 = smul.addr %s800, 8
      %s802 = scalar_lea.vmem %s1, %s801
      %p803 = pneg %p104
      %p804 = pneg %p101
      %s805 = sadd.s32 %s38, 1
      %s806 = smul.u32 %s805, 2
      %p807 = scmp.lt.s32.totalorder %s806, 5
      %s808 = scalar_select %p807, %s806, 5
      %p809 = scmp.lt.s32.totalorder %s37, 1
      %s810 = scalar_select %p809, %s37, 1
      %p811 = scmp.lt.s32.totalorder %s808, 5
      %s812 = scalar_select %p811, %s808, 5
      %s813 = smul.addr %s810, 6
      %s814 = sadd.s32 %s812, %s813
      %s815 = smul.addr %s814, 8
      %s816 = scalar_lea.vmem %s2, %s815
      %p817 = pneg %p140
      %p818 = pneg %p137
      %s819 = smul.u32 %s38, 2
      %s820 = ssub.s32 %s819, 1
      %p821 = scmp.gt.s32.totalorder %s820, 0
      %s822 = scalar_select %p821, %s820, 0
      %p823 = scmp.lt.s32.totalorder %s37, 1
      %s824 = scalar_select %p823, %s37, 1
      %p825 = scmp.lt.s32.totalorder %s822, 5
      %s826 = scalar_select %p825, %s822, 5
      %s827 = smul.addr %s824, 6
      %s828 = sadd.s32 %s826, %s827
      %s829 = smul.addr %s828, 8
      %s830 = scalar_lea.vmem %s3, %s829
      %p831 = pneg %p176
      %p832 = pneg %p173
      %s833 = smul.u32 2, %s38
      %p834 = scmp.lt.s32.totalorder %s37, 1
      %s835 = scalar_select %p834, %s37, 1
      %p836 = scmp.lt.s32.totalorder %s833, 5
      %s837 = scalar_select %p836, %s833, 5
      %s838 = smul.addr %s835, 6
      %s839 = sadd.s32 %s837, %s838
      %s840 = smul.addr %s839, 8
      %s841 = scalar_lea.vmem %s4, %s840
      %p842 = pneg %p204
      %p843 = pneg %p201
      %s844 = sadd.s32 %s38, 1
      %s845 = smul.u32 %s844, 2
      %p846 = scmp.lt.s32.totalorder %s845, 5
      %s847 = scalar_select %p846, %s845, 5
      %p848 = scmp.lt.s32.totalorder %s37, 1
      %s849 = scalar_select %p848, %s37, 1
      %p850 = scmp.lt.s32.totalorder %s847, 5
      %s851 = scalar_select %p850, %s847, 5
      %s852 = smul.addr %s849, 6
      %s853 = sadd.s32 %s851, %s852
      %s854 = smul.addr %s853, 8
      %s855 = scalar_lea.vmem %s5, %s854
      %p856 = pneg %p240
      %p857 = pneg %p237
      %p858 = pneg %p261
      %p859 = pneg %p258
      %p860 = pneg %p282
      %p861 = pneg %p279
      %p862 = pneg %p303
      %p863 = pneg %p300
      %p864 = pneg %p324
      %p865 = pneg %p321
      %p866 = pneg %p345
      %p867 = pneg %p342
      %p868 = pneg %p366
      %p869 = pneg %p363
      %p870 = pneg %p387
      %p871 = pneg %p384
      %p872 = pneg %p408
      %p873 = pneg %p405
      %p874 = pneg %p429
      %p875 = pneg %p426
      %p876 = pneg %p450
      %p877 = pneg %p447
      %p878 = pneg %p471
      %p879 = pneg %p468
      %p880 = pneg %p492
      %p881 = pneg %p489
      %p882 = pneg %p513
      %p883 = pneg %p510
      %p884 = pneg %p534
      %p885 = pneg %p531
      %p886 = pneg %p555
      %p887 = pneg %p552
      %p888 = pneg %p576
      %p889 = pneg %p573
      %p890 = pneg %p604
      %p891 = pneg %p601
      %s892 = smul.u32 2, %s38
      %p893 = scmp.lt.s32.totalorder %s37, 1
      %s894 = scalar_select %p893, %s37, 1
      %p895 = scmp.lt.s32.totalorder %s892, 5
      %s896 = scalar_select %p895, %s892, 5
      %s897 = smul.addr %s894, 6
      %s898 = sadd.s32 %s896, %s897
      %s899 = smul.addr %s898, 8
      %s900 = scalar_lea.vmem %s22, %s899
      %s901 = smul.u32 %s38, 2
      %s902 = ssub.s32 %s901, 1
      %p903 = scmp.gt.s32.totalorder %s902, 0
      %s904 = scalar_select %p903, %s902, 0
      %p905 = scmp.lt.s32.totalorder %s37, 1
      %s906 = scalar_select %p905, %s37, 1
      %p907 = scmp.lt.s32.totalorder %s904, 5
      %s908 = scalar_select %p907, %s904, 5
      %s909 = smul.addr %s906, 6
      %s910 = sadd.s32 %s908, %s909
      %s911 = smul.addr %s910, 8
      %s912 = scalar_lea.vmem %s0, %s911
      %s913 = smul.u32 %s38, 2
      %s914 = ssub.s32 %s913, 1
      %p915 = scmp.gt.s32.totalorder %s914, 0
      %s916 = scalar_select %p915, %s914, 0
      %s917 = smul.u32 2, %s38
      %p918 = scmp.lt.s32.totalorder %s37, 1
      %s919 = scalar_select %p918, %s37, 1
      %p920 = scmp.lt.s32.totalorder %s917, 5
      %s921 = scalar_select %p920, %s917, 5
      %s922 = smul.addr %s919, 6
      %s923 = sadd.s32 %s921, %s922
      %s924 = smul.addr %s923, 8
      %s925 = scalar_lea.vmem %s1, %s924
      %s926 = smul.u32 2, %s38
      %s927 = sadd.s32 %s38, 1
      %s928 = smul.u32 %s927, 2
      %p929 = scmp.lt.s32.totalorder %s928, 5
      %s930 = scalar_select %p929, %s928, 5
      %p931 = scmp.lt.s32.totalorder %s37, 1
      %s932 = scalar_select %p931, %s37, 1
      %p933 = scmp.lt.s32.totalorder %s930, 5
      %s934 = scalar_select %p933, %s930, 5
      %s935 = smul.addr %s932, 6
      %s936 = sadd.s32 %s934, %s935
      %s937 = smul.addr %s936, 8
      %s938 = scalar_lea.vmem %s2, %s937
      %s939 = sadd.s32 %s38, 1
      %s940 = smul.u32 %s939, 2
      %p941 = scmp.lt.s32.totalorder %s940, 5
      %s942 = scalar_select %p941, %s940, 5
      %s943 = smul.u32 %s38, 2
      %s944 = ssub.s32 %s943, 1
      %p945 = scmp.gt.s32.totalorder %s944, 0
      %s946 = scalar_select %p945, %s944, 0
      %p947 = scmp.lt.s32.totalorder %s37, 1
      %s948 = scalar_select %p947, %s37, 1
      %p949 = scmp.lt.s32.totalorder %s946, 5
      %s950 = scalar_select %p949, %s946, 5
      %s951 = smul.addr %s948, 6
      %s952 = sadd.s32 %s950, %s951
      %s953 = smul.addr %s952, 8
      %s954 = scalar_lea.vmem %s3, %s953
      %s955 = smul.u32 %s38, 2
      %s956 = ssub.s32 %s955, 1
      %p957 = scmp.gt.s32.totalorder %s956, 0
      %s958 = scalar_select %p957, %s956, 0
      %s959 = smul.u32 2, %s38
      %p960 = scmp.lt.s32.totalorder %s37, 1
      %s961 = scalar_select %p960, %s37, 1
      %p962 = scmp.lt.s32.totalorder %s959, 5
      %s963 = scalar_select %p962, %s959, 5
      %s964 = smul.addr %s961, 6
      %s965 = sadd.s32 %s963, %s964
      %s966 = smul.addr %s965, 8
      %s967 = scalar_lea.vmem %s4, %s966
      %s968 = smul.u32 2, %s38
      %s969 = sadd.s32 %s38, 1
      %s970 = smul.u32 %s969, 2
      %p971 = scmp.lt.s32.totalorder %s970, 5
      %s972 = scalar_select %p971, %s970, 5
      %p973 = scmp.lt.s32.totalorder %s37, 1
      %s974 = scalar_select %p973, %s37, 1
      %p975 = scmp.lt.s32.totalorder %s972, 5
      %s976 = scalar_select %p975, %s972, 5
      %s977 = smul.addr %s974, 6
      %s978 = sadd.s32 %s976, %s977
      %s979 = smul.addr %s978, 8
      %s980 = scalar_lea.vmem %s5, %s979
      %s981 = sadd.s32 %s38, 1
      %s982 = smul.u32 %s981, 2
      %p983 = scmp.lt.s32.totalorder %s982, 5
      %s984 = scalar_select %p983, %s982, 5
      %s985 = smul.u32 2, %s38
      %p986 = scmp.lt.s32.totalorder %s37, 1
      %s987 = scalar_select %p986, %s37, 1
      %p988 = scmp.lt.s32.totalorder %s985, 5
      %s989 = scalar_select %p988, %s985, 5
      %s990 = smul.addr %s987, 6
      %s991 = sadd.s32 %s989, %s990
      %s992 = smul.addr %s991, 8
      %s993 = scalar_lea.vmem %s22, %s992
      %s994 = smul.u32 2, %s38
      %s996 = smul.u32 %s38, 16
      %s997 = ssub.s32 %s996, 8
      %v998 = vld [vmem:[%s912] sm:$0xff]
      %v999 = vld [vmem:[%s925] sm:$0xff]
      %v1000 = vld [vmem:[%s925 + $0x8] sm:$0xff]
      %v1001 = vld [vmem:[%s938] sm:$0xff]
      %v1002 = vld [vmem:[%s954] sm:$0xff]
      %v1003 = vld [vmem:[%s967] sm:$0xff]
      %v1004 = vld [vmem:[%s967 + $0x8] sm:$0xff]
      %v1005 = vld [vmem:[%s980] sm:$0xff]
      %v1006 = vpack.c.bf16 %v1003, %v1002
      %v1007 = vpack.c.bf16 %v1005, %v1004
      %v1008 = vlaneseq
      %v1009 = vshrl.u32 %v1008, 7
      %v1010 = vadd.s32 %v1009, 8
      %v1011 = vadd.s32 %v1009, 16
      %v1012 = vadd.s32 %v1009, 24
      %v1013 = vstv %s997
      %v1014 = vadd.s32 %v1009, %v1013
      %v1015 = vadd.s32 %v1010, %v1013
      %v1016 = vadd.s32 %v1011, %v1013
      %v1017 = vadd.s32 %v1012, %v1013
      %v1018 = vpack.c.bf16 %v999, %v998
      %v1019 = vpack.c.bf16 %v1001, %v1000
      %v1020 = vld [vmem:[%s6] sm:$0xf]
      %v1021 = vld [vmem:[%s6 + $0x4] sm:$0xf]
      %v1022 = vld [vmem:[%s7] sm:$0x1]
      %v1024 = vlaneseq
      %v1025 = vshrl.u32 %v1024, 7
      %v1026 = vsub.s32 0, %v1025
      %v1027 = vrot.slane %v1022, %v1026
      %v1031 = vunpack.c.l.b16 %v1020
      %v1032 = vunpack.c.l.b16 %v1021
      %v1033 = vpack.c.b16 %v1032, %v1031
      %vm1035 = vcmask 130048
      %v1037 = vsel %vm1035, %v1018, 0
      %v1040 = vsel %vm1035, %v1019, 0
      %1042 = vmatprep.subr.bf16.mxu0 0
      %1043 = vmatpush1.bf16.msra.mxu0 %v1033
      %1044 = vmatprep.subr.bf16.mxu0 0
      %1045 = vmatpush1.bf16.msra.mxu0 0
      %1046 = vmatprep.subr.bf16.mxu0 0
      %1047 = vmatpush1.bf16.msra.mxu0 0
      %1048 = vmatprep.subr.bf16.mxu0 0
      %1049 = vmatpush1.bf16.msra.mxu0 0
      %1050 = vmatprep.subr.bf16.mxu0 0
      %1051 = vmatpush1.bf16.msra.mxu0 0
      %1052 = vmatprep.subr.bf16.mxu0 0
      %1053 = vmatpush1.bf16.msra.mxu0 0
      %1054 = vmatprep.subr.bf16.mxu0 0
      %1055 = vmatpush1.bf16.msra.mxu0 0
      %1056 = vmatprep.subr.bf16.mxu0 0
      %1057 = vmatpush1.bf16.msra.mxu0 0
      %1058 = vmatprep.subr.bf16.mxu0 0
      %1059 = vmatpush1.bf16.msra.mxu0 0
      %1060 = vmatprep.subr.bf16.mxu0 0
      %1061 = vmatpush1.bf16.msra.mxu0 0
      %1062 = vmatprep.subr.bf16.mxu0 0
      %1063 = vmatpush1.bf16.msra.mxu0 0
      %1064 = vmatprep.subr.bf16.mxu0 0
      %1065 = vmatpush1.bf16.msra.mxu0 0
      %1066 = vmatprep.subr.bf16.mxu0 0
      %1067 = vmatpush1.bf16.msra.mxu0 0
      %1068 = vmatprep.subr.bf16.mxu0 0
      %1069 = vmatpush1.bf16.msra.mxu0 0
      %1070 = vmatprep.subr.bf16.mxu0 0
      %1071 = vmatpush1.bf16.msra.mxu0 0
      %1072 = vmatprep.subr.bf16.mxu0 0
      %1073 = vmatpush1.bf16.msra.mxu0 0
      %1074 = vmatprep.mubr.bf16.mxu0 0
      %1075 = vmatmul.mubr.bf16.gmra.mrb[0].mxu0 %v1037
      %v1076 = vpop.f32.mrb[0].mxu0
      %v1077 = vadd.f32 %v1027, %v1076
      %v1078 = vpop.f32.mrb[0].mxu0
      %v1079 = vpop.f32.mrb[0].mxu0
      %v1080 = vadd.f32 %v1027, %v1079
      %v1081 = vpop.f32.mrb[0].mxu0
      %1082 = vmatprep.mubr.bf16.mxu0 0
      %1083 = vmatmul.mubr.bf16.gmra.mrb[0].mxu0 %v1040
      %v1084 = vpop.f32.mrb[0].mxu0
      %v1085 = vadd.f32 %v1027, %v1084
      %v1086 = vpop.f32.mrb[0].mxu0
      %v1087 = vpop.f32.mrb[0].mxu0
      %v1088 = vadd.f32 %v1027, %v1087
      %v1089 = vpop.f32.mrb[0].mxu0
      %1090 = vdwg.mxu0
      %vm1091 = vcmp.ge.s32.totalorder %v1014, 1
      %vm1092 = vcmp.ge.s32.totalorder %v1015, 1
      %vm1093 = vcmp.ge.s32.totalorder %v1016, 1
      %vm1094 = vcmp.ge.s32.totalorder %v1017, 1
      %v1096 = vrot.slane %v1088, 7
      %vm1101 = vcmask 1040384
      %v1102 = vrot.slane %v1077, 7
      %v1103 = vrot.slane %v1080, 7
      %v1104 = vsel %vm1101, %v1102, %v1103
      %v1105 = vrot.slane %v1085, 7
      %v1106 = vsel %vm1101, %v1103, %v1105
      %v1107 = vsel %vm1101, %v1105, %v1096
      %v1112 = vsel %vm1101, %v1096, %v1102
      %v1113 = vsel %vm1091, 1, 0
      %v1114 = vsel %vm1092, 1, 0
      %v1115 = vsel %vm1093, 1, 0
      %v1116 = vsel %vm1094, 1, 0
      %vm1117 = vcmp.eq.s32.totalorder %v1113, 1
      %vm1118 = vcmp.eq.s32.totalorder %v1114, 1
      %vm1119 = vcmp.eq.s32.totalorder %v1115, 1
      %vm1120 = vcmp.eq.s32.totalorder %v1116, 1
      %v1121 = vsel %vm1117, %v1112, 0.0
      %v1122 = vsel %vm1118, %v1104, 0.0
      %v1123 = vsel %vm1119, %v1106, 0.0
      %v1124 = vsel %vm1120, %v1107, 0.0
      %v1125 = vpack.c.bf16 %v1122, %v1121
      %v1126 = vpack.c.bf16 %v1124, %v1123
      %vm1127 = vcmp.lt.s32.totalorder %v1014, 39
      %vm1128 = vcmp.lt.s32.totalorder %v1015, 39
      %vm1129 = vcmp.lt.s32.totalorder %v1016, 39
      %vm1130 = vcmp.lt.s32.totalorder %v1017, 39
      %vm1131 = vcmask 1046528
      %v1132 = vrot.slane %v1077, 1
      %v1133 = vrot.slane %v1080, 1
      %v1134 = vsel %vm1131, %v1132, %v1133
      %v1135 = vrot.slane %v1085, 1
      %v1136 = vsel %vm1131, %v1133, %v1135
      %v1137 = vrot.slane %v1088, 1
      %v1138 = vsel %vm1131, %v1135, %v1137
      %v1144 = vsel %vm1131, %v1137, %v1132
      %v1145 = vsel %vm1127, 1, 0
      %v1146 = vsel %vm1128, 1, 0
      %v1147 = vsel %vm1129, 1, 0
      %v1148 = vsel %vm1130, 1, 0
      %vm1149 = vcmp.eq.s32.totalorder %v1145, 1
      %vm1150 = vcmp.eq.s32.totalorder %v1146, 1
      %vm1151 = vcmp.eq.s32.totalorder %v1147, 1
      %vm1152 = vcmp.eq.s32.totalorder %v1148, 1
      %v1153 = vsel %vm1149, %v1134, 0.0
      %v1154 = vsel %vm1150, %v1136, 0.0
      %v1155 = vsel %vm1151, %v1138, 0.0
      %v1156 = vsel %vm1152, %v1144, 0.0
      %v1157 = vpack.c.bf16 %v1154, %v1153
      %v1158 = vpack.c.bf16 %v1156, %v1155
      %v1159 = vld [vmem:[%s8] sm:$0xf]
      %v1160 = vld [vmem:[%s8 + $0x4] sm:$0xf]
      %v1161 = vpack.c.bf16 %v1080, %v1077
      %v1162 = vpack.c.bf16 %v1088, %v1085
      %v1163 = vld [vmem:[%s9] sm:$0xf]
      %v1164 = vld [vmem:[%s9 + $0x4] sm:$0xf]
      %v1167 = vunpack.c.l.b16 %v1163
      %v1168 = vunpack.c.l.b16 %v1164
      %v1169 = vpack.c.b16 %v1168, %v1167
      %v1172 = vsel %vm1035, %v1161, 0
      %v1175 = vsel %vm1035, %v1162, 0
      %1177 = vmatprep.subr.bf16.mxu0 0
      %1178 = vmatpush1.bf16.msra.mxu0 %v1169
      %1179 = vmatprep.subr.bf16.mxu0 0
      %1180 = vmatpush1.bf16.msra.mxu0 0
      %1181 = vmatprep.subr.bf16.mxu0 0
      %1182 = vmatpush1.bf16.msra.mxu0 0
      %1183 = vmatprep.subr.bf16.mxu0 0
      %1184 = vmatpush1.bf16.msra.mxu0 0
      %1185 = vmatprep.subr.bf16.mxu0 0
      %1186 = vmatpush1.bf16.msra.mxu0 0
      %1187 = vmatprep.subr.bf16.mxu0 0
      %1188 = vmatpush1.bf16.msra.mxu0 0
      %1189 = vmatprep.subr.bf16.mxu0 0
      %1190 = vmatpush1.bf16.msra.mxu0 0
      %1191 = vmatprep.subr.bf16.mxu0 0
      %1192 = vmatpush1.bf16.msra.mxu0 0
      %1193 = vmatprep.subr.bf16.mxu0 0
      %1194 = vmatpush1.bf16.msra.mxu0 0
      %1195 = vmatprep.subr.bf16.mxu0 0
      %1196 = vmatpush1.bf16.msra.mxu0 0
      %1197 = vmatprep.subr.bf16.mxu0 0
      %1198 = vmatpush1.bf16.msra.mxu0 0
      %1199 = vmatprep.subr.bf16.mxu0 0
      %1200 = vmatpush1.bf16.msra.mxu0 0
      %1201 = vmatprep.subr.bf16.mxu0 0
      %1202 = vmatpush1.bf16.msra.mxu0 0
      %1203 = vmatprep.subr.bf16.mxu0 0
      %1204 = vmatpush1.bf16.msra.mxu0 0
      %1205 = vmatprep.subr.bf16.mxu0 0
      %1206 = vmatpush1.bf16.msra.mxu0 0
      %1207 = vmatprep.subr.bf16.mxu0 0
      %1208 = vmatpush1.bf16.msra.mxu0 0
      %1209 = vmatprep.mubr.bf16.mxu0 0
      %1210 = vmatmul.mubr.bf16.gmra.mrb[0].mxu0 %v1172
      %v1211 = vpop.f32.mrb[0].mxu0
      %v1212 = vadd.f32 0.0, %v1211
      %v1213 = vpop.f32.mrb[0].mxu0
      %v1214 = vpop.f32.mrb[0].mxu0
      %v1215 = vadd.f32 0.0, %v1214
      %v1216 = vpop.f32.mrb[0].mxu0
      %1217 = vmatprep.mubr.bf16.mxu0 0
      %1218 = vmatmul.mubr.bf16.gmra.mrb[0].mxu0 %v1175
      %v1219 = vpop.f32.mrb[0].mxu0
      %v1220 = vadd.f32 0.0, %v1219
      %v1221 = vpop.f32.mrb[0].mxu0
      %v1222 = vpop.f32.mrb[0].mxu0
      %v1223 = vadd.f32 0.0, %v1222
      %v1224 = vpop.f32.mrb[0].mxu0
      %1225 = vdwg.mxu0
      %v1228 = vunpack.c.l.b16 %v1159
      %v1229 = vunpack.c.l.b16 %v1160
      %v1230 = vpack.c.b16 %v1229, %v1228
      %v1233 = vsel %vm1035, %v1125, 0
      %v1236 = vsel %vm1035, %v1126, 0
      %1238 = vmatprep.subr.bf16.mxu0 0
      %1239 = vmatpush1.bf16.msra.mxu0 %v1230
      %1240 = vmatprep.subr.bf16.mxu0 0
      %1241 = vmatpush1.bf16.msra.mxu0 0
      %1242 = vmatprep.subr.bf16.mxu0 0
      %1243 = vmatpush1.bf16.msra.mxu0 0
      %1244 = vmatprep.subr.bf16.mxu0 0
      %1245 = vmatpush1.bf16.msra.mxu0 0
      %1246 = vmatprep.subr.bf16.mxu0 0
      %1247 = vmatpush1.bf16.msra.mxu0 0
      %1248 = vmatprep.subr.bf16.mxu0 0
      %1249 = vmatpush1.bf16.msra.mxu0 0
      %1250 = vmatprep.subr.bf16.mxu0 0
      %1251 = vmatpush1.bf16.msra.mxu0 0
      %1252 = vmatprep.subr.bf16.mxu0 0
      %1253 = vmatpush1.bf16.msra.mxu0 0
      %1254 = vmatprep.subr.bf16.mxu0 0
      %1255 = vmatpush1.bf16.msra.mxu0 0
      %1256 = vmatprep.subr.bf16.mxu0 0
      %1257 = vmatpush1.bf16.msra.mxu0 0
      %1258 = vmatprep.subr.bf16.mxu0 0
      %1259 = vmatpush1.bf16.msra.mxu0 0
      %1260 = vmatprep.subr.bf16.mxu0 0
      %1261 = vmatpush1.bf16.msra.mxu0 0
      %1262 = vmatprep.subr.bf16.mxu0 0
      %1263 = vmatpush1.bf16.msra.mxu0 0
      %1264 = vmatprep.subr.bf16.mxu0 0
      %1265 = vmatpush1.bf16.msra.mxu0 0
      %1266 = vmatprep.subr.bf16.mxu0 0
      %1267 = vmatpush1.bf16.msra.mxu0 0
      %1268 = vmatprep.subr.bf16.mxu0 0
      %1269 = vmatpush1.bf16.msra.mxu0 0
      %1270 = vmatprep.mubr.bf16.mxu0 0
      %1271 = vmatmul.mubr.bf16.gmra.mrb[0].mxu0 %v1233
      %v1272 = vpop.f32.mrb[0].mxu0
      %v1273 = vadd.f32 %v1212, %v1272
      %v1274 = vpop.f32.mrb[0].mxu0
      %v1275 = vpop.f32.mrb[0].mxu0
      %v1276 = vadd.f32 %v1215, %v1275
      %v1277 = vpop.f32.mrb[0].mxu0
      %1278 = vmatprep.mubr.bf16.mxu0 0
      %1279 = vmatmul.mubr.bf16.gmra.mrb[0].mxu0 %v1236
      %v1280 = vpop.f32.mrb[0].mxu0
      %v1281 = vadd.f32 %v1220, %v1280
      %v1282 = vpop.f32.mrb[0].mxu0
      %v1283 = vpop.f32.mrb[0].mxu0
      %v1284 = vadd.f32 %v1223, %v1283
      %v1285 = vpop.f32.mrb[0].mxu0
      %1286 = vdwg.mxu0
      %v1287 = vld [vmem:[%s10] sm:$0xf]
      %v1288 = vld [vmem:[%s10 + $0x4] sm:$0xf]
      %v1291 = vunpack.c.l.b16 %v1287
      %v1292 = vunpack.c.l.b16 %v1288
      %v1293 = vpack.c.b16 %v1292, %v1291
      %v1296 = vsel %vm1035, %v1157, 0
      %v1299 = vsel %vm1035, %v1158, 0
      %1301 = vmatprep.subr.bf16.mxu0 0
      %1302 = vmatpush1.bf16.msra.mxu0 %v1293
      %1303 = vmatprep.subr.bf16.mxu0 0
      %1304 = vmatpush1.bf16.msra.mxu0 0
      %1305 = vmatprep.subr.bf16.mxu0 0
      %1306 = vmatpush1.bf16.msra.mxu0 0
      %1307 = vmatprep.subr.bf16.mxu0 0
      %1308 = vmatpush1.bf16.msra.mxu0 0
      %1309 = vmatprep.subr.bf16.mxu0 0
      %1310 = vmatpush1.bf16.msra.mxu0 0
      %1311 = vmatprep.subr.bf16.mxu0 0
      %1312 = vmatpush1.bf16.msra.mxu0 0
      %1313 = vmatprep.subr.bf16.mxu0 0
      %1314 = vmatpush1.bf16.msra.mxu0 0
      %1315 = vmatprep.subr.bf16.mxu0 0
      %1316 = vmatpush1.bf16.msra.mxu0 0
      %1317 = vmatprep.subr.bf16.mxu0 0
      %1318 = vmatpush1.bf16.msra.mxu0 0
      %1319 = vmatprep.subr.bf16.mxu0 0
      %1320 = vmatpush1.bf16.msra.mxu0 0
      %1321 = vmatprep.subr.bf16.mxu0 0
      %1322 = vmatpush1.bf16.msra.mxu0 0
      %1323 = vmatprep.subr.bf16.mxu0 0
      %1324 = vmatpush1.bf16.msra.mxu0 0
      %1325 = vmatprep.subr.bf16.mxu0 0
      %1326 = vmatpush1.bf16.msra.mxu0 0
      %1327 = vmatprep.subr.bf16.mxu0 0
      %1328 = vmatpush1.bf16.msra.mxu0 0
      %1329 = vmatprep.subr.bf16.mxu0 0
      %1330 = vmatpush1.bf16.msra.mxu0 0
      %1331 = vmatprep.subr.bf16.mxu0 0
      %1332 = vmatpush1.bf16.msra.mxu0 0
      %1333 = vmatprep.mubr.bf16.mxu0 0
      %1334 = vmatmul.mubr.bf16.gmra.mrb[0].mxu0 %v1296
      %v1335 = vpop.f32.mrb[0].mxu0
      %v1336 = vadd.f32 0.0, %v1335
      %v1337 = vpop.f32.mrb[0].mxu0
      %v1338 = vpop.f32.mrb[0].mxu0
      %v1339 = vadd.f32 0.0, %v1338
      %v1340 = vpop.f32.mrb[0].mxu0
      %1341 = vmatprep.mubr.bf16.mxu0 0
      %1342 = vmatmul.mubr.bf16.gmra.mrb[0].mxu0 %v1299
      %v1343 = vpop.f32.mrb[0].mxu0
      %v1344 = vadd.f32 0.0, %v1343
      %v1345 = vpop.f32.mrb[0].mxu0
      %v1346 = vpop.f32.mrb[0].mxu0
      %v1347 = vadd.f32 0.0, %v1346
      %v1348 = vpop.f32.mrb[0].mxu0
      %1349 = vdwg.mxu0
      %v1350 = vadd.f32 %v1273, %v1336
      %v1351 = vadd.f32 %v1276, %v1339
      %v1352 = vadd.f32 %v1281, %v1344
      %v1353 = vadd.f32 %v1284, %v1347
      %v1354 = vld [vmem:[%s11] sm:$0xf]
      %vm1355 = vcmask 64512
      %v1357 = vsel %vm1355, %v1006, 0
      %v1360 = vsel %vm1355, %v1007, 0
      %vm1362 = vcmask 1043456
      %v1364 = vsel %vm1362, %v1354, 0
      %1366 = vmatprep.subr.bf16.mxu0 0
      %1367 = vmatpush1.bf16.msra.mxu0 %v1364
      %1368 = vmatprep.subr.bf16.mxu0 0
      %1369 = vmatpush1.bf16.msra.mxu0 0
      %1370 = vmatprep.subr.bf16.mxu0 0
      %1371 = vmatpush1.bf16.msra.mxu0 0
      %1372 = vmatprep.subr.bf16.mxu0 0
      %1373 = vmatpush1.bf16.msra.mxu0 0
      %1374 = vmatprep.subr.bf16.mxu0 0
      %1375 = vmatpush1.bf16.msra.mxu0 0
      %1376 = vmatprep.subr.bf16.mxu0 0
      %1377 = vmatpush1.bf16.msra.mxu0 0
      %1378 = vmatprep.subr.bf16.mxu0 0
      %1379 = vmatpush1.bf16.msra.mxu0 0
      %1380 = vmatprep.subr.bf16.mxu0 0
      %1381 = vmatpush1.bf16.msra.mxu0 0
      %1382 = vmatprep.subr.bf16.mxu0 0
      %1383 = vmatpush1.bf16.msra.mxu0 0
      %1384 = vmatprep.subr.bf16.mxu0 0
      %1385 = vmatpush1.bf16.msra.mxu0 0
      %1386 = vmatprep.subr.bf16.mxu0 0
      %1387 = vmatpush1.bf16.msra.mxu0 0
      %1388 = vmatprep.subr.bf16.mxu0 0
      %1389 = vmatpush1.bf16.msra.mxu0 0
      %1390 = vmatprep.subr.bf16.mxu0 0
      %1391 = vmatpush1.bf16.msra.mxu0 0
      %1392 = vmatprep.subr.bf16.mxu0 0
      %1393 = vmatpush1.bf16.msra.mxu0 0
      %1394 = vmatprep.subr.bf16.mxu0 0
      %1395 = vmatpush1.bf16.msra.mxu0 0
      %1396 = vmatprep.subr.bf16.mxu0 0
      %1397 = vmatpush1.bf16.msra.mxu0 0
      %1398 = vmatprep.mubr.bf16.mxu0 0
      %1399 = vmatmul.mubr.bf16.gmra.mrb[0].mxu0 %v1357
      %v1400 = vpop.f32.mrb[0].mxu0
      %v1401 = vadd.f32 0.0, %v1400
      %v1402 = vpop.f32.mrb[0].mxu0
      %v1403 = vpop.f32.mrb[0].mxu0
      %v1404 = vadd.f32 0.0, %v1403
      %v1405 = vpop.f32.mrb[0].mxu0
      %1406 = vmatprep.mubr.bf16.mxu0 0
      %1407 = vmatmul.mubr.bf16.gmra.mrb[0].mxu0 %v1360
      %v1408 = vpop.f32.mrb[0].mxu0
      %v1409 = vadd.f32 0.0, %v1408
      %v1410 = vpop.f32.mrb[0].mxu0
      %v1411 = vpop.f32.mrb[0].mxu0
      %v1412 = vadd.f32 0.0, %v1411
      %v1413 = vpop.f32.mrb[0].mxu0
      %1414 = vdwg.mxu0
      %v1415 = vadd.f32 %v1350, %v1401
      %v1416 = vadd.f32 %v1351, %v1404
      %v1417 = vadd.f32 %v1352, %v1409
      %v1418 = vadd.f32 %v1353, %v1412
      %v1419 = vld [vmem:[%s12] sm:$0x1]
      %v1421 = vlaneseq
      %v1422 = vshrl.u32 %v1421, 7
      %v1423 = vsub.s32 0, %v1422
      %v1424 = vrot.slane %v1419, %v1423
      %v1426 = vadd.f32 %v1415, %v1424
      %v1427 = vadd.f32 %v1416, %v1424
      %v1428 = vadd.f32 %v1417, %v1424
      %v1429 = vadd.f32 %v1418, %v1424
      %v1430 = vtanh.pop %v1426
      %v1431 = vtanh.pop %v1427
      %v1432 = vtanh.pop %v1428
      %v1433 = vtanh.pop %v1429
      %v1434 = vxor.u32 %v1426, 2147483648
      %v1435 = vxor.u32 %v1427, 2147483648
      %v1436 = vxor.u32 %v1428, 2147483648
      %v1437 = vxor.u32 %v1429, 2147483648
      %v1438 = vmul.f32 %v1434, 1.442695
      %v1439 = vpow.pop %v1438
      %v1440 = vmul.f32 %v1435, 1.442695
      %v1441 = vpow.pop %v1440
      %v1442 = vmul.f32 %v1436, 1.442695
      %v1443 = vpow.pop %v1442
      %v1444 = vmul.f32 %v1437, 1.442695
      %v1445 = vpow.pop %v1444
      %v1446 = vadd.f32 %v1439, 1.0
      %v1447 = vadd.f32 %v1441, 1.0
      %v1448 = vadd.f32 %v1443, 1.0
      %v1449 = vadd.f32 %v1445, 1.0
      %v1450 = vrcp.pop %v1446
      %v1451 = vmul.f32 1.0, %v1450
      %v1452 = vrcp.pop %v1447
      %v1453 = vmul.f32 1.0, %v1452
      %v1454 = vrcp.pop %v1448
      %v1455 = vmul.f32 1.0, %v1454
      %v1456 = vrcp.pop %v1449
      %v1457 = vmul.f32 1.0, %v1456
      %1462 = vrot.lane.b32.xlu0 %v1451, 112
      %v1463 = vpop.permute.xlu0 %1462
      %1464 = vrot.lane.b32.xlu0 %v1453, 112
      %v1465 = vpop.permute.xlu0 %1464
      %1466 = vrot.lane.b32.xlu0 %v1455, 112
      %v1467 = vpop.permute.xlu0 %1466
      %1468 = vrot.lane.b32.xlu0 %v1457, 112
      %v1469 = vpop.permute.xlu0 %1468
      %v1474 = vmul.f32 %v1430, %v1463
      %v1475 = vmul.f32 %v1431, %v1465
      %v1476 = vmul.f32 %v1432, %v1467
      %v1477 = vmul.f32 %v1433, %v1469
      %v1478 = vpack.c.bf16 %v1475, %v1474
      %v1479 = vpack.c.bf16 %v1477, %v1476
      %v1480 = vld [vmem:[%s13] sm:$0xf]
      %v1481 = vld [vmem:[%s13 + $0x4] sm:$0xf]
      %v1482 = vld [vmem:[%s14] sm:$0x1]
      %v1484 = vlaneseq
      %v1485 = vshrl.u32 %v1484, 7
      %v1486 = vsub.s32 0, %v1485
      %v1487 = vrot.slane %v1482, %v1486
      %v1491 = vunpack.c.l.b16 %v1480
      %v1492 = vunpack.c.l.b16 %v1481
      %v1493 = vpack.c.b16 %v1492, %v1491
      %v1496 = vsel %vm1035, %v1478, 0
      %v1499 = vsel %vm1035, %v1479, 0
      %1501 = vmatprep.subr.bf16.mxu0 0
      %1502 = vmatpush1.bf16.msra.mxu0 %v1493
      %1503 = vmatprep.subr.bf16.mxu0 0
      %1504 = vmatpush1.bf16.msra.mxu0 0
      %1505 = vmatprep.subr.bf16.mxu0 0
      %1506 = vmatpush1.bf16.msra.mxu0 0
      %1507 = vmatprep.subr.bf16.mxu0 0
      %1508 = vmatpush1.bf16.msra.mxu0 0
      %1509 = vmatprep.subr.bf16.mxu0 0
      %1510 = vmatpush1.bf16.msra.mxu0 0
      %1511 = vmatprep.subr.bf16.mxu0 0
      %1512 = vmatpush1.bf16.msra.mxu0 0
      %1513 = vmatprep.subr.bf16.mxu0 0
      %1514 = vmatpush1.bf16.msra.mxu0 0
      %1515 = vmatprep.subr.bf16.mxu0 0
      %1516 = vmatpush1.bf16.msra.mxu0 0
      %1517 = vmatprep.subr.bf16.mxu0 0
      %1518 = vmatpush1.bf16.msra.mxu0 0
      %1519 = vmatprep.subr.bf16.mxu0 0
      %1520 = vmatpush1.bf16.msra.mxu0 0
      %1521 = vmatprep.subr.bf16.mxu0 0
      %1522 = vmatpush1.bf16.msra.mxu0 0
      %1523 = vmatprep.subr.bf16.mxu0 0
      %1524 = vmatpush1.bf16.msra.mxu0 0
      %1525 = vmatprep.subr.bf16.mxu0 0
      %1526 = vmatpush1.bf16.msra.mxu0 0
      %1527 = vmatprep.subr.bf16.mxu0 0
      %1528 = vmatpush1.bf16.msra.mxu0 0
      %1529 = vmatprep.subr.bf16.mxu0 0
      %1530 = vmatpush1.bf16.msra.mxu0 0
      %1531 = vmatprep.subr.bf16.mxu0 0
      %1532 = vmatpush1.bf16.msra.mxu0 0
      %1533 = vmatprep.mubr.bf16.mxu0 0
      %1534 = vmatmul.mubr.bf16.gmra.mrb[0].mxu0 %v1496
      %v1535 = vpop.f32.mrb[0].mxu0
      %v1536 = vadd.f32 %v1487, %v1535
      %v1537 = vpop.f32.mrb[0].mxu0
      %v1538 = vpop.f32.mrb[0].mxu0
      %v1539 = vadd.f32 %v1487, %v1538
      %v1540 = vpop.f32.mrb[0].mxu0
      %1541 = vmatprep.mubr.bf16.mxu0 0
      %1542 = vmatmul.mubr.bf16.gmra.mrb[0].mxu0 %v1499
      %v1543 = vpop.f32.mrb[0].mxu0
      %v1544 = vadd.f32 %v1487, %v1543
      %v1545 = vpop.f32.mrb[0].mxu0
      %v1546 = vpop.f32.mrb[0].mxu0
      %v1547 = vadd.f32 %v1487, %v1546
      %v1548 = vpop.f32.mrb[0].mxu0
      %1549 = vdwg.mxu0
      %v1550 = vadd.f32 %v1077, %v1536
      %v1551 = vadd.f32 %v1080, %v1539
      %v1552 = vadd.f32 %v1085, %v1544
      %v1553 = vadd.f32 %v1088, %v1547
      %v1554 = vadd.f32 %v1539, 0.0
      %v1555 = vadd.f32 %v1544, 0.0
      %vm1556 = vcmp.ge.s32.totalorder %v1014, 2
      %vm1557 = vcmp.ge.s32.totalorder %v1015, 2
      %vm1558 = vcmp.ge.s32.totalorder %v1016, 2
      %vm1559 = vcmp.ge.s32.totalorder %v1017, 2
      %v1561 = vrot.slane %v1553, 6
      %vm1566 = vcmask 1041408
      %v1567 = vrot.slane %v1550, 6
      %v1568 = vrot.slane %v1551, 6
      %v1569 = vsel %vm1566, %v1567, %v1568
      %v1570 = vrot.slane %v1552, 6
      %v1571 = vsel %vm1566, %v1568, %v1570
      %v1572 = vsel %vm1566, %v1570, %v1561
      %v1577 = vsel %vm1566, %v1561, %v1567
      %v1578 = vsel %vm1556, 1, 0
      %v1579 = vsel %vm1557, 1, 0
      %v1580 = vsel %vm1558, 1, 0
      %v1581 = vsel %vm1559, 1, 0
      %vm1582 = vcmp.eq.s32.totalorder %v1578, 1
      %vm1583 = vcmp.eq.s32.totalorder %v1579, 1
      %vm1584 = vcmp.eq.s32.totalorder %v1580, 1
      %vm1585 = vcmp.eq.s32.totalorder %v1581, 1
      %v1586 = vsel %vm1582, %v1577, 0.0
      %v1587 = vsel %vm1583, %v1569, 0.0
      %v1588 = vsel %vm1584, %v1571, 0.0
      %v1589 = vsel %vm1585, %v1572, 0.0
      %v1590 = vpack.c.bf16 %v1587, %v1586
      %v1591 = vpack.c.bf16 %v1589, %v1588
      %vm1592 = vcmp.lt.s32.totalorder %v1014, 38
      %vm1593 = vcmp.lt.s32.totalorder %v1015, 38
      %vm1594 = vcmp.lt.s32.totalorder %v1016, 38
      %vm1595 = vcmp.lt.s32.totalorder %v1017, 38
      %vm1596 = vcmask 1045504
      %v1597 = vrot.slane %v1550, 2
      %v1598 = vrot.slane %v1551, 2
      %v1599 = vsel %vm1596, %v1597, %v1598
      %v1600 = vrot.slane %v1552, 2
      %v1601 = vsel %vm1596, %v1598, %v1600
      %v1602 = vrot.slane %v1553, 2
      %v1603 = vsel %vm1596, %v1600, %v1602
      %v1609 = vsel %vm1596, %v1602, %v1597
      %v1610 = vsel %vm1592, 1, 0
      %v1611 = vsel %vm1593, 1, 0
      %v1612 = vsel %vm1594, 1, 0
      %v1613 = vsel %vm1595, 1, 0
      %vm1614 = vcmp.eq.s32.totalorder %v1610, 1
      %vm1615 = vcmp.eq.s32.totalorder %v1611, 1
      %vm1616 = vcmp.eq.s32.totalorder %v1612, 1
      %vm1617 = vcmp.eq.s32.totalorder %v1613, 1
      %v1618 = vsel %vm1614, %v1599, 0.0
      %v1619 = vsel %vm1615, %v1601, 0.0
      %v1620 = vsel %vm1616, %v1603, 0.0
      %v1621 = vsel %vm1617, %v1609, 0.0
      %v1622 = vpack.c.bf16 %v1619, %v1618
      %v1623 = vpack.c.bf16 %v1621, %v1620
      %s1624 = scalar_lea.vmem %s8, 8
      %v1625 = vld [vmem:[%s1624] sm:$0xf]
      %v1626 = vld [vmem:[%s1624 + $0x4] sm:$0xf]
      %v1627 = vpack.c.bf16 %v1551, %v1550
      %v1628 = vpack.c.bf16 %v1553, %v1552
      %s1629 = scalar_lea.vmem %s9, 8
      %v1630 = vld [vmem:[%s1629] sm:$0xf]
      %v1631 = vld [vmem:[%s1629 + $0x4] sm:$0xf]
      %v1634 = vunpack.c.l.b16 %v1630
      %v1635 = vunpack.c.l.b16 %v1631
      %v1636 = vpack.c.b16 %v1635, %v1634
      %v1639 = vsel %vm1035, %v1627, 0
      %v1642 = vsel %vm1035, %v1628, 0
      %1644 = vmatprep.subr.bf16.mxu0 0
      %1645 = vmatpush1.bf16.msra.mxu0 %v1636
      %1646 = vmatprep.subr.bf16.mxu0 0
      %1647 = vmatpush1.bf16.msra.mxu0 0
      %1648 = vmatprep.subr.bf16.mxu0 0
      %1649 = vmatpush1.bf16.msra.mxu0 0
      %1650 = vmatprep.subr.bf16.mxu0 0
      %1651 = vmatpush1.bf16.msra.mxu0 0
      %1652 = vmatprep.subr.bf16.mxu0 0
      %1653 = vmatpush1.bf16.msra.mxu0 0
      %1654 = vmatprep.subr.bf16.mxu0 0
      %1655 = vmatpush1.bf16.msra.mxu0 0
      %1656 = vmatprep.subr.bf16.mxu0 0
      %1657 = vmatpush1.bf16.msra.mxu0 0
      %1658 = vmatprep.subr.bf16.mxu0 0
      %1659 = vmatpush1.bf16.msra.mxu0 0
      %1660 = vmatprep.subr.bf16.mxu0 0
      %1661 = vmatpush1.bf16.msra.mxu0 0
      %1662 = vmatprep.subr.bf16.mxu0 0
      %1663 = vmatpush1.bf16.msra.mxu0 0
      %1664 = vmatprep.subr.bf16.mxu0 0
      %1665 = vmatpush1.bf16.msra.mxu0 0
      %1666 = vmatprep.subr.bf16.mxu0 0
      %1667 = vmatpush1.bf16.msra.mxu0 0
      %1668 = vmatprep.subr.bf16.mxu0 0
      %1669 = vmatpush1.bf16.msra.mxu0 0
      %1670 = vmatprep.subr.bf16.mxu0 0
      %1671 = vmatpush1.bf16.msra.mxu0 0
      %1672 = vmatprep.subr.bf16.mxu0 0
      %1673 = vmatpush1.bf16.msra.mxu0 0
      %1674 = vmatprep.subr.bf16.mxu0 0
      %1675 = vmatpush1.bf16.msra.mxu0 0
      %1676 = vmatprep.mubr.bf16.mxu0 0
      %1677 = vmatmul.mubr.bf16.gmra.mrb[0].mxu0 %v1639
      %v1678 = vpop.f32.mrb[0].mxu0
      %v1679 = vadd.f32 0.0, %v1678
      %v1680 = vpop.f32.mrb[0].mxu0
      %v1681 = vpop.f32.mrb[0].mxu0
      %v1682 = vadd.f32 0.0, %v1681
      %v1683 = vpop.f32.mrb[0].mxu0
      %1684 = vmatprep.mubr.bf16.mxu0 0
      %1685 = vmatmul.mubr.bf16.gmra.mrb[0].mxu0 %v1642
      %v1686 = vpop.f32.mrb[0].mxu0
      %v1687 = vadd.f32 0.0, %v1686
      %v1688 = vpop.f32.mrb[0].mxu0
      %v1689 = vpop.f32.mrb[0].mxu0
      %v1690 = vadd.f32 0.0, %v1689
      %v1691 = vpop.f32.mrb[0].mxu0
      %1692 = vdwg.mxu0
      %v1695 = vunpack.c.l.b16 %v1625
      %v1696 = vunpack.c.l.b16 %v1626
      %v1697 = vpack.c.b16 %v1696, %v1695
      %v1700 = vsel %vm1035, %v1590, 0
      %v1703 = vsel %vm1035, %v1591, 0
      %1705 = vmatprep.subr.bf16.mxu0 0
      %1706 = vmatpush1.bf16.msra.mxu0 %v1697
      %1707 = vmatprep.subr.bf16.mxu0 0
      %1708 = vmatpush1.bf16.msra.mxu0 0
      %1709 = vmatprep.subr.bf16.mxu0 0
      %1710 = vmatpush1.bf16.msra.mxu0 0
      %1711 = vmatprep.subr.bf16.mxu0 0
      %1712 = vmatpush1.bf16.msra.mxu0 0
      %1713 = vmatprep.subr.bf16.mxu0 0
      %1714 = vmatpush1.bf16.msra.mxu0 0
      %1715 = vmatprep.subr.bf16.mxu0 0
      %1716 = vmatpush1.bf16.msra.mxu0 0
      %1717 = vmatprep.subr.bf16.mxu0 0
      %1718 = vmatpush1.bf16.msra.mxu0 0
      %1719 = vmatprep.subr.bf16.mxu0 0
      %1720 = vmatpush1.bf16.msra.mxu0 0
      %1721 = vmatprep.subr.bf16.mxu0 0
      %1722 = vmatpush1.bf16.msra.mxu0 0
      %1723 = vmatprep.subr.bf16.mxu0 0
      %1724 = vmatpush1.bf16.msra.mxu0 0
      %1725 = vmatprep.subr.bf16.mxu0 0
      %1726 = vmatpush1.bf16.msra.mxu0 0
      %1727 = vmatprep.subr.bf16.mxu0 0
      %1728 = vmatpush1.bf16.msra.mxu0 0
      %1729 = vmatprep.subr.bf16.mxu0 0
      %1730 = vmatpush1.bf16.msra.mxu0 0
      %1731 = vmatprep.subr.bf16.mxu0 0
      %1732 = vmatpush1.bf16.msra.mxu0 0
      %1733 = vmatprep.subr.bf16.mxu0 0
      %1734 = vmatpush1.bf16.msra.mxu0 0
      %1735 = vmatprep.subr.bf16.mxu0 0
      %1736 = vmatpush1.bf16.msra.mxu0 0
      %1737 = vmatprep.mubr.bf16.mxu0 0
      %1738 = vmatmul.mubr.bf16.gmra.mrb[0].mxu0 %v1700
      %v1739 = vpop.f32.mrb[0].mxu0
      %v1740 = vadd.f32 %v1679, %v1739
      %v1741 = vpop.f32.mrb[0].mxu0
      %v1742 = vpop.f32.mrb[0].mxu0
      %v1743 = vadd.f32 %v1682, %v1742
      %v1744 = vpop.f32.mrb[0].mxu0
      %1745 = vmatprep.mubr.bf16.mxu0 0
      %1746 = vmatmul.mubr.bf16.gmra.mrb[0].mxu0 %v1703
      %v1747 = vpop.f32.mrb[0].mxu0
      %v1748 = vadd.f32 %v1687, %v1747
      %v1749 = vpop.f32.mrb[0].mxu0
      %v1750 = vpop.f32.mrb[0].mxu0
      %v1751 = vadd.f32 %v1690, %v1750
      %v1752 = vpop.f32.mrb[0].mxu0
      %1753 = vdwg.mxu0
      %s1754 = scalar_lea.vmem %s10, 8
      %v1755 = vld [vmem:[%s1754] sm:$0xf]
      %v1756 = vld [vmem:[%s1754 + $0x4] sm:$0xf]
      %v1759 = vunpack.c.l.b16 %v1755
      %v1760 = vunpack.c.l.b16 %v1756
      %v1761 = vpack.c.b16 %v1760, %v1759
      %v1764 = vsel %vm1035, %v1622, 0
      %v1767 = vsel %vm1035, %v1623, 0
      %1769 = vmatprep.subr.bf16.mxu0 0
      %1770 = vmatpush1.bf16.msra.mxu0 %v1761
      %1771 = vmatprep.subr.bf16.mxu0 0
      %1772 = vmatpush1.bf16.msra.mxu0 0
      %1773 = vmatprep.subr.bf16.mxu0 0
      %1774 = vmatpush1.bf16.msra.mxu0 0
      %1775 = vmatprep.subr.bf16.mxu0 0
      %1776 = vmatpush1.bf16.msra.mxu0 0
      %1777 = vmatprep.subr.bf16.mxu0 0
      %1778 = vmatpush1.bf16.msra.mxu0 0
      %1779 = vmatprep.subr.bf16.mxu0 0
      %1780 = vmatpush1.bf16.msra.mxu0 0
      %1781 = vmatprep.subr.bf16.mxu0 0
      %1782 = vmatpush1.bf16.msra.mxu0 0
      %1783 = vmatprep.subr.bf16.mxu0 0
      %1784 = vmatpush1.bf16.msra.mxu0 0
      %1785 = vmatprep.subr.bf16.mxu0 0
      %1786 = vmatpush1.bf16.msra.mxu0 0
      %1787 = vmatprep.subr.bf16.mxu0 0
      %1788 = vmatpush1.bf16.msra.mxu0 0
      %1789 = vmatprep.subr.bf16.mxu0 0
      %1790 = vmatpush1.bf16.msra.mxu0 0
      %1791 = vmatprep.subr.bf16.mxu0 0
      %1792 = vmatpush1.bf16.msra.mxu0 0
      %1793 = vmatprep.subr.bf16.mxu0 0
      %1794 = vmatpush1.bf16.msra.mxu0 0
      %1795 = vmatprep.subr.bf16.mxu0 0
      %1796 = vmatpush1.bf16.msra.mxu0 0
      %1797 = vmatprep.subr.bf16.mxu0 0
      %1798 = vmatpush1.bf16.msra.mxu0 0
      %1799 = vmatprep.subr.bf16.mxu0 0
      %1800 = vmatpush1.bf16.msra.mxu0 0
      %1801 = vmatprep.mubr.bf16.mxu0 0
      %1802 = vmatmul.mubr.bf16.gmra.mrb[0].mxu0 %v1764
      %v1803 = vpop.f32.mrb[0].mxu0
      %v1804 = vadd.f32 0.0, %v1803
      %v1805 = vpop.f32.mrb[0].mxu0
      %v1806 = vpop.f32.mrb[0].mxu0
      %v1807 = vadd.f32 0.0, %v1806
      %v1808 = vpop.f32.mrb[0].mxu0
      %1809 = vmatprep.mubr.bf16.mxu0 0
      %1810 = vmatmul.mubr.bf16.gmra.mrb[0].mxu0 %v1767
      %v1811 = vpop.f32.mrb[0].mxu0
      %v1812 = vadd.f32 0.0, %v1811
      %v1813 = vpop.f32.mrb[0].mxu0
      %v1814 = vpop.f32.mrb[0].mxu0
      %v1815 = vadd.f32 0.0, %v1814
      %v1816 = vpop.f32.mrb[0].mxu0
      %1817 = vdwg.mxu0
      %v1818 = vadd.f32 %v1740, %v1804
      %v1819 = vadd.f32 %v1743, %v1807
      %v1820 = vadd.f32 %v1748, %v1812
      %v1821 = vadd.f32 %v1751, %v1815
      %s1822 = scalar_lea.vmem %s11, 4
      %v1823 = vld [vmem:[%s1822] sm:$0xf]
      %v1825 = vsel %vm1362, %v1823, 0
      %1827 = vmatprep.subr.bf16.mxu0 0
      %1828 = vmatpush1.bf16.msra.mxu0 %v1825
      %1829 = vmatprep.subr.bf16.mxu0 0
      %1830 = vmatpush1.bf16.msra.mxu0 0
      %1831 = vmatprep.subr.bf16.mxu0 0
      %1832 = vmatpush1.bf16.msra.mxu0 0
      %1833 = vmatprep.subr.bf16.mxu0 0
      %1834 = vmatpush1.bf16.msra.mxu0 0
      %1835 = vmatprep.subr.bf16.mxu0 0
      %1836 = vmatpush1.bf16.msra.mxu0 0
      %1837 = vmatprep.subr.bf16.mxu0 0
      %1838 = vmatpush1.bf16.msra.mxu0 0
      %1839 = vmatprep.subr.bf16.mxu0 0
      %1840 = vmatpush1.bf16.msra.mxu0 0
      %1841 = vmatprep.subr.bf16.mxu0 0
      %1842 = vmatpush1.bf16.msra.mxu0 0
      %1843 = vmatprep.subr.bf16.mxu0 0
      %1844 = vmatpush1.bf16.msra.mxu0 0
      %1845 = vmatprep.subr.bf16.mxu0 0
      %1846 = vmatpush1.bf16.msra.mxu0 0
      %1847 = vmatprep.subr.bf16.mxu0 0
      %1848 = vmatpush1.bf16.msra.mxu0 0
      %1849 = vmatprep.subr.bf16.mxu0 0
      %1850 = vmatpush1.bf16.msra.mxu0 0
      %1851 = vmatprep.subr.bf16.mxu0 0
      %1852 = vmatpush1.bf16.msra.mxu0 0
      %1853 = vmatprep.subr.bf16.mxu0 0
      %1854 = vmatpush1.bf16.msra.mxu0 0
      %1855 = vmatprep.subr.bf16.mxu0 0
      %1856 = vmatpush1.bf16.msra.mxu0 0
      %1857 = vmatprep.subr.bf16.mxu0 0
      %1858 = vmatpush1.bf16.msra.mxu0 0
      %1859 = vmatprep.mubr.bf16.mxu0 0
      %1860 = vmatmul.mubr.bf16.gmra.mrb[0].mxu0 %v1357
      %v1861 = vpop.f32.mrb[0].mxu0
      %v1862 = vadd.f32 0.0, %v1861
      %v1863 = vpop.f32.mrb[0].mxu0
      %v1864 = vpop.f32.mrb[0].mxu0
      %v1865 = vadd.f32 0.0, %v1864
      %v1866 = vpop.f32.mrb[0].mxu0
      %1867 = vmatprep.mubr.bf16.mxu0 0
      %1868 = vmatmul.mubr.bf16.gmra.mrb[0].mxu0 %v1360
      %v1869 = vpop.f32.mrb[0].mxu0
      %v1870 = vadd.f32 0.0, %v1869
      %v1871 = vpop.f32.mrb[0].mxu0
      %v1872 = vpop.f32.mrb[0].mxu0
      %v1873 = vadd.f32 0.0, %v1872
      %v1874 = vpop.f32.mrb[0].mxu0
      %1875 = vdwg.mxu0
      %v1876 = vadd.f32 %v1818, %v1862
      %v1877 = vadd.f32 %v1819, %v1865
      %v1878 = vadd.f32 %v1820, %v1870
      %v1879 = vadd.f32 %v1821, %v1873
      %s1880 = scalar_lea.vmem %s12, 1
      %v1881 = vld [vmem:[%s1880] sm:$0x1]
      %v1883 = vlaneseq
      %v1884 = vshrl.u32 %v1883, 7
      %v1885 = vsub.s32 0, %v1884
      %v1886 = vrot.slane %v1881, %v1885
      %v1888 = vadd.f32 %v1876, %v1886
      %v1889 = vadd.f32 %v1877, %v1886
      %v1890 = vadd.f32 %v1878, %v1886
      %v1891 = vadd.f32 %v1879, %v1886
      %v1892 = vtanh.pop %v1888
      %v1893 = vtanh.pop %v1889
      %v1894 = vtanh.pop %v1890
      %v1895 = vtanh.pop %v1891
      %v1896 = vxor.u32 %v1888, 2147483648
      %v1897 = vxor.u32 %v1889, 2147483648
      %v1898 = vxor.u32 %v1890, 2147483648
      %v1899 = vxor.u32 %v1891, 2147483648
      %v1900 = vmul.f32 %v1896, 1.442695
      %v1901 = vpow.pop %v1900
      %v1902 = vmul.f32 %v1897, 1.442695
      %v1903 = vpow.pop %v1902
      %v1904 = vmul.f32 %v1898, 1.442695
      %v1905 = vpow.pop %v1904
      %v1906 = vmul.f32 %v1899, 1.442695
      %v1907 = vpow.pop %v1906
      %v1908 = vadd.f32 %v1901, 1.0
      %v1909 = vadd.f32 %v1903, 1.0
      %v1910 = vadd.f32 %v1905, 1.0
      %v1911 = vadd.f32 %v1907, 1.0
      %v1912 = vrcp.pop %v1908
      %v1913 = vmul.f32 1.0, %v1912
      %v1914 = vrcp.pop %v1909
      %v1915 = vmul.f32 1.0, %v1914
      %v1916 = vrcp.pop %v1910
      %v1917 = vmul.f32 1.0, %v1916
      %v1918 = vrcp.pop %v1911
      %v1919 = vmul.f32 1.0, %v1918
      %1924 = vrot.lane.b32.xlu0 %v1913, 112
      %v1925 = vpop.permute.xlu0 %1924
      %1926 = vrot.lane.b32.xlu0 %v1915, 112
      %v1927 = vpop.permute.xlu0 %1926
      %1928 = vrot.lane.b32.xlu0 %v1917, 112
      %v1929 = vpop.permute.xlu0 %1928
      %1930 = vrot.lane.b32.xlu0 %v1919, 112
      %v1931 = vpop.permute.xlu0 %1930
      %v1936 = vmul.f32 %v1892, %v1925
      %v1937 = vmul.f32 %v1893, %v1927
      %v1938 = vmul.f32 %v1894, %v1929
      %v1939 = vmul.f32 %v1895, %v1931
      %v1940 = vpack.c.bf16 %v1937, %v1936
      %v1941 = vpack.c.bf16 %v1939, %v1938
      %s1942 = scalar_lea.vmem %s13, 8
      %v1943 = vld [vmem:[%s1942] sm:$0xf]
      %v1944 = vld [vmem:[%s1942 + $0x4] sm:$0xf]
      %s1945 = scalar_lea.vmem %s14, 1
      %v1946 = vld [vmem:[%s1945] sm:$0x1]
      %v1948 = vlaneseq
      %v1949 = vshrl.u32 %v1948, 7
      %v1950 = vsub.s32 0, %v1949
      %v1951 = vrot.slane %v1946, %v1950
      %v1955 = vunpack.c.l.b16 %v1943
      %v1956 = vunpack.c.l.b16 %v1944
      %v1957 = vpack.c.b16 %v1956, %v1955
      %v1960 = vsel %vm1035, %v1940, 0
      %v1963 = vsel %vm1035, %v1941, 0
      %1965 = vmatprep.subr.bf16.mxu0 0
      %1966 = vmatpush1.bf16.msra.mxu0 %v1957
      %1967 = vmatprep.subr.bf16.mxu0 0
      %1968 = vmatpush1.bf16.msra.mxu0 0
      %1969 = vmatprep.subr.bf16.mxu0 0
      %1970 = vmatpush1.bf16.msra.mxu0 0
      %1971 = vmatprep.subr.bf16.mxu0 0
      %1972 = vmatpush1.bf16.msra.mxu0 0
      %1973 = vmatprep.subr.bf16.mxu0 0
      %1974 = vmatpush1.bf16.msra.mxu0 0
      %1975 = vmatprep.subr.bf16.mxu0 0
      %1976 = vmatpush1.bf16.msra.mxu0 0
      %1977 = vmatprep.subr.bf16.mxu0 0
      %1978 = vmatpush1.bf16.msra.mxu0 0
      %1979 = vmatprep.subr.bf16.mxu0 0
      %1980 = vmatpush1.bf16.msra.mxu0 0
      %1981 = vmatprep.subr.bf16.mxu0 0
      %1982 = vmatpush1.bf16.msra.mxu0 0
      %1983 = vmatprep.subr.bf16.mxu0 0
      %1984 = vmatpush1.bf16.msra.mxu0 0
      %1985 = vmatprep.subr.bf16.mxu0 0
      %1986 = vmatpush1.bf16.msra.mxu0 0
      %1987 = vmatprep.subr.bf16.mxu0 0
      %1988 = vmatpush1.bf16.msra.mxu0 0
      %1989 = vmatprep.subr.bf16.mxu0 0
      %1990 = vmatpush1.bf16.msra.mxu0 0
      %1991 = vmatprep.subr.bf16.mxu0 0
      %1992 = vmatpush1.bf16.msra.mxu0 0
      %1993 = vmatprep.subr.bf16.mxu0 0
      %1994 = vmatpush1.bf16.msra.mxu0 0
      %1995 = vmatprep.subr.bf16.mxu0 0
      %1996 = vmatpush1.bf16.msra.mxu0 0
      %1997 = vmatprep.mubr.bf16.mxu0 0
      %1998 = vmatmul.mubr.bf16.gmra.mrb[0].mxu0 %v1960
      %v1999 = vpop.f32.mrb[0].mxu0
      %v2000 = vadd.f32 %v1951, %v1999
      %v2001 = vpop.f32.mrb[0].mxu0
      %v2002 = vpop.f32.mrb[0].mxu0
      %v2003 = vadd.f32 %v1951, %v2002
      %v2004 = vpop.f32.mrb[0].mxu0
      %2005 = vmatprep.mubr.bf16.mxu0 0
      %2006 = vmatmul.mubr.bf16.gmra.mrb[0].mxu0 %v1963
      %v2007 = vpop.f32.mrb[0].mxu0
      %v2008 = vadd.f32 %v1951, %v2007
      %v2009 = vpop.f32.mrb[0].mxu0
      %v2010 = vpop.f32.mrb[0].mxu0
      %v2011 = vadd.f32 %v1951, %v2010
      %v2012 = vpop.f32.mrb[0].mxu0
      %2013 = vdwg.mxu0
      %v2014 = vadd.f32 %v1550, %v2000
      %v2015 = vadd.f32 %v1551, %v2003
      %v2016 = vadd.f32 %v1552, %v2008
      %v2017 = vadd.f32 %v1553, %v2011
      %v2018 = vadd.f32 %v1554, %v2003
      %v2019 = vadd.f32 %v1555, %v2008
      %vm2020 = vcmp.ge.s32.totalorder %v1014, 4
      %vm2021 = vcmp.ge.s32.totalorder %v1015, 4
      %vm2022 = vcmp.ge.s32.totalorder %v1016, 4
      %vm2023 = vcmp.ge.s32.totalorder %v1017, 4
      %v2025 = vrot.slane %v2017, 4
      %v2030 = vrot.slane %v2014, 4
      %v2031 = vrot.slane %v2015, 4
      %v2032 = vsel %vm1362, %v2030, %v2031
      %v2033 = vrot.slane %v2016, 4
      %v2034 = vsel %vm1362, %v2031, %v2033
      %v2035 = vsel %vm1362, %v2033, %v2025
      %v2040 = vsel %vm1362, %v2025, %v2030
      %v2041 = vsel %vm2020, 1, 0
      %v2042 = vsel %vm2021, 1, 0
      %v2043 = vsel %vm2022, 1, 0
      %v2044 = vsel %vm2023, 1, 0
      %vm2045 = vcmp.eq.s32.totalorder %v2041, 1
      %vm2046 = vcmp.eq.s32.totalorder %v2042, 1
      %vm2047 = vcmp.eq.s32.totalorder %v2043, 1
      %vm2048 = vcmp.eq.s32.totalorder %v2044, 1
      %v2049 = vsel %vm2045, %v2040, 0.0
      %v2050 = vsel %vm2046, %v2032, 0.0
      %v2051 = vsel %vm2047, %v2034, 0.0
      %v2052 = vsel %vm2048, %v2035, 0.0
      %v2053 = vpack.c.bf16 %v2050, %v2049
      %v2054 = vpack.c.bf16 %v2052, %v2051
      %vm2055 = vcmp.lt.s32.totalorder %v1014, 36
      %vm2056 = vcmp.lt.s32.totalorder %v1015, 36
      %vm2057 = vcmp.lt.s32.totalorder %v1016, 36
      %vm2058 = vcmp.lt.s32.totalorder %v1017, 36
      %v2059 = vsel %vm2055, 1, 0
      %v2060 = vsel %vm2056, 1, 0
      %v2061 = vsel %vm2057, 1, 0
      %v2062 = vsel %vm2058, 1, 0
      %vm2063 = vcmp.eq.s32.totalorder %v2059, 1
      %vm2064 = vcmp.eq.s32.totalorder %v2060, 1
      %vm2065 = vcmp.eq.s32.totalorder %v2061, 1
      %vm2066 = vcmp.eq.s32.totalorder %v2062, 1
      %v2067 = vsel %vm2063, %v2032, 0.0
      %v2068 = vsel %vm2064, %v2034, 0.0
      %v2069 = vsel %vm2065, %v2035, 0.0
      %v2070 = vsel %vm2066, %v2040, 0.0
      %v2071 = vpack.c.bf16 %v2068, %v2067
      %v2072 = vpack.c.bf16 %v2070, %v2069
      %s2073 = scalar_lea.vmem %s8, 16
      %v2074 = vld [vmem:[%s2073] sm:$0xf]
      %v2075 = vld [vmem:[%s2073 + $0x4] sm:$0xf]
      %v2076 = vpack.c.bf16 %v2015, %v2014
      %v2077 = vpack.c.bf16 %v2017, %v2016
      %s2078 = scalar_lea.vmem %s9, 16
      %v2079 = vld [vmem:[%s2078] sm:$0xf]
      %v2080 = vld [vmem:[%s2078 + $0x4] sm:$0xf]
      %v2083 = vunpack.c.l.b16 %v2079
      %v2084 = vunpack.c.l.b16 %v2080
      %v2085 = vpack.c.b16 %v2084, %v2083
      %v2088 = vsel %vm1035, %v2076, 0
      %v2091 = vsel %vm1035, %v2077, 0
      %2093 = vmatprep.subr.bf16.mxu0 0
      %2094 = vmatpush1.bf16.msra.mxu0 %v2085
      %2095 = vmatprep.subr.bf16.mxu0 0
      %2096 = vmatpush1.bf16.msra.mxu0 0
      %2097 = vmatprep.subr.bf16.mxu0 0
      %2098 = vmatpush1.bf16.msra.mxu0 0
      %2099 = vmatprep.subr.bf16.mxu0 0
      %2100 = vmatpush1.bf16.msra.mxu0 0
      %2101 = vmatprep.subr.bf16.mxu0 0
      %2102 = vmatpush1.bf16.msra.mxu0 0
      %2103 = vmatprep.subr.bf16.mxu0 0
      %2104 = vmatpush1.bf16.msra.mxu0 0
      %2105 = vmatprep.subr.bf16.mxu0 0
      %2106 = vmatpush1.bf16.msra.mxu0 0
      %2107 = vmatprep.subr.bf16.mxu0 0
      %2108 = vmatpush1.bf16.msra.mxu0 0
      %2109 = vmatprep.subr.bf16.mxu0 0
      %2110 = vmatpush1.bf16.msra.mxu0 0
      %2111 = vmatprep.subr.bf16.mxu0 0
      %2112 = vmatpush1.bf16.msra.mxu0 0
      %2113 = vmatprep.subr.bf16.mxu0 0
      %2114 = vmatpush1.bf16.msra.mxu0 0
      %2115 = vmatprep.subr.bf16.mxu0 0
      %2116 = vmatpush1.bf16.msra.mxu0 0
      %2117 = vmatprep.subr.bf16.mxu0 0
      %2118 = vmatpush1.bf16.msra.mxu0 0
      %2119 = vmatprep.subr.bf16.mxu0 0
      %2120 = vmatpush1.bf16.msra.mxu0 0
      %2121 = vmatprep.subr.bf16.mxu0 0
      %2122 = vmatpush1.bf16.msra.mxu0 0
      %2123 = vmatprep.subr.bf16.mxu0 0
      %2124 = vmatpush1.bf16.msra.mxu0 0
      %2125 = vmatprep.mubr.bf16.mxu0 0
      %2126 = vmatmul.mubr.bf16.gmra.mrb[0].mxu0 %v2088
      %v2127 = vpop.f32.mrb[0].mxu0
      %v2128 = vadd.f32 0.0, %v2127
      %v2129 = vpop.f32.mrb[0].mxu0
      %v2130 = vpop.f32.mrb[0].mxu0
      %v2131 = vadd.f32 0.0, %v2130
      %v2132 = vpop.f32.mrb[0].mxu0
      %2133 = vmatprep.mubr.bf16.mxu0 0
      %2134 = vmatmul.mubr.bf16.gmra.mrb[0].mxu0 %v2091
      %v2135 = vpop.f32.mrb[0].mxu0
      %v2136 = vadd.f32 0.0, %v2135
      %v2137 = vpop.f32.mrb[0].mxu0
      %v2138 = vpop.f32.mrb[0].mxu0
      %v2139 = vadd.f32 0.0, %v2138
      %v2140 = vpop.f32.mrb[0].mxu0
      %2141 = vdwg.mxu0
      %v2144 = vunpack.c.l.b16 %v2074
      %v2145 = vunpack.c.l.b16 %v2075
      %v2146 = vpack.c.b16 %v2145, %v2144
      %v2149 = vsel %vm1035, %v2053, 0
      %v2152 = vsel %vm1035, %v2054, 0
      %2154 = vmatprep.subr.bf16.mxu0 0
      %2155 = vmatpush1.bf16.msra.mxu0 %v2146
      %2156 = vmatprep.subr.bf16.mxu0 0
      %2157 = vmatpush1.bf16.msra.mxu0 0
      %2158 = vmatprep.subr.bf16.mxu0 0
      %2159 = vmatpush1.bf16.msra.mxu0 0
      %2160 = vmatprep.subr.bf16.mxu0 0
      %2161 = vmatpush1.bf16.msra.mxu0 0
      %2162 = vmatprep.subr.bf16.mxu0 0
      %2163 = vmatpush1.bf16.msra.mxu0 0
      %2164 = vmatprep.subr.bf16.mxu0 0
      %2165 = vmatpush1.bf16.msra.mxu0 0
      %2166 = vmatprep.subr.bf16.mxu0 0
      %2167 = vmatpush1.bf16.msra.mxu0 0
      %2168 = vmatprep.subr.bf16.mxu0 0
      %2169 = vmatpush1.bf16.msra.mxu0 0
      %2170 = vmatprep.subr.bf16.mxu0 0
      %2171 = vmatpush1.bf16.msra.mxu0 0
      %2172 = vmatprep.subr.bf16.mxu0 0
      %2173 = vmatpush1.bf16.msra.mxu0 0
      %2174 = vmatprep.subr.bf16.mxu0 0
      %2175 = vmatpush1.bf16.msra.mxu0 0
      %2176 = vmatprep.subr.bf16.mxu0 0
      %2177 = vmatpush1.bf16.msra.mxu0 0
      %2178 = vmatprep.subr.bf16.mxu0 0
      %2179 = vmatpush1.bf16.msra.mxu0 0
      %2180 = vmatprep.subr.bf16.mxu0 0
      %2181 = vmatpush1.bf16.msra.mxu0 0
      %2182 = vmatprep.subr.bf16.mxu0 0
      %2183 = vmatpush1.bf16.msra.mxu0 0
      %2184 = vmatprep.subr.bf16.mxu0 0
      %2185 = vmatpush1.bf16.msra.mxu0 0
      %2186 = vmatprep.mubr.bf16.mxu0 0
      %2187 = vmatmul.mubr.bf16.gmra.mrb[0].mxu0 %v2149
      %v2188 = vpop.f32.mrb[0].mxu0
      %v2189 = vadd.f32 %v2128, %v2188
      %v2190 = vpop.f32.mrb[0].mxu0
      %v2191 = vpop.f32.mrb[0].mxu0
      %v2192 = vadd.f32 %v2131, %v2191
      %v2193 = vpop.f32.mrb[0].mxu0
      %2194 = vmatprep.mubr.bf16.mxu0 0
      %2195 = vmatmul.mubr.bf16.gmra.mrb[0].mxu0 %v2152
      %v2196 = vpop.f32.mrb[0].mxu0
      %v2197 = vadd.f32 %v2136, %v2196
      %v2198 = vpop.f32.mrb[0].mxu0
      %v2199 = vpop.f32.mrb[0].mxu0
      %v2200 = vadd.f32 %v2139, %v2199
      %v2201 = vpop.f32.mrb[0].mxu0
      %2202 = vdwg.mxu0
      %s2203 = scalar_lea.vmem %s10, 16
      %v2204 = vld [vmem:[%s2203] sm:$0xf]
      %v2205 = vld [vmem:[%s2203 + $0x4] sm:$0xf]
      %v2208 = vunpack.c.l.b16 %v2204
      %v2209 = vunpack.c.l.b16 %v2205
      %v2210 = vpack.c.b16 %v2209, %v2208
      %v2213 = vsel %vm1035, %v2071, 0
      %v2216 = vsel %vm1035, %v2072, 0
      %2218 = vmatprep.subr.bf16.mxu0 0
      %2219 = vmatpush1.bf16.msra.mxu0 %v2210
      %2220 = vmatprep.subr.bf16.mxu0 0
      %2221 = vmatpush1.bf16.msra.mxu0 0
      %2222 = vmatprep.subr.bf16.mxu0 0
      %2223 = vmatpush1.bf16.msra.mxu0 0
      %2224 = vmatprep.subr.bf16.mxu0 0
      %2225 = vmatpush1.bf16.msra.mxu0 0
      %2226 = vmatprep.subr.bf16.mxu0 0
      %2227 = vmatpush1.bf16.msra.mxu0 0
      %2228 = vmatprep.subr.bf16.mxu0 0
      %2229 = vmatpush1.bf16.msra.mxu0 0
      %2230 = vmatprep.subr.bf16.mxu0 0
      %2231 = vmatpush1.bf16.msra.mxu0 0
      %2232 = vmatprep.subr.bf16.mxu0 0
      %2233 = vmatpush1.bf16.msra.mxu0 0
      %2234 = vmatprep.subr.bf16.mxu0 0
      %2235 = vmatpush1.bf16.msra.mxu0 0
      %2236 = vmatprep.subr.bf16.mxu0 0
      %2237 = vmatpush1.bf16.msra.mxu0 0
      %2238 = vmatprep.subr.bf16.mxu0 0
      %2239 = vmatpush1.bf16.msra.mxu0 0
      %2240 = vmatprep.subr.bf16.mxu0 0
      %2241 = vmatpush1.bf16.msra.mxu0 0
      %2242 = vmatprep.subr.bf16.mxu0 0
      %2243 = vmatpush1.bf16.msra.mxu0 0
      %2244 = vmatprep.subr.bf16.mxu0 0
      %2245 = vmatpush1.bf16.msra.mxu0 0
      %2246 = vmatprep.subr.bf16.mxu0 0
      %2247 = vmatpush1.bf16.msra.mxu0 0
      %2248 = vmatprep.subr.bf16.mxu0 0
      %2249 = vmatpush1.bf16.msra.mxu0 0
      %2250 = vmatprep.mubr.bf16.mxu0 0
      %2251 = vmatmul.mubr.bf16.gmra.mrb[0].mxu0 %v2213
      %v2252 = vpop.f32.mrb[0].mxu0
      %v2253 = vadd.f32 0.0, %v2252
      %v2254 = vpop.f32.mrb[0].mxu0
      %v2255 = vpop.f32.mrb[0].mxu0
      %v2256 = vadd.f32 0.0, %v2255
      %v2257 = vpop.f32.mrb[0].mxu0
      %2258 = vmatprep.mubr.bf16.mxu0 0
      %2259 = vmatmul.mubr.bf16.gmra.mrb[0].mxu0 %v2216
      %v2260 = vpop.f32.mrb[0].mxu0
      %v2261 = vadd.f32 0.0, %v2260
      %v2262 = vpop.f32.mrb[0].mxu0
      %v2263 = vpop.f32.mrb[0].mxu0
      %v2264 = vadd.f32 0.0, %v2263
      %v2265 = vpop.f32.mrb[0].mxu0
      %2266 = vdwg.mxu0
      %v2267 = vadd.f32 %v2189, %v2253
      %v2268 = vadd.f32 %v2192, %v2256
      %v2269 = vadd.f32 %v2197, %v2261
      %v2270 = vadd.f32 %v2200, %v2264
      %s2271 = scalar_lea.vmem %s11, 8
      %v2272 = vld [vmem:[%s2271] sm:$0xf]
      %v2274 = vsel %vm1362, %v2272, 0
      %2276 = vmatprep.subr.bf16.mxu0 0
      %2277 = vmatpush1.bf16.msra.mxu0 %v2274
      %2278 = vmatprep.subr.bf16.mxu0 0
      %2279 = vmatpush1.bf16.msra.mxu0 0
      %2280 = vmatprep.subr.bf16.mxu0 0
      %2281 = vmatpush1.bf16.msra.mxu0 0
      %2282 = vmatprep.subr.bf16.mxu0 0
      %2283 = vmatpush1.bf16.msra.mxu0 0
      %2284 = vmatprep.subr.bf16.mxu0 0
      %2285 = vmatpush1.bf16.msra.mxu0 0
      %2286 = vmatprep.subr.bf16.mxu0 0
      %2287 = vmatpush1.bf16.msra.mxu0 0
      %2288 = vmatprep.subr.bf16.mxu0 0
      %2289 = vmatpush1.bf16.msra.mxu0 0
      %2290 = vmatprep.subr.bf16.mxu0 0
      %2291 = vmatpush1.bf16.msra.mxu0 0
      %2292 = vmatprep.subr.bf16.mxu0 0
      %2293 = vmatpush1.bf16.msra.mxu0 0
      %2294 = vmatprep.subr.bf16.mxu0 0
      %2295 = vmatpush1.bf16.msra.mxu0 0
      %2296 = vmatprep.subr.bf16.mxu0 0
      %2297 = vmatpush1.bf16.msra.mxu0 0
      %2298 = vmatprep.subr.bf16.mxu0 0
      %2299 = vmatpush1.bf16.msra.mxu0 0
      %2300 = vmatprep.subr.bf16.mxu0 0
      %2301 = vmatpush1.bf16.msra.mxu0 0
      %2302 = vmatprep.subr.bf16.mxu0 0
      %2303 = vmatpush1.bf16.msra.mxu0 0
      %2304 = vmatprep.subr.bf16.mxu0 0
      %2305 = vmatpush1.bf16.msra.mxu0 0
      %2306 = vmatprep.subr.bf16.mxu0 0
      %2307 = vmatpush1.bf16.msra.mxu0 0
      %2308 = vmatprep.mubr.bf16.mxu0 0
      %2309 = vmatmul.mubr.bf16.gmra.mrb[0].mxu0 %v1357
      %v2310 = vpop.f32.mrb[0].mxu0
      %v2311 = vadd.f32 0.0, %v2310
      %v2312 = vpop.f32.mrb[0].mxu0
      %v2313 = vpop.f32.mrb[0].mxu0
      %v2314 = vadd.f32 0.0, %v2313
      %v2315 = vpop.f32.mrb[0].mxu0
      %2316 = vmatprep.mubr.bf16.mxu0 0
      %2317 = vmatmul.mubr.bf16.gmra.mrb[0].mxu0 %v1360
      %v2318 = vpop.f32.mrb[0].mxu0
      %v2319 = vadd.f32 0.0, %v2318
      %v2320 = vpop.f32.mrb[0].mxu0
      %v2321 = vpop.f32.mrb[0].mxu0
      %v2322 = vadd.f32 0.0, %v2321
      %v2323 = vpop.f32.mrb[0].mxu0
      %2324 = vdwg.mxu0
      %v2325 = vadd.f32 %v2267, %v2311
      %v2326 = vadd.f32 %v2268, %v2314
      %v2327 = vadd.f32 %v2269, %v2319
      %v2328 = vadd.f32 %v2270, %v2322
      %s2329 = scalar_lea.vmem %s12, 2
      %v2330 = vld [vmem:[%s2329] sm:$0x1]
      %v2332 = vlaneseq
      %v2333 = vshrl.u32 %v2332, 7
      %v2334 = vsub.s32 0, %v2333
      %v2335 = vrot.slane %v2330, %v2334
      %v2337 = vadd.f32 %v2325, %v2335
      %v2338 = vadd.f32 %v2326, %v2335
      %v2339 = vadd.f32 %v2327, %v2335
      %v2340 = vadd.f32 %v2328, %v2335
      %v2341 = vtanh.pop %v2337
      %v2342 = vtanh.pop %v2338
      %v2343 = vtanh.pop %v2339
      %v2344 = vtanh.pop %v2340
      %v2345 = vxor.u32 %v2337, 2147483648
      %v2346 = vxor.u32 %v2338, 2147483648
      %v2347 = vxor.u32 %v2339, 2147483648
      %v2348 = vxor.u32 %v2340, 2147483648
      %v2349 = vmul.f32 %v2345, 1.442695
      %v2350 = vpow.pop %v2349
      %v2351 = vmul.f32 %v2346, 1.442695
      %v2352 = vpow.pop %v2351
      %v2353 = vmul.f32 %v2347, 1.442695
      %v2354 = vpow.pop %v2353
      %v2355 = vmul.f32 %v2348, 1.442695
      %v2356 = vpow.pop %v2355
      %v2357 = vadd.f32 %v2350, 1.0
      %v2358 = vadd.f32 %v2352, 1.0
      %v2359 = vadd.f32 %v2354, 1.0
      %v2360 = vadd.f32 %v2356, 1.0
      %v2361 = vrcp.pop %v2357
      %v2362 = vmul.f32 1.0, %v2361
      %v2363 = vrcp.pop %v2358
      %v2364 = vmul.f32 1.0, %v2363
      %v2365 = vrcp.pop %v2359
      %v2366 = vmul.f32 1.0, %v2365
      %v2367 = vrcp.pop %v2360
      %v2368 = vmul.f32 1.0, %v2367
      %2373 = vrot.lane.b32.xlu0 %v2362, 112
      %v2374 = vpop.permute.xlu0 %2373
      %2375 = vrot.lane.b32.xlu0 %v2364, 112
      %v2376 = vpop.permute.xlu0 %2375
      %2377 = vrot.lane.b32.xlu0 %v2366, 112
      %v2378 = vpop.permute.xlu0 %2377
      %2379 = vrot.lane.b32.xlu0 %v2368, 112
      %v2380 = vpop.permute.xlu0 %2379
      %v2385 = vmul.f32 %v2341, %v2374
      %v2386 = vmul.f32 %v2342, %v2376
      %v2387 = vmul.f32 %v2343, %v2378
      %v2388 = vmul.f32 %v2344, %v2380
      %v2389 = vpack.c.bf16 %v2386, %v2385
      %v2390 = vpack.c.bf16 %v2388, %v2387
      %s2391 = scalar_lea.vmem %s13, 16
      %v2392 = vld [vmem:[%s2391] sm:$0xf]
      %v2393 = vld [vmem:[%s2391 + $0x4] sm:$0xf]
      %s2394 = scalar_lea.vmem %s14, 2
      %v2395 = vld [vmem:[%s2394] sm:$0x1]
      %v2397 = vlaneseq
      %v2398 = vshrl.u32 %v2397, 7
      %v2399 = vsub.s32 0, %v2398
      %v2400 = vrot.slane %v2395, %v2399
      %v2404 = vunpack.c.l.b16 %v2392
      %v2405 = vunpack.c.l.b16 %v2393
      %v2406 = vpack.c.b16 %v2405, %v2404
      %v2409 = vsel %vm1035, %v2389, 0
      %v2412 = vsel %vm1035, %v2390, 0
      %2414 = vmatprep.subr.bf16.mxu0 0
      %2415 = vmatpush1.bf16.msra.mxu0 %v2406
      %2416 = vmatprep.subr.bf16.mxu0 0
      %2417 = vmatpush1.bf16.msra.mxu0 0
      %2418 = vmatprep.subr.bf16.mxu0 0
      %2419 = vmatpush1.bf16.msra.mxu0 0
      %2420 = vmatprep.subr.bf16.mxu0 0
      %2421 = vmatpush1.bf16.msra.mxu0 0
      %2422 = vmatprep.subr.bf16.mxu0 0
      %2423 = vmatpush1.bf16.msra.mxu0 0
      %2424 = vmatprep.subr.bf16.mxu0 0
      %2425 = vmatpush1.bf16.msra.mxu0 0
      %2426 = vmatprep.subr.bf16.mxu0 0
      %2427 = vmatpush1.bf16.msra.mxu0 0
      %2428 = vmatprep.subr.bf16.mxu0 0
      %2429 = vmatpush1.bf16.msra.mxu0 0
      %2430 = vmatprep.subr.bf16.mxu0 0
      %2431 = vmatpush1.bf16.msra.mxu0 0
      %2432 = vmatprep.subr.bf16.mxu0 0
      %2433 = vmatpush1.bf16.msra.mxu0 0
      %2434 = vmatprep.subr.bf16.mxu0 0
      %2435 = vmatpush1.bf16.msra.mxu0 0
      %2436 = vmatprep.subr.bf16.mxu0 0
      %2437 = vmatpush1.bf16.msra.mxu0 0
      %2438 = vmatprep.subr.bf16.mxu0 0
      %2439 = vmatpush1.bf16.msra.mxu0 0
      %2440 = vmatprep.subr.bf16.mxu0 0
      %2441 = vmatpush1.bf16.msra.mxu0 0
      %2442 = vmatprep.subr.bf16.mxu0 0
      %2443 = vmatpush1.bf16.msra.mxu0 0
      %2444 = vmatprep.subr.bf16.mxu0 0
      %2445 = vmatpush1.bf16.msra.mxu0 0
      %2446 = vmatprep.mubr.bf16.mxu0 0
      %2447 = vmatmul.mubr.bf16.gmra.mrb[0].mxu0 %v2409
      %v2448 = vpop.f32.mrb[0].mxu0
      %v2449 = vpop.f32.mrb[0].mxu0
      %v2450 = vpop.f32.mrb[0].mxu0
      %v2451 = vadd.f32 %v2400, %v2450
      %v2452 = vpop.f32.mrb[0].mxu0
      %2453 = vmatprep.mubr.bf16.mxu0 0
      %2454 = vmatmul.mubr.bf16.gmra.mrb[0].mxu0 %v2412
      %v2455 = vpop.f32.mrb[0].mxu0
      %v2456 = vadd.f32 %v2400, %v2455
      %v2457 = vpop.f32.mrb[0].mxu0
      %v2458 = vpop.f32.mrb[0].mxu0
      %v2459 = vpop.f32.mrb[0].mxu0
      %2460 = vdwg.mxu0
      %v2461 = vadd.f32 %v2018, %v2451
      %v2462 = vadd.f32 %v2019, %v2456
      %v2463 = vpack.c.bf16 %v2462, %v2461
      %v2464 = vld [vmem:[%s15] sm:$0xf]
      %v2465 = vld [vmem:[%s15 + $0x4] sm:$0xf]
      %v2466 = vld [vmem:[%s16] sm:$0x1]
      %v2468 = vlaneseq
      %v2469 = vshrl.u32 %v2468, 7
      %v2470 = vsub.s32 0, %v2469
      %v2471 = vrot.slane %v2466, %v2470
      %2474 = vrot.lane.b32.xlu0 %v2463, 112
      %v2475 = vpop.permute.xlu0 %2474
      %v2478 = vunpack.c.l.b16 %v2464
      %v2479 = vunpack.c.l.b16 %v2465
      %v2480 = vpack.c.b16 %v2479, %v2478
      %v2483 = vsel %vm1035, %v2475, 0
      %2485 = vmatprep.subr.bf16.mxu0 0
      %2486 = vmatpush1.bf16.msra.mxu0 %v2480
      %2487 = vmatprep.subr.bf16.mxu0 0
      %2488 = vmatpush1.bf16.msra.mxu0 0
      %2489 = vmatprep.subr.bf16.mxu0 0
      %2490 = vmatpush1.bf16.msra.mxu0 0
      %2491 = vmatprep.subr.bf16.mxu0 0
      %2492 = vmatpush1.bf16.msra.mxu0 0
      %2493 = vmatprep.subr.bf16.mxu0 0
      %2494 = vmatpush1.bf16.msra.mxu0 0
      %2495 = vmatprep.subr.bf16.mxu0 0
      %2496 = vmatpush1.bf16.msra.mxu0 0
      %2497 = vmatprep.subr.bf16.mxu0 0
      %2498 = vmatpush1.bf16.msra.mxu0 0
      %2499 = vmatprep.subr.bf16.mxu0 0
      %2500 = vmatpush1.bf16.msra.mxu0 0
      %2501 = vmatprep.subr.bf16.mxu0 0
      %2502 = vmatpush1.bf16.msra.mxu0 0
      %2503 = vmatprep.subr.bf16.mxu0 0
      %2504 = vmatpush1.bf16.msra.mxu0 0
      %2505 = vmatprep.subr.bf16.mxu0 0
      %2506 = vmatpush1.bf16.msra.mxu0 0
      %2507 = vmatprep.subr.bf16.mxu0 0
      %2508 = vmatpush1.bf16.msra.mxu0 0
      %2509 = vmatprep.subr.bf16.mxu0 0
      %2510 = vmatpush1.bf16.msra.mxu0 0
      %2511 = vmatprep.subr.bf16.mxu0 0
      %2512 = vmatpush1.bf16.msra.mxu0 0
      %2513 = vmatprep.subr.bf16.mxu0 0
      %2514 = vmatpush1.bf16.msra.mxu0 0
      %2515 = vmatprep.subr.bf16.mxu0 0
      %2516 = vmatpush1.bf16.msra.mxu0 0
      %2517 = vmatprep.mubr.bf16.mxu0 0
      %2518 = vmatmul.mubr.bf16.gmra.mrb[0].mxu0 %v2483
      %v2519 = vpop.f32.mrb[0].mxu0
      %v2520 = vadd.f32 %v2471, %v2519
      %v2521 = vpop.f32.mrb[0].mxu0
      %v2522 = vpop.f32.mrb[0].mxu0
      %v2523 = vadd.f32 %v2471, %v2522
      %v2524 = vpop.f32.mrb[0].mxu0
      %2525 = vdwg.mxu0
      %v2526 = vld [vmem:[%s17] sm:$0xf]
      %v2527 = vld [vmem:[%s17 + $0x4] sm:$0xf]
      %v2528 = vld [vmem:[%s18] sm:$0x1]
      %v2530 = vlaneseq
      %v2531 = vshrl.u32 %v2530, 7
      %v2532 = vsub.s32 0, %v2531
      %v2533 = vrot.slane %v2528, %v2532
      %v2537 = vunpack.c.l.b16 %v2526
      %v2538 = vunpack.c.l.b16 %v2527
      %v2539 = vpack.c.b16 %v2538, %v2537
      %2541 = vmatprep.subr.bf16.mxu0 0
      %2542 = vmatpush1.bf16.msra.mxu0 %v2539
      %2543 = vmatprep.subr.bf16.mxu0 0
      %2544 = vmatpush1.bf16.msra.mxu0 0
      %2545 = vmatprep.subr.bf16.mxu0 0
      %2546 = vmatpush1.bf16.msra.mxu0 0
      %2547 = vmatprep.subr.bf16.mxu0 0
      %2548 = vmatpush1.bf16.msra.mxu0 0
      %2549 = vmatprep.subr.bf16.mxu0 0
      %2550 = vmatpush1.bf16.msra.mxu0 0
      %2551 = vmatprep.subr.bf16.mxu0 0
      %2552 = vmatpush1.bf16.msra.mxu0 0
      %2553 = vmatprep.subr.bf16.mxu0 0
      %2554 = vmatpush1.bf16.msra.mxu0 0
      %2555 = vmatprep.subr.bf16.mxu0 0
      %2556 = vmatpush1.bf16.msra.mxu0 0
      %2557 = vmatprep.subr.bf16.mxu0 0
      %2558 = vmatpush1.bf16.msra.mxu0 0
      %2559 = vmatprep.subr.bf16.mxu0 0
      %2560 = vmatpush1.bf16.msra.mxu0 0
      %2561 = vmatprep.subr.bf16.mxu0 0
      %2562 = vmatpush1.bf16.msra.mxu0 0
      %2563 = vmatprep.subr.bf16.mxu0 0
      %2564 = vmatpush1.bf16.msra.mxu0 0
      %2565 = vmatprep.subr.bf16.mxu0 0
      %2566 = vmatpush1.bf16.msra.mxu0 0
      %2567 = vmatprep.subr.bf16.mxu0 0
      %2568 = vmatpush1.bf16.msra.mxu0 0
      %2569 = vmatprep.subr.bf16.mxu0 0
      %2570 = vmatpush1.bf16.msra.mxu0 0
      %2571 = vmatprep.subr.bf16.mxu0 0
      %2572 = vmatpush1.bf16.msra.mxu0 0
      %2573 = vmatprep.mubr.bf16.mxu0 0
      %2574 = vmatmul.mubr.bf16.gmra.mrb[0].mxu0 %v2483
      %v2575 = vpop.f32.mrb[0].mxu0
      %v2576 = vadd.f32 %v2533, %v2575
      %v2577 = vpop.f32.mrb[0].mxu0
      %v2578 = vpop.f32.mrb[0].mxu0
      %v2579 = vadd.f32 %v2533, %v2578
      %v2580 = vpop.f32.mrb[0].mxu0
      %2581 = vdwg.mxu0
      %2584 = vrot.lane.b32.xlu0 %v2520, 8
      %v2585 = vpop.permute.xlu0 %2584
      %2586 = vrot.lane.b32.xlu0 %v2523, 8
      %v2587 = vpop.permute.xlu0 %2586
      %v2590 = vsub.f32 %v999, %v2585
      %v2591 = vsub.f32 %v1000, %v2587
      %v2592 = vsub.f32 0.0, %v2576
      %v2593 = vsub.f32 0.0, %v2579
      %v2594 = vmul.f32 %v2592, 1.442695
      %v2595 = vpow.pop %v2594
      %v2596 = vmul.f32 %v2593, 1.442695
      %v2597 = vpow.pop %v2596
      %2600 = vrot.lane.b32.xlu0 %v2595, 8
      %v2601 = vpop.permute.xlu0 %2600
      %2602 = vrot.lane.b32.xlu0 %v2597, 8
      %v2603 = vpop.permute.xlu0 %2602
      %v2606 = vmul.f32 %v2590, %v2601
      %v2607 = vmul.f32 %v2591, %v2603
      %v2608 = vpack.c.bf16 %v1000, %v999
      %v2609 = vld [vmem:[%s19] sm:$0xf]
      %v2610 = vpack.c.bf16 %v2607, %v2606
      %v2611 = vld [vmem:[%s20] sm:$0xf]
      %2613 = vrot.lane.b32.xlu0 %v2610, 120
      %v2614 = vpop.permute.xlu0 %2613
      %v2616 = vsel %vm1355, %v2614, 0
      %v2619 = vsel %vm1362, %v2611, 0
      %2621 = vmatprep.subr.bf16.mxu0 0
      %2622 = vmatpush1.bf16.msra.mxu0 %v2619
      %2623 = vmatprep.subr.bf16.mxu0 0
      %2624 = vmatpush1.bf16.msra.mxu0 0
      %2625 = vmatprep.subr.bf16.mxu0 0
      %2626 = vmatpush1.bf16.msra.mxu0 0
      %2627 = vmatprep.subr.bf16.mxu0 0
      %2628 = vmatpush1.bf16.msra.mxu0 0
      %2629 = vmatprep.subr.bf16.mxu0 0
      %2630 = vmatpush1.bf16.msra.mxu0 0
      %2631 = vmatprep.subr.bf16.mxu0 0
      %2632 = vmatpush1.bf16.msra.mxu0 0
      %2633 = vmatprep.subr.bf16.mxu0 0
      %2634 = vmatpush1.bf16.msra.mxu0 0
      %2635 = vmatprep.subr.bf16.mxu0 0
      %2636 = vmatpush1.bf16.msra.mxu0 0
      %2637 = vmatprep.subr.bf16.mxu0 0
      %2638 = vmatpush1.bf16.msra.mxu0 0
      %2639 = vmatprep.subr.bf16.mxu0 0
      %2640 = vmatpush1.bf16.msra.mxu0 0
      %2641 = vmatprep.subr.bf16.mxu0 0
      %2642 = vmatpush1.bf16.msra.mxu0 0
      %2643 = vmatprep.subr.bf16.mxu0 0
      %2644 = vmatpush1.bf16.msra.mxu0 0
      %2645 = vmatprep.subr.bf16.mxu0 0
      %2646 = vmatpush1.bf16.msra.mxu0 0
      %2647 = vmatprep.subr.bf16.mxu0 0
      %2648 = vmatpush1.bf16.msra.mxu0 0
      %2649 = vmatprep.subr.bf16.mxu0 0
      %2650 = vmatpush1.bf16.msra.mxu0 0
      %2651 = vmatprep.subr.bf16.mxu0 0
      %2652 = vmatpush1.bf16.msra.mxu0 0
      %2653 = vmatprep.mubr.bf16.mxu0 0
      %2654 = vmatmul.mubr.bf16.gmra.mrb[0].mxu0 %v2616
      %v2655 = vpop.f32.mrb[0].mxu0
      %v2656 = vadd.f32 0.0, %v2655
      %v2657 = vpop.f32.mrb[0].mxu0
      %v2658 = vpop.f32.mrb[0].mxu0
      %v2659 = vadd.f32 0.0, %v2658
      %v2660 = vpop.f32.mrb[0].mxu0
      %2661 = vdwg.mxu0
      %v2663 = vsel %vm1355, %v2608, 0
      %v2666 = vsel %vm1362, %v2609, 0
      %2668 = vmatprep.subr.bf16.mxu0 0
      %2669 = vmatpush1.bf16.msra.mxu0 %v2666
      %2670 = vmatprep.subr.bf16.mxu0 0
      %2671 = vmatpush1.bf16.msra.mxu0 0
      %2672 = vmatprep.subr.bf16.mxu0 0
      %2673 = vmatpush1.bf16.msra.mxu0 0
      %2674 = vmatprep.subr.bf16.mxu0 0
      %2675 = vmatpush1.bf16.msra.mxu0 0
      %2676 = vmatprep.subr.bf16.mxu0 0
      %2677 = vmatpush1.bf16.msra.mxu0 0
      %2678 = vmatprep.subr.bf16.mxu0 0
      %2679 = vmatpush1.bf16.msra.mxu0 0
      %2680 = vmatprep.subr.bf16.mxu0 0
      %2681 = vmatpush1.bf16.msra.mxu0 0
      %2682 = vmatprep.subr.bf16.mxu0 0
      %2683 = vmatpush1.bf16.msra.mxu0 0
      %2684 = vmatprep.subr.bf16.mxu0 0
      %2685 = vmatpush1.bf16.msra.mxu0 0
      %2686 = vmatprep.subr.bf16.mxu0 0
      %2687 = vmatpush1.bf16.msra.mxu0 0
      %2688 = vmatprep.subr.bf16.mxu0 0
      %2689 = vmatpush1.bf16.msra.mxu0 0
      %2690 = vmatprep.subr.bf16.mxu0 0
      %2691 = vmatpush1.bf16.msra.mxu0 0
      %2692 = vmatprep.subr.bf16.mxu0 0
      %2693 = vmatpush1.bf16.msra.mxu0 0
      %2694 = vmatprep.subr.bf16.mxu0 0
      %2695 = vmatpush1.bf16.msra.mxu0 0
      %2696 = vmatprep.subr.bf16.mxu0 0
      %2697 = vmatpush1.bf16.msra.mxu0 0
      %2698 = vmatprep.subr.bf16.mxu0 0
      %2699 = vmatpush1.bf16.msra.mxu0 0
      %2700 = vmatprep.mubr.bf16.mxu0 0
      %2701 = vmatmul.mubr.bf16.gmra.mrb[0].mxu0 %v2663
      %v2702 = vpop.f32.mrb[0].mxu0
      %v2703 = vadd.f32 %v2656, %v2702
      %v2704 = vpop.f32.mrb[0].mxu0
      %v2705 = vpop.f32.mrb[0].mxu0
      %v2706 = vadd.f32 %v2659, %v2705
      %v2707 = vpop.f32.mrb[0].mxu0
      %2708 = vdwg.mxu0
      %v2709 = vld [vmem:[%s21] sm:$0x1]
      %v2711 = vlaneseq
      %v2712 = vshrl.u32 %v2711, 7
      %v2713 = vsub.s32 0, %v2712
      %v2714 = vrot.slane %v2709, %v2713
      %v2716 = vadd.f32 %v2703, %v2714
      %v2717 = vadd.f32 %v2706, %v2714
      %2718 = vst.msk [vmem:[%s993] sm:$0xff] %vm1035, %v2716
      %2719 = vst.msk [vmem:[%s993 + $0x8] sm:$0xff] %vm1035, %v2717
      %s2720 = smul.u32 2, %s38
      %p2721 = scmp.lt.s32.totalorder %s37, 1
      %s2722 = scalar_select %p2721, %s37, 1
      %p2723 = scmp.lt.s32.totalorder %s2720, 5
      %s2724 = scalar_select %p2723, %s2720, 5
      %s2725 = smul.addr %s2722, 6
      %s2726 = sadd.s32 %s2724, %s2725
      %s2727 = smul.addr %s2726, 8
      %s2728 = scalar_lea.vmem %s22, %s2727
      // Predicated region
      $region109: #{wide_flow_student_forward.5} parent=107 // pred_check
        %p2729 = pneg %p601
      $region110: #{wide_flow_student_forward.5} parent=107 // pred_check_branch
        %2731 = sbr.rel (%p2729) target = $region112
      $region111: #{wide_flow_student_forward.5} parent=107 // pred_region
        %s2732 = smul.u32 2, %s38
      $region112: #{wide_flow_student_forward.5} parent=107 // pred_fallthru
        _
    $region108: #{wide_flow_student_forward.5} parent=5 // pred_fallthru
      _
    %p2733 = scmp.le.s32.totalorder 2, %s28
    // Predicated region
    $region113: #{wide_flow_student_forward.5} parent=5 // pred_check
      %p2734 = pneg %p2733
    $region114: #{wide_flow_student_forward.5} parent=5 // pred_check_branch
      %2736 = sbr.rel (%p2734) target = $region116
    $region115: #{wide_flow_student_forward.5} parent=5 // pred_region
      %s2737 = ssub.s32 %s28, 2
      // Predicated region
      $region117: #{wide_flow_student_forward.5} parent=115 // pred_check
        %p2738 = pneg %p607
      $region118: #{wide_flow_student_forward.5} parent=115 // pred_check_branch
        %2740 = sbr.rel (%p2738) target = $region120
      $region119: #{wide_flow_student_forward.5} parent=115 // pred_region
        %s2741 = smul.u32 2, %s40
        %p2742 = scmp.lt.s32.totalorder %s39, 1
        %s2743 = scalar_select %p2742, %s39, 1
        %p2744 = scmp.lt.s32.totalorder %s2741, 5
        %s2745 = scalar_select %p2744, %s2741, 5
        %s2746 = smul.addr %s2743, 6
        %s2747 = sadd.s32 %s2745, %s2746
        %s2748 = smul.addr %s2747, 8
        %s2749 = scalar_lea.vmem %s22, %s2748
      $region120: #{wide_flow_student_forward.5} parent=115 // pred_fallthru
        _
    $region116: #{wide_flow_student_forward.5} parent=5 // pred_fallthru
      _
  $region6: #{wide_flow_student_forward.5} parent=0 // loop_footer
    %s32 = sadd.s32 1, %s28
  $region7: #{wide_flow_student_forward.5} parent=0 // loop_footer_branch
    %27 = sbr.rel target = $region3
  $region8: #{wide_flow_student_forward.5} parent=0 // loop_exit
    _

</llo_original>
